<compile_context>
chip_gen: v6e
topology: v6e:2x2x1
jax: 0.10.0
libtpu: 0.0.40
codegen_flags: <defaults>
</compile_context>

<pallas_src>
import functools

import jax
import jax.numpy as jnp
from jax.experimental import pallas as pl
from jax.experimental.pallas import tpu as pltpu


def _round_up(n, mult):
    return ((n + mult - 1) // mult) * mult


# --------------------------------------------------------------------------
# Fused 10-layer MLP kernel: weights resident in VMEM, layer loop unrolled,
# activations carried in vregs.
# --------------------------------------------------------------------------
def _fused_mlp_kernel(*refs, n_layers):
    """refs = (x, w1, b1, ..., wN, bN, out).

    x:   [TM, K0]       bf16 (K0 padded to 128)
    wi:  [Ki, Ni]       bf16 (padded to multiples of 128), resident across grid
    bi:  [1,  Ni]       f32
    out: [TM, N_last]   f32
    """
    x_ref = refs[0]
    wb_refs = refs[1:1 + 2 * n_layers]
    o_ref = refs[1 + 2 * n_layers]

    cur = x_ref[...]                              # bf16 (TM, K0)
    for i in range(n_layers):
        w_ref = wb_refs[2 * i]
        b_ref = wb_refs[2 * i + 1]
        # Single-pass bf16 MXU matmul with f32 accumulation.
        y = jnp.dot(cur, w_ref[...], preferred_element_type=jnp.float32)
        y = y + b_ref[...]                        # f32 bias add
        if i < n_layers - 1:
            y = jnp.maximum(y, 0.0)               # ReLU
            # Dropout: eval-mode identity (see TODO at top of file).
            cur = y.astype(jnp.bfloat16)          # stay in vregs, bf16 for MXU
        else:
            o_ref[...] = y.astype(o_ref.dtype)


def fused_mlp(x_pad, padded_params, *, tile_m):
    """Single pallas_call running the whole padded MLP, gridded over M."""
    m_pad, k0_pad = x_pad.shape
    n_layers = len(padded_params)
    out_cols_pad = padded_params[-1][0].shape[1]
    max_hidden = max(w.shape[1] for (w, _) in padded_params)
    n_m_tiles = m_pad // tile_m

    flat_wb = []
    wb_specs = []
    flops = 0
    weight_bytes = 0
    for w, b in padded_params:
        flat_wb.extend([w, b])
        # Whole weight/bias block, same (constant) block index for every grid
        # step -> DMA'd once and kept resident in VMEM.
        wb_specs.append(pl.BlockSpec(w.shape, lambda i: (0, 0)))
        wb_specs.append(pl.BlockSpec(b.shape, lambda i: (0, 0)))
        flops += 2 * m_pad * w.shape[0] * w.shape[1]
        weight_bytes += w.size * w.dtype.itemsize + b.size * b.dtype.itemsize

    x_spec = pl.BlockSpec((tile_m, k0_pad), lambda i: (i, 0))
    out_spec = pl.BlockSpec((tile_m, out_cols_pad), lambda i: (i, 0))

    # VMEM budget: double-buffered blocks + headroom for spilled activations.
    x_block_bytes = tile_m * k0_pad * x_pad.dtype.itemsize
    out_block_bytes = tile_m * out_cols_pad * 4
    vmem_limit = 2 * (x_block_bytes + out_block_bytes + weight_bytes)
    vmem_limit += 8 * tile_m * max_hidden * 4 + (2 << 20)
    vmem_limit = int(min(vmem_limit, 64 * 1024 * 1024))

    bytes_accessed = int(
        x_pad.size * x_pad.dtype.itemsize + m_pad * out_cols_pad * 4
        + weight_bytes
    )

    return pl.pallas_call(
        functools.partial(_fused_mlp_kernel, n_layers=n_layers),
        out_shape=jax.ShapeDtypeStruct((m_pad, out_cols_pad), jnp.float32),
        grid_spec=pltpu.PrefetchScalarGridSpec(
            num_scalar_prefetch=0,
            grid=(n_m_tiles,),
            in_specs=[x_spec] + wb_specs,
            out_specs=out_spec,
        ),
        compiler_params=pltpu.CompilerParams(
            dimension_semantics=("parallel",),
            vmem_limit_bytes=vmem_limit,
        ),
        cost_estimate=pl.CostEstimate(
            flops=flops, transcendentals=0, bytes_accessed=bytes_accessed
        ),
    )(x_pad, *flat_wb)


# --------------------------------------------------------------------------
# Parameter construction / padding / forward wrapper
# --------------------------------------------------------------------------
def init_params(key, input_size, prediction_days, dim_feedforward):
    """Deterministic init mimicking nn.Linear's uniform(-1/sqrt(fan_in), ...).

    Weights stored as [in_features, out_features] (transpose of PyTorch)."""
    dims_in = [input_size] + [dim_feedforward * (2 ** i) for i in range(9)]
    dims_out = [dim_feedforward * (2 ** i) for i in range(9)] + [prediction_days]
    params = []
    for d_in, d_out in zip(dims_in, dims_out):
        key, kw, kb = jax.random.split(key, 3)
        bound = 1.0 / (d_in ** 0.5)
        w = jax.random.uniform(kw, (d_in, d_out), jnp.float32, -bound, bound)
        b = jax.random.uniform(kb, (1, d_out), jnp.float32, -bound, bound)
        params.append((w, b))
    return params


def prepare_padded_params(params):
    """Zero-pad feature dims to multiples of 128 and cast weights to bf16.

    Call ONCE at init/load time (NOT per forward call) so the pad/cast traffic
    never competes with the kernel's weight DMA."""
    padded = []
    for w, b in params:
        k, n = w.shape
        k_pad, n_pad = _round_up(k, 128), _round_up(n, 128)
        w_p = jnp.pad(w, ((0, k_pad - k), (0, n_pad - n))).astype(jnp.bfloat16)
        b_p = jnp.pad(b, ((0, 0), (0, n_pad - n))).astype(jnp.float32)
        padded.append((w_p, b_p))
    return padded


def _choose_tiling(m):
    """Pick (tile_m, m_pad): one tile for small M, 256-row tiles otherwise."""
    m8 = max(8, _round_up(m, 8))
    if m8 <= 256:
        return m8, m8
    tile_m = 256                      # multiple of 128 -> fills v5e/v6e MXU
    return tile_m, _round_up(m8, tile_m)


def transformer_forward(x, padded_params, *, input_size, n_out):
    """Matches Transformer.forward (eval mode: dropout = identity).

    `padded_params` must come from prepare_padded_params()."""
    h = x.reshape(-1, input_size).astype(jnp.float32)
    m, k = h.shape
    tile_m, m_pad = _choose_tiling(m)
    k_pad = padded_params[0][0].shape[0]
    h_pad = jnp.pad(h, ((0, m_pad - m), (0, k_pad - k))).astype(jnp.bfloat16)

    out_pad = fused_mlp(h_pad, padded_params, tile_m=tile_m)
    return out_pad[:m, :n_out]


def reference_forward(x, params, input_size, simulate_bf16=False):
    """Pure-JAX reference of the eval-mode forward pass.

    simulate_bf16=True mimics the kernel's bf16 weight/activation rounding
    (f32 accumulation), so it should match the kernel tightly."""
    h = x.reshape(-1, input_size).astype(jnp.float32)
    n_layers = len(params)
    for i, (w, b) in enumerate(params):
        if simulate_bf16:
            w = w.astype(jnp.bfloat16).astype(jnp.float32)
            h = h.astype(jnp.bfloat16).astype(jnp.float32)
        h = h @ w + b
        if i < n_layers - 1:
            h = jnp.maximum(h, 0.0)
    return h


if __name__ == "__main__":
    # Small, deterministic configuration consistent with the module.
    input_size = 8
    prediction_days = 5
    dim_feedforward = 4          # hidden widths: 4, 8, 16, ..., 1024

    key = jax.random.PRNGKey(0)
    key, xkey = jax.random.split(key)

    # Example input; forward() reshapes to (-1, input_size) -> (8, 8) rows.
    x = jax.random.normal(xkey, (2, 4, input_size), dtype=jnp.float32)

    params = init_params(key, input_size, prediction_days, dim_feedforward)
    # Pad + cast ONCE (init/load time), not on every forward call.
    padded_params = jax.tree_util.tree_map(
        jax.block_until_ready, prepare_padded_params(params))

    fwd = jax.jit(functools.partial(
        transformer_forward, input_size=input_size, n_out=prediction_days))
    out = jax.block_until_ready(fwd(x, padded_params))

    assert out.shape == (2 * 4, prediction_days)
    assert bool(jnp.all(jnp.isfinite(out)))

    # Tight check vs. a reference that applies the same bf16 rounding
    # (differences only from f32 accumulation order).
    ref_q = reference_forward(x, params, input_size, simulate_bf16=True)
    assert bool(jnp.allclose(out, ref_q, atol=1e-4, rtol=1e-2))

    # Loose check vs. the full-f32 reference (bf16 weights/activations trade
    # a little precision for ~2x less weight DMA in this DMA-bound kernel).
    ref = reference_forward(x, params, input_size, simulate_bf16=False)
    assert bool(jnp.allclose(out, ref, atol=2e-2, rtol=2e-1))

    print("KERNEL_OK")
</pallas_src>

<mosaic_0001>
module attributes {stable_mosaic.version = 11 : i64} {
  func.func @_fused_mlp_kernel(%arg0: i32, %arg1: memref<8x128xbf16, #tpu.memory_space<vmem>>, %arg2: memref<128x128xbf16, #tpu.memory_space<vmem>>, %arg3: memref<1x128xf32, #tpu.memory_space<vmem>>, %arg4: memref<128x128xbf16, #tpu.memory_space<vmem>>, %arg5: memref<1x128xf32, #tpu.memory_space<vmem>>, %arg6: memref<128x128xbf16, #tpu.memory_space<vmem>>, %arg7: memref<1x128xf32, #tpu.memory_space<vmem>>, %arg8: memref<128x128xbf16, #tpu.memory_space<vmem>>, %arg9: memref<1x128xf32, #tpu.memory_space<vmem>>, %arg10: memref<128x128xbf16, #tpu.memory_space<vmem>>, %arg11: memref<1x128xf32, #tpu.memory_space<vmem>>, %arg12: memref<128x128xbf16, #tpu.memory_space<vmem>>, %arg13: memref<1x128xf32, #tpu.memory_space<vmem>>, %arg14: memref<128x256xbf16, #tpu.memory_space<vmem>>, %arg15: memref<1x256xf32, #tpu.memory_space<vmem>>, %arg16: memref<256x512xbf16, #tpu.memory_space<vmem>>, %arg17: memref<1x512xf32, #tpu.memory_space<vmem>>, %arg18: memref<512x1024xbf16, #tpu.memory_space<vmem>>, %arg19: memref<1x1024xf32, #tpu.memory_space<vmem>>, %arg20: memref<1024x128xbf16, #tpu.memory_space<vmem>>, %arg21: memref<1x128xf32, #tpu.memory_space<vmem>>, %arg22: memref<8x128xf32, #tpu.memory_space<vmem>>) attributes {dimension_semantics = [#tpu.dimension_semantics<parallel>], iteration_bounds = array<i64: 1>, scalar_prefetch = 0 : i64, scratch_operands = 0 : i64, tpu.core_type = #tpu.core_type<tc>, window_params = [{transform_indices = @transform_0, window_bounds = array<i64: 8, 128>}, {pipeline_mode = #tpu.pipeline_mode<synchronous>, transform_indices = @transform_1, window_bounds = array<i64: 128, 128>}, {pipeline_mode = #tpu.pipeline_mode<synchronous>, transform_indices = @transform_2, window_bounds = array<i64: 1, 128>}, {pipeline_mode = #tpu.pipeline_mode<synchronous>, transform_indices = @transform_3, window_bounds = array<i64: 128, 128>}, {pipeline_mode = #tpu.pipeline_mode<synchronous>, transform_indices = @transform_4, window_bounds = array<i64: 1, 128>}, {pipeline_mode = #tpu.pipeline_mode<synchronous>, transform_indices = @transform_5, window_bounds = array<i64: 128, 128>}, {pipeline_mode = #tpu.pipeline_mode<synchronous>, transform_indices = @transform_6, window_bounds = array<i64: 1, 128>}, {pipeline_mode = #tpu.pipeline_mode<synchronous>, transform_indices = @transform_7, window_bounds = array<i64: 128, 128>}, {pipeline_mode = #tpu.pipeline_mode<synchronous>, transform_indices = @transform_8, window_bounds = array<i64: 1, 128>}, {pipeline_mode = #tpu.pipeline_mode<synchronous>, transform_indices = @transform_9, window_bounds = array<i64: 128, 128>}, {pipeline_mode = #tpu.pipeline_mode<synchronous>, transform_indices = @transform_10, window_bounds = array<i64: 1, 128>}, {pipeline_mode = #tpu.pipeline_mode<synchronous>, transform_indices = @transform_11, window_bounds = array<i64: 128, 128>}, {pipeline_mode = #tpu.pipeline_mode<synchronous>, transform_indices = @transform_12, window_bounds = array<i64: 1, 128>}, {pipeline_mode = #tpu.pipeline_mode<synchronous>, transform_indices = @transform_13, window_bounds = array<i64: 128, 256>}, {pipeline_mode = #tpu.pipeline_mode<synchronous>, transform_indices = @transform_14, window_bounds = array<i64: 1, 256>}, {pipeline_mode = #tpu.pipeline_mode<synchronous>, transform_indices = @transform_15, window_bounds = array<i64: 256, 512>}, {pipeline_mode = #tpu.pipeline_mode<synchronous>, transform_indices = @transform_16, window_bounds = array<i64: 1, 512>}, {pipeline_mode = #tpu.pipeline_mode<synchronous>, transform_indices = @transform_17, window_bounds = array<i64: 512, 1024>}, {pipeline_mode = #tpu.pipeline_mode<synchronous>, transform_indices = @transform_18, window_bounds = array<i64: 1, 1024>}, {pipeline_mode = #tpu.pipeline_mode<synchronous>, transform_indices = @transform_19, window_bounds = array<i64: 1024, 128>}, {pipeline_mode = #tpu.pipeline_mode<synchronous>, transform_indices = @transform_20, window_bounds = array<i64: 1, 128>}, {transform_indices = @transform_21, window_bounds = array<i64: 8, 128>}]} {
    %c0 = arith.constant 0 : index
    %c0_0 = arith.constant 0 : index
    %0 = vector.load %arg1[%c0, %c0_0] : memref<8x128xbf16, #tpu.memory_space<vmem>>, vector<8x128xbf16>
    %c0_1 = arith.constant 0 : index
    %c0_2 = arith.constant 0 : index
    %1 = vector.load %arg2[%c0_1, %c0_2] : memref<128x128xbf16, #tpu.memory_space<vmem>>, vector<128x128xbf16>
    %cst = arith.constant dense<0.000000e+00> : vector<8x128xf32>
    %2 = tpu.matmul %0, %1, %cst {dimension_numbers = #tpu.dot_dimension_numbers<[1], [0], [0], [1], [0, 0, 1, 1], [], []>} : vector<8x128xbf16>, vector<128x128xbf16>, vector<8x128xf32> -> vector<8x128xf32>
    %c0_3 = arith.constant 0 : index
    %c0_4 = arith.constant 0 : index
    %3 = vector.load %arg3[%c0_3, %c0_4] : memref<1x128xf32, #tpu.memory_space<vmem>>, vector<1x128xf32>
    %4 = vector.broadcast %3 : vector<1x128xf32> to vector<8x128xf32>
    %5 = arith.addf %2, %4 : vector<8x128xf32>
    %cst_5 = arith.constant 0.000000e+00 : f32
    %6 = vector.broadcast %cst_5 : f32 to vector<8x128xf32>
    %7 = arith.maximumf %5, %6 : vector<8x128xf32>
    %8 = arith.truncf %7 : vector<8x128xf32> to vector<8x128xbf16>
    %c0_6 = arith.constant 0 : index
    %c0_7 = arith.constant 0 : index
    %9 = vector.load %arg4[%c0_6, %c0_7] : memref<128x128xbf16, #tpu.memory_space<vmem>>, vector<128x128xbf16>
    %cst_8 = arith.constant dense<0.000000e+00> : vector<8x128xf32>
    %10 = tpu.matmul %8, %9, %cst_8 {dimension_numbers = #tpu.dot_dimension_numbers<[1], [0], [0], [1], [0, 0, 1, 1], [], []>} : vector<8x128xbf16>, vector<128x128xbf16>, vector<8x128xf32> -> vector<8x128xf32>
    %c0_9 = arith.constant 0 : index
    %c0_10 = arith.constant 0 : index
    %11 = vector.load %arg5[%c0_9, %c0_10] : memref<1x128xf32, #tpu.memory_space<vmem>>, vector<1x128xf32>
    %12 = vector.broadcast %11 : vector<1x128xf32> to vector<8x128xf32>
    %13 = arith.addf %10, %12 : vector<8x128xf32>
    %cst_11 = arith.constant 0.000000e+00 : f32
    %14 = vector.broadcast %cst_11 : f32 to vector<8x128xf32>
    %15 = arith.maximumf %13, %14 : vector<8x128xf32>
    %16 = arith.truncf %15 : vector<8x128xf32> to vector<8x128xbf16>
    %c0_12 = arith.constant 0 : index
    %c0_13 = arith.constant 0 : index
    %17 = vector.load %arg6[%c0_12, %c0_13] : memref<128x128xbf16, #tpu.memory_space<vmem>>, vector<128x128xbf16>
    %cst_14 = arith.constant dense<0.000000e+00> : vector<8x128xf32>
    %18 = tpu.matmul %16, %17, %cst_14 {dimension_numbers = #tpu.dot_dimension_numbers<[1], [0], [0], [1], [0, 0, 1, 1], [], []>} : vector<8x128xbf16>, vector<128x128xbf16>, vector<8x128xf32> -> vector<8x128xf32>
    %c0_15 = arith.constant 0 : index
    %c0_16 = arith.constant 0 : index
    %19 = vector.load %arg7[%c0_15, %c0_16] : memref<1x128xf32, #tpu.memory_space<vmem>>, vector<1x128xf32>
    %20 = vector.broadcast %19 : vector<1x128xf32> to vector<8x128xf32>
    %21 = arith.addf %18, %20 : vector<8x128xf32>
    %cst_17 = arith.constant 0.000000e+00 : f32
    %22 = vector.broadcast %cst_17 : f32 to vector<8x128xf32>
    %23 = arith.maximumf %21, %22 : vector<8x128xf32>
    %24 = arith.truncf %23 : vector<8x128xf32> to vector<8x128xbf16>
    %c0_18 = arith.constant 0 : index
    %c0_19 = arith.constant 0 : index
    %25 = vector.load %arg8[%c0_18, %c0_19] : memref<128x128xbf16, #tpu.memory_space<vmem>>, vector<128x128xbf16>
    %cst_20 = arith.constant dense<0.000000e+00> : vector<8x128xf32>
    %26 = tpu.matmul %24, %25, %cst_20 {dimension_numbers = #tpu.dot_dimension_numbers<[1], [0], [0], [1], [0, 0, 1, 1], [], []>} : vector<8x128xbf16>, vector<128x128xbf16>, vector<8x128xf32> -> vector<8x128xf32>
    %c0_21 = arith.constant 0 : index
    %c0_22 = arith.constant 0 : index
    %27 = vector.load %arg9[%c0_21, %c0_22] : memref<1x128xf32, #tpu.memory_space<vmem>>, vector<1x128xf32>
    %28 = vector.broadcast %27 : vector<1x128xf32> to vector<8x128xf32>
    %29 = arith.addf %26, %28 : vector<8x128xf32>
    %cst_23 = arith.constant 0.000000e+00 : f32
    %30 = vector.broadcast %cst_23 : f32 to vector<8x128xf32>
    %31 = arith.maximumf %29, %30 : vector<8x128xf32>
    %32 = arith.truncf %31 : vector<8x128xf32> to vector<8x128xbf16>
    %c0_24 = arith.constant 0 : index
    %c0_25 = arith.constant 0 : index
    %33 = vector.load %arg10[%c0_24, %c0_25] : memref<128x128xbf16, #tpu.memory_space<vmem>>, vector<128x128xbf16>
    %cst_26 = arith.constant dense<0.000000e+00> : vector<8x128xf32>
    %34 = tpu.matmul %32, %33, %cst_26 {dimension_numbers = #tpu.dot_dimension_numbers<[1], [0], [0], [1], [0, 0, 1, 1], [], []>} : vector<8x128xbf16>, vector<128x128xbf16>, vector<8x128xf32> -> vector<8x128xf32>
    %c0_27 = arith.constant 0 : index
    %c0_28 = arith.constant 0 : index
    %35 = vector.load %arg11[%c0_27, %c0_28] : memref<1x128xf32, #tpu.memory_space<vmem>>, vector<1x128xf32>
    %36 = vector.broadcast %35 : vector<1x128xf32> to vector<8x128xf32>
    %37 = arith.addf %34, %36 : vector<8x128xf32>
    %cst_29 = arith.constant 0.000000e+00 : f32
    %38 = vector.broadcast %cst_29 : f32 to vector<8x128xf32>
    %39 = arith.maximumf %37, %38 : vector<8x128xf32>
    %40 = arith.truncf %39 : vector<8x128xf32> to vector<8x128xbf16>
    %c0_30 = arith.constant 0 : index
    %c0_31 = arith.constant 0 : index
    %41 = vector.load %arg12[%c0_30, %c0_31] : memref<128x128xbf16, #tpu.memory_space<vmem>>, vector<128x128xbf16>
    %cst_32 = arith.constant dense<0.000000e+00> : vector<8x128xf32>
    %42 = tpu.matmul %40, %41, %cst_32 {dimension_numbers = #tpu.dot_dimension_numbers<[1], [0], [0], [1], [0, 0, 1, 1], [], []>} : vector<8x128xbf16>, vector<128x128xbf16>, vector<8x128xf32> -> vector<8x128xf32>
    %c0_33 = arith.constant 0 : index
    %c0_34 = arith.constant 0 : index
    %43 = vector.load %arg13[%c0_33, %c0_34] : memref<1x128xf32, #tpu.memory_space<vmem>>, vector<1x128xf32>
    %44 = vector.broadcast %43 : vector<1x128xf32> to vector<8x128xf32>
    %45 = arith.addf %42, %44 : vector<8x128xf32>
    %cst_35 = arith.constant 0.000000e+00 : f32
    %46 = vector.broadcast %cst_35 : f32 to vector<8x128xf32>
    %47 = arith.maximumf %45, %46 : vector<8x128xf32>
    %48 = arith.truncf %47 : vector<8x128xf32> to vector<8x128xbf16>
    %c0_36 = arith.constant 0 : index
    %c0_37 = arith.constant 0 : index
    %49 = vector.load %arg14[%c0_36, %c0_37] : memref<128x256xbf16, #tpu.memory_space<vmem>>, vector<128x256xbf16>
    %cst_38 = arith.constant dense<0.000000e+00> : vector<8x256xf32>
    %50 = tpu.matmul %48, %49, %cst_38 {dimension_numbers = #tpu.dot_dimension_numbers<[1], [0], [0], [1], [0, 0, 1, 1], [], []>} : vector<8x128xbf16>, vector<128x256xbf16>, vector<8x256xf32> -> vector<8x256xf32>
    %c0_39 = arith.constant 0 : index
    %c0_40 = arith.constant 0 : index
    %51 = vector.load %arg15[%c0_39, %c0_40] : memref<1x256xf32, #tpu.memory_space<vmem>>, vector<1x256xf32>
    %52 = vector.broadcast %51 : vector<1x256xf32> to vector<8x256xf32>
    %53 = arith.addf %50, %52 : vector<8x256xf32>
    %cst_41 = arith.constant 0.000000e+00 : f32
    %54 = vector.broadcast %cst_41 : f32 to vector<8x256xf32>
    %55 = arith.maximumf %53, %54 : vector<8x256xf32>
    %56 = arith.truncf %55 : vector<8x256xf32> to vector<8x256xbf16>
    %c0_42 = arith.constant 0 : index
    %c0_43 = arith.constant 0 : index
    %57 = vector.load %arg16[%c0_42, %c0_43] : memref<256x512xbf16, #tpu.memory_space<vmem>>, vector<256x512xbf16>
    %cst_44 = arith.constant dense<0.000000e+00> : vector<8x512xf32>
    %58 = tpu.matmul %56, %57, %cst_44 {dimension_numbers = #tpu.dot_dimension_numbers<[1], [0], [0], [1], [0, 0, 1, 1], [], []>} : vector<8x256xbf16>, vector<256x512xbf16>, vector<8x512xf32> -> vector<8x512xf32>
    %c0_45 = arith.constant 0 : index
    %c0_46 = arith.constant 0 : index
    %59 = vector.load %arg17[%c0_45, %c0_46] : memref<1x512xf32, #tpu.memory_space<vmem>>, vector<1x512xf32>
    %60 = vector.broadcast %59 : vector<1x512xf32> to vector<8x512xf32>
    %61 = arith.addf %58, %60 : vector<8x512xf32>
    %cst_47 = arith.constant 0.000000e+00 : f32
    %62 = vector.broadcast %cst_47 : f32 to vector<8x512xf32>
    %63 = arith.maximumf %61, %62 : vector<8x512xf32>
    %64 = arith.truncf %63 : vector<8x512xf32> to vector<8x512xbf16>
    %c0_48 = arith.constant 0 : index
    %c0_49 = arith.constant 0 : index
    %65 = vector.load %arg18[%c0_48, %c0_49] : memref<512x1024xbf16, #tpu.memory_space<vmem>>, vector<512x1024xbf16>
    %cst_50 = arith.constant dense<0.000000e+00> : vector<8x1024xf32>
    %66 = tpu.matmul %64, %65, %cst_50 {dimension_numbers = #tpu.dot_dimension_numbers<[1], [0], [0], [1], [0, 0, 1, 1], [], []>} : vector<8x512xbf16>, vector<512x1024xbf16>, vector<8x1024xf32> -> vector<8x1024xf32>
    %c0_51 = arith.constant 0 : index
    %c0_52 = arith.constant 0 : index
    %67 = vector.load %arg19[%c0_51, %c0_52] : memref<1x1024xf32, #tpu.memory_space<vmem>>, vector<1x1024xf32>
    %68 = vector.broadcast %67 : vector<1x1024xf32> to vector<8x1024xf32>
    %69 = arith.addf %66, %68 : vector<8x1024xf32>
    %cst_53 = arith.constant 0.000000e+00 : f32
    %70 = vector.broadcast %cst_53 : f32 to vector<8x1024xf32>
    %71 = arith.maximumf %69, %70 : vector<8x1024xf32>
    %72 = arith.truncf %71 : vector<8x1024xf32> to vector<8x1024xbf16>
    %c0_54 = arith.constant 0 : index
    %c0_55 = arith.constant 0 : index
    %73 = vector.load %arg20[%c0_54, %c0_55] : memref<1024x128xbf16, #tpu.memory_space<vmem>>, vector<1024x128xbf16>
    %cst_56 = arith.constant dense<0.000000e+00> : vector<8x128xf32>
    %74 = tpu.matmul %72, %73, %cst_56 {dimension_numbers = #tpu.dot_dimension_numbers<[1], [0], [0], [1], [0, 0, 1, 1], [], []>} : vector<8x1024xbf16>, vector<1024x128xbf16>, vector<8x128xf32> -> vector<8x128xf32>
    %c0_57 = arith.constant 0 : index
    %c0_58 = arith.constant 0 : index
    %75 = vector.load %arg21[%c0_57, %c0_58] : memref<1x128xf32, #tpu.memory_space<vmem>>, vector<1x128xf32>
    %76 = vector.broadcast %75 : vector<1x128xf32> to vector<8x128xf32>
    %77 = arith.addf %74, %76 : vector<8x128xf32>
    %c0_59 = arith.constant 0 : index
    %c0_60 = arith.constant 0 : index
    %78 = vector.load %arg22[%c0_59, %c0_60] : memref<8x128xf32, #tpu.memory_space<vmem>>, vector<8x128xf32>
    tpu.vector_store %arg22[%c0_59, %c0_60], %77 {strides = array<i32>} : memref<8x128xf32, #tpu.memory_space<vmem>>, vector<8x128xf32>,
    return
  }
  func.func @transform_0(%arg0: i32) -> (i32, i32) {
    %c0_i32 = arith.constant 0 : i32
    %c0_i32_0 = arith.constant 0 : i32
    return %arg0, %c0_i32 : i32, i32
  }
  func.func @transform_1(%arg0: i32) -> (i32, i32) {
    %c0_i32 = arith.constant 0 : i32
    %c0_i32_0 = arith.constant 0 : i32
    %c0_i32_1 = arith.constant 0 : i32
    return %c0_i32, %c0_i32_0 : i32, i32
  }
  func.func @transform_2(%arg0: i32) -> (i32, i32) {
    %c0_i32 = arith.constant 0 : i32
    %c0_i32_0 = arith.constant 0 : i32
    %c0_i32_1 = arith.constant 0 : i32
    return %c0_i32, %c0_i32_0 : i32, i32
  }
  func.func @transform_3(%arg0: i32) -> (i32, i32) {
    %c0_i32 = arith.constant 0 : i32
    %c0_i32_0 = arith.constant 0 : i32
    %c0_i32_1 = arith.constant 0 : i32
    return %c0_i32, %c0_i32_0 : i32, i32
  }
  func.func @transform_4(%arg0: i32) -> (i32, i32) {
    %c0_i32 = arith.constant 0 : i32
    %c0_i32_0 = arith.constant 0 : i32
    %c0_i32_1 = arith.constant 0 : i32
    return %c0_i32, %c0_i32_0 : i32, i32
  }
  func.func @transform_5(%arg0: i32) -> (i32, i32) {
    %c0_i32 = arith.constant 0 : i32
    %c0_i32_0 = arith.constant 0 : i32
    %c0_i32_1 = arith.constant 0 : i32
    return %c0_i32, %c0_i32_0 : i32, i32
  }
  func.func @transform_6(%arg0: i32) -> (i32, i32) {
    %c0_i32 = arith.constant 0 : i32
    %c0_i32_0 = arith.constant 0 : i32
    %c0_i32_1 = arith.constant 0 : i32
    return %c0_i32, %c0_i32_0 : i32, i32
  }
  func.func @transform_7(%arg0: i32) -> (i32, i32) {
    %c0_i32 = arith.constant 0 : i32
    %c0_i32_0 = arith.constant 0 : i32
    %c0_i32_1 = arith.constant 0 : i32
    return %c0_i32, %c0_i32_0 : i32, i32
  }
  func.func @transform_8(%arg0: i32) -> (i32, i32) {
    %c0_i32 = arith.constant 0 : i32
    %c0_i32_0 = arith.constant 0 : i32
    %c0_i32_1 = arith.constant 0 : i32
    return %c0_i32, %c0_i32_0 : i32, i32
  }
  func.func @transform_9(%arg0: i32) -> (i32, i32) {
    %c0_i32 = arith.constant 0 : i32
    %c0_i32_0 = arith.constant 0 : i32
    %c0_i32_1 = arith.constant 0 : i32
    return %c0_i32, %c0_i32_0 : i32, i32
  }
  func.func @transform_10(%arg0: i32) -> (i32, i32) {
    %c0_i32 = arith.constant 0 : i32
    %c0_i32_0 = arith.constant 0 : i32
    %c0_i32_1 = arith.constant 0 : i32
    return %c0_i32, %c0_i32_0 : i32, i32
  }
  func.func @transform_11(%arg0: i32) -> (i32, i32) {
    %c0_i32 = arith.constant 0 : i32
    %c0_i32_0 = arith.constant 0 : i32
    %c0_i32_1 = arith.constant 0 : i32
    return %c0_i32, %c0_i32_0 : i32, i32
  }
  func.func @transform_12(%arg0: i32) -> (i32, i32) {
    %c0_i32 = arith.constant 0 : i32
    %c0_i32_0 = arith.constant 0 : i32
    %c0_i32_1 = arith.constant 0 : i32
    return %c0_i32, %c0_i32_0 : i32, i32
  }
  func.func @transform_13(%arg0: i32) -> (i32, i32) {
    %c0_i32 = arith.constant 0 : i32
    %c0_i32_0 = arith.constant 0 : i32
    %c0_i32_1 = arith.constant 0 : i32
    return %c0_i32, %c0_i32_0 : i32, i32
  }
  func.func @transform_14(%arg0: i32) -> (i32, i32) {
    %c0_i32 = arith.constant 0 : i32
    %c0_i32_0 = arith.constant 0 : i32
    %c0_i32_1 = arith.constant 0 : i32
    return %c0_i32, %c0_i32_0 : i32, i32
  }
  func.func @transform_15(%arg0: i32) -> (i32, i32) {
    %c0_i32 = arith.constant 0 : i32
    %c0_i32_0 = arith.constant 0 : i32
    %c0_i32_1 = arith.constant 0 : i32
    return %c0_i32, %c0_i32_0 : i32, i32
  }
  func.func @transform_16(%arg0: i32) -> (i32, i32) {
    %c0_i32 = arith.constant 0 : i32
    %c0_i32_0 = arith.constant 0 : i32
    %c0_i32_1 = arith.constant 0 : i32
    return %c0_i32, %c0_i32_0 : i32, i32
  }
  func.func @transform_17(%arg0: i32) -> (i32, i32) {
    %c0_i32 = arith.constant 0 : i32
    %c0_i32_0 = arith.constant 0 : i32
    %c0_i32_1 = arith.constant 0 : i32
    return %c0_i32, %c0_i32_0 : i32, i32
  }
  func.func @transform_18(%arg0: i32) -> (i32, i32) {
    %c0_i32 = arith.constant 0 : i32
    %c0_i32_0 = arith.constant 0 : i32
    %c0_i32_1 = arith.constant 0 : i32
    return %c0_i32, %c0_i32_0 : i32, i32
  }
  func.func @transform_19(%arg0: i32) -> (i32, i32) {
    %c0_i32 = arith.constant 0 : i32
    %c0_i32_0 = arith.constant 0 : i32
    %c0_i32_1 = arith.constant 0 : i32
    return %c0_i32, %c0_i32_0 : i32, i32
  }
  func.func @transform_20(%arg0: i32) -> (i32, i32) {
    %c0_i32 = arith.constant 0 : i32
    %c0_i32_0 = arith.constant 0 : i32
    %c0_i32_1 = arith.constant 0 : i32
    return %c0_i32, %c0_i32_0 : i32, i32
  }
  func.func @transform_21(%arg0: i32) -> (i32, i32) {
    %c0_i32 = arith.constant 0 : i32
    %c0_i32_0 = arith.constant 0 : i32
    return %arg0, %c0_i32 : i32, i32
  }
}

</mosaic_0001>

<llo_original>
// kernel: transformer_forward.1
$region0: #{transformer_forward.1}
  #allocation0 [shape = 'u32[]', space=smem, size = 0x4, offset = 0x4, fixed_abs, tag = 'smem constant byte address 0x4 - core index']
  #allocation1 [shape = 'u32[144,128]{1,0:T(1,128)}', space=vmem, size = 0x12000, scoped, tag = 'internal scratch']
  %s0 = inlined_call_operand.vmem [shape: bf16[8,128], index: 0, kind: input, shape index: {}]
  %s1 = inlined_call_operand.hbm [shape: bf16[128,128], index: 1, kind: input, shape index: {}]
  %s2 = inlined_call_operand.vmem [shape: f32[1,128], index: 2, kind: input, shape index: {}]
  %s3 = inlined_call_operand.hbm [shape: bf16[128,128], index: 3, kind: input, shape index: {}]
  %s4 = inlined_call_operand.vmem [shape: f32[1,128], index: 4, kind: input, shape index: {}]
  %s5 = inlined_call_operand.hbm [shape: bf16[128,128], index: 5, kind: input, shape index: {}]
  %s6 = inlined_call_operand.vmem [shape: f32[1,128], index: 6, kind: input, shape index: {}]
  %s7 = inlined_call_operand.hbm [shape: bf16[128,128], index: 7, kind: input, shape index: {}]
  %s8 = inlined_call_operand.vmem [shape: f32[1,128], index: 8, kind: input, shape index: {}]
  %s9 = inlined_call_operand.hbm [shape: bf16[128,128], index: 9, kind: input, shape index: {}]
  %s10 = inlined_call_operand.vmem [shape: f32[1,128], index: 10, kind: input, shape index: {}]
  %s11 = inlined_call_operand.hbm [shape: bf16[128,128], index: 11, kind: input, shape index: {}]
  %s12 = inlined_call_operand.vmem [shape: f32[1,128], index: 12, kind: input, shape index: {}]
  %s13 = inlined_call_operand.hbm [shape: bf16[128,256], index: 13, kind: input, shape index: {}]
  %s14 = inlined_call_operand.vmem [shape: f32[1,256], index: 14, kind: input, shape index: {}]
  %s15 = inlined_call_operand.hbm [shape: bf16[256,512], index: 15, kind: input, shape index: {}]
  %s16 = inlined_call_operand.vmem [shape: f32[1,512], index: 16, kind: input, shape index: {}]
  %s17 = inlined_call_operand.hbm [shape: bf16[512,1024], index: 17, kind: input, shape index: {}]
  %s18 = inlined_call_operand.vmem [shape: f32[1,1024], index: 18, kind: input, shape index: {}]
  %s19 = inlined_call_operand.hbm [shape: bf16[1024,128], index: 19, kind: input, shape index: {}]
  %s20 = inlined_call_operand.vmem [shape: f32[1,128], index: 20, kind: input, shape index: {}]
  %s21 = inlined_call_operand.hbm [shape: f32[8,128], index: 21, kind: output, shape index: {}]
  %s22 = sld [smem:[#allocation0]]
  $region134: #{transformer_forward.1} parent=0
    _
  %s24 = ssub.s32 1, %s22
  %s25 = scalar_select 0, %s24, %s22
  $region1: #{transformer_forward.1} parent=0
    #allocation2 [shape = 'u8[32768]{0}', space=vmem, size = 0x8000, scoped, tag = 'input window, operand 1, single buffered']
    #allocation3 [shape = 's32[1]{0}', space=sflag, size = 0x4, scoped, tag = 'scoped memory for transformer_forward.1']
    #allocation4 [shape = 's32[1]{0}', space=sflag, size = 0x4, scoped, tag = 'scoped memory for transformer_forward.1']
    #allocation5 [shape = 'u8[32768]{0}', space=vmem, size = 0x8000, scoped, tag = 'input window, operand 3, single buffered']
    #allocation6 [shape = 's32[1]{0}', space=sflag, size = 0x4, scoped, tag = 'scoped memory for transformer_forward.1']
    #allocation7 [shape = 'u8[32768]{0}', space=vmem, size = 0x8000, scoped, tag = 'input window, operand 5, single buffered']
    #allocation8 [shape = 'u8[32768]{0}', space=vmem, size = 0x8000, scoped, tag = 'input window, operand 7, single buffered']
    #allocation9 [shape = 's32[1]{0}', space=sflag, size = 0x4, scoped, tag = 'scoped memory for transformer_forward.1']
    #allocation10 [shape = 'u8[32768]{0}', space=vmem, size = 0x8000, scoped, tag = 'input window, operand 9, single buffered']
    #allocation11 [shape = 'u8[32768]{0}', space=vmem, size = 0x8000, scoped, tag = 'input window, operand 11, single buffered']
    #allocation12 [shape = 's32[1]{0}', space=sflag, size = 0x4, scoped, tag = 'scoped memory for transformer_forward.1']
    #allocation13 [shape = 'u8[65536]{0}', space=vmem, size = 0x10000, scoped, tag = 'input window, operand 13, single buffered']
    #allocation14 [shape = 'u8[262144]{0}', space=vmem, size = 0x40000, scoped, tag = 'input window, operand 15, single buffered']
    #allocation15 [shape = 's32[1]{0}', space=sflag, size = 0x4, scoped, tag = 'scoped memory for transformer_forward.1']
    #allocation16 [shape = 'u8[1048576]{0}', space=vmem, size = 0x100000, scoped, tag = 'input window, operand 17, single buffered']
    #allocation17 [shape = 'u8[262144]{0}', space=vmem, size = 0x40000, scoped, tag = 'input window, operand 19, single buffered']
    #allocation18 [shape = 's32[1]{0}', space=sflag, size = 0x4, scoped, tag = 'scoped memory for transformer_forward.1']
    #allocation19 [shape = 'u8[4096]{0}', space=vmem, size = 0x1000, scoped, tag = 'output window, operand 0, single buffered']
    %26 = vsyncpa [#allocation3], 0
    %27 = vsyncpa [#allocation6], 0
    %28 = vsyncpa [#allocation9], 0
    %29 = vsyncpa [#allocation12], 0
    %30 = vsyncpa [#allocation15], 0
    %31 = vsyncpa [#allocation18], 0
    %32 = vsyncpa [#allocation4], 0
    // Predicated region
    $region2: #{transformer_forward.1} parent=1 // pred_check
      _
    $region3: #{transformer_forward.1} parent=1 // pred_check_branch
      %34 = sbr.rel (0) target = $region5
    $region4: #{transformer_forward.1} parent=1 // pred_region
      _
    $region5: #{transformer_forward.1} parent=1 // pred_fallthru
      _
    // Predicated region
    $region6: #{transformer_forward.1} parent=1 // pred_check
      _
    $region7: #{transformer_forward.1} parent=1 // pred_check_branch
      %36 = sbr.rel (0) target = $region9
    $region8: #{transformer_forward.1} parent=1 // pred_region
      %s38 = ssub.s32 1024, 1024
      %39 = vsyncadd [#allocation3], %s38
      %s40 = sshll.u32 [#allocation2], 4
      %s41 = int_to_ptr.vmem [resolvable:$true] %s40
      %46 = dma.hbm_to_vmem [thread:$0]  %s1, 1024, %s41, [#allocation3], 64, 64, 4
    $region9: #{transformer_forward.1} parent=1 // pred_fallthru
      _
    // Predicated region
    $region10: #{transformer_forward.1} parent=1 // pred_check
      _
    $region11: #{transformer_forward.1} parent=1 // pred_check_branch
      %48 = sbr.rel (0) target = $region13
    $region12: #{transformer_forward.1} parent=1 // pred_region
      _
    $region13: #{transformer_forward.1} parent=1 // pred_fallthru
      _
    // Predicated region
    $region14: #{transformer_forward.1} parent=1 // pred_check
      _
    $region15: #{transformer_forward.1} parent=1 // pred_check_branch
      %50 = sbr.rel (0) target = $region17
    $region16: #{transformer_forward.1} parent=1 // pred_region
      %s52 = ssub.s32 1024, 1024
      %53 = vsyncadd [#allocation6], %s52
      %s54 = sshll.u32 [#allocation5], 4
      %s55 = int_to_ptr.vmem [resolvable:$true] %s54
      %60 = dma.hbm_to_vmem [thread:$0]  %s3, 1024, %s55, [#allocation6], 64, 64, 4
    $region17: #{transformer_forward.1} parent=1 // pred_fallthru
      _
    // Predicated region
    $region18: #{transformer_forward.1} parent=1 // pred_check
      _
    $region19: #{transformer_forward.1} parent=1 // pred_check_branch
      %62 = sbr.rel (0) target = $region21
    $region20: #{transformer_forward.1} parent=1 // pred_region
      _
    $region21: #{transformer_forward.1} parent=1 // pred_fallthru
      _
    // Predicated region
    $region22: #{transformer_forward.1} parent=1 // pred_check
      _
    $region23: #{transformer_forward.1} parent=1 // pred_check_branch
      %64 = sbr.rel (0) target = $region25
    $region24: #{transformer_forward.1} parent=1 // pred_region
      %s66 = ssub.s32 1024, 1024
      %67 = vsyncadd [#allocation6], %s66
      %s68 = sshll.u32 [#allocation7], 4
      %s69 = int_to_ptr.vmem [resolvable:$true] %s68
      %74 = dma.hbm_to_vmem [thread:$0]  %s5, 1024, %s69, [#allocation6], 64, 64, 4
    $region25: #{transformer_forward.1} parent=1 // pred_fallthru
      _
    // Predicated region
    $region26: #{transformer_forward.1} parent=1 // pred_check
      _
    $region27: #{transformer_forward.1} parent=1 // pred_check_branch
      %76 = sbr.rel (0) target = $region29
    $region28: #{transformer_forward.1} parent=1 // pred_region
      _
    $region29: #{transformer_forward.1} parent=1 // pred_fallthru
      _
    // Predicated region
    $region30: #{transformer_forward.1} parent=1 // pred_check
      _
    $region31: #{transformer_forward.1} parent=1 // pred_check_branch
      %78 = sbr.rel (0) target = $region33
    $region32: #{transformer_forward.1} parent=1 // pred_region
      %s80 = ssub.s32 1024, 1024
      %81 = vsyncadd [#allocation9], %s80
      %s82 = sshll.u32 [#allocation8], 4
      %s83 = int_to_ptr.vmem [resolvable:$true] %s82
      %88 = dma.hbm_to_vmem [thread:$0]  %s7, 1024, %s83, [#allocation9], 64, 64, 4
    $region33: #{transformer_forward.1} parent=1 // pred_fallthru
      _
    // Predicated region
    $region34: #{transformer_forward.1} parent=1 // pred_check
      _
    $region35: #{transformer_forward.1} parent=1 // pred_check_branch
      %90 = sbr.rel (0) target = $region37
    $region36: #{transformer_forward.1} parent=1 // pred_region
      _
    $region37: #{transformer_forward.1} parent=1 // pred_fallthru
      _
    // Predicated region
    $region38: #{transformer_forward.1} parent=1 // pred_check
      _
    $region39: #{transformer_forward.1} parent=1 // pred_check_branch
      %92 = sbr.rel (0) target = $region41
    $region40: #{transformer_forward.1} parent=1 // pred_region
      %s94 = ssub.s32 1024, 1024
      %95 = vsyncadd [#allocation9], %s94
      %s96 = sshll.u32 [#allocation10], 4
      %s97 = int_to_ptr.vmem [resolvable:$true] %s96
      %102 = dma.hbm_to_vmem [thread:$0]  %s9, 1024, %s97, [#allocation9], 64, 64, 4
    $region41: #{transformer_forward.1} parent=1 // pred_fallthru
      _
    // Predicated region
    $region42: #{transformer_forward.1} parent=1 // pred_check
      _
    $region43: #{transformer_forward.1} parent=1 // pred_check_branch
      %104 = sbr.rel (0) target = $region45
    $region44: #{transformer_forward.1} parent=1 // pred_region
      _
    $region45: #{transformer_forward.1} parent=1 // pred_fallthru
      _
    // Predicated region
    $region46: #{transformer_forward.1} parent=1 // pred_check
      _
    $region47: #{transformer_forward.1} parent=1 // pred_check_branch
      %106 = sbr.rel (0) target = $region49
    $region48: #{transformer_forward.1} parent=1 // pred_region
      %s108 = ssub.s32 1024, 1024
      %109 = vsyncadd [#allocation12], %s108
      %s110 = sshll.u32 [#allocation11], 4
      %s111 = int_to_ptr.vmem [resolvable:$true] %s110
      %116 = dma.hbm_to_vmem [thread:$0]  %s11, 1024, %s111, [#allocation12], 64, 64, 4
    $region49: #{transformer_forward.1} parent=1 // pred_fallthru
      _
    // Predicated region
    $region50: #{transformer_forward.1} parent=1 // pred_check
      _
    $region51: #{transformer_forward.1} parent=1 // pred_check_branch
      %118 = sbr.rel (0) target = $region53
    $region52: #{transformer_forward.1} parent=1 // pred_region
      _
    $region53: #{transformer_forward.1} parent=1 // pred_fallthru
      _
    // Predicated region
    $region54: #{transformer_forward.1} parent=1 // pred_check
      _
    $region55: #{transformer_forward.1} parent=1 // pred_check_branch
      %120 = sbr.rel (0) target = $region57
    $region56: #{transformer_forward.1} parent=1 // pred_region
      %s122 = ssub.s32 2048, 2048
      %123 = vsyncadd [#allocation12], %s122
      %s124 = sshll.u32 [#allocation13], 4
      %s125 = int_to_ptr.vmem [resolvable:$true] %s124
      %130 = dma.hbm_to_vmem [thread:$0]  %s13, 2048, %s125, [#allocation12], 128, 128, 8
    $region57: #{transformer_forward.1} parent=1 // pred_fallthru
      _
    // Predicated region
    $region58: #{transformer_forward.1} parent=1 // pred_check
      _
    $region59: #{transformer_forward.1} parent=1 // pred_check_branch
      %132 = sbr.rel (0) target = $region61
    $region60: #{transformer_forward.1} parent=1 // pred_region
      _
    $region61: #{transformer_forward.1} parent=1 // pred_fallthru
      _
    // Predicated region
    $region62: #{transformer_forward.1} parent=1 // pred_check
      _
    $region63: #{transformer_forward.1} parent=1 // pred_check_branch
      %134 = sbr.rel (0) target = $region65
    $region64: #{transformer_forward.1} parent=1 // pred_region
      %s136 = ssub.s32 8192, 8192
      %137 = vsyncadd [#allocation15], %s136
      %s138 = sshll.u32 [#allocation14], 4
      %s139 = int_to_ptr.vmem [resolvable:$true] %s138
      %144 = dma.hbm_to_vmem [thread:$0]  %s15, 8192, %s139, [#allocation15], 256, 256, 16
    $region65: #{transformer_forward.1} parent=1 // pred_fallthru
      _
    // Predicated region
    $region66: #{transformer_forward.1} parent=1 // pred_check
      _
    $region67: #{transformer_forward.1} parent=1 // pred_check_branch
      %146 = sbr.rel (0) target = $region69
    $region68: #{transformer_forward.1} parent=1 // pred_region
      _
    $region69: #{transformer_forward.1} parent=1 // pred_fallthru
      _
    // Predicated region
    $region70: #{transformer_forward.1} parent=1 // pred_check
      _
    $region71: #{transformer_forward.1} parent=1 // pred_check_branch
      %148 = sbr.rel (0) target = $region73
    $region72: #{transformer_forward.1} parent=1 // pred_region
      %s150 = ssub.s32 32768, 32768
      %151 = vsyncadd [#allocation15], %s150
      %s152 = sshll.u32 [#allocation16], 4
      %s153 = int_to_ptr.vmem [resolvable:$true] %s152
      %158 = dma.hbm_to_vmem [thread:$0]  %s17, 32768, %s153, [#allocation15], 512, 512, 32
    $region73: #{transformer_forward.1} parent=1 // pred_fallthru
      _
    // Predicated region
    $region74: #{transformer_forward.1} parent=1 // pred_check
      _
    $region75: #{transformer_forward.1} parent=1 // pred_check_branch
      %160 = sbr.rel (0) target = $region77
    $region76: #{transformer_forward.1} parent=1 // pred_region
      _
    $region77: #{transformer_forward.1} parent=1 // pred_fallthru
      _
    // Predicated region
    $region78: #{transformer_forward.1} parent=1 // pred_check
      _
    $region79: #{transformer_forward.1} parent=1 // pred_check_branch
      %162 = sbr.rel (0) target = $region81
    $region80: #{transformer_forward.1} parent=1 // pred_region
      %s164 = ssub.s32 8192, 8192
      %165 = vsyncadd [#allocation18], %s164
      %s166 = sshll.u32 [#allocation17], 4
      %s167 = int_to_ptr.vmem [resolvable:$true] %s166
      %172 = dma.hbm_to_vmem [thread:$0]  %s19, 8192, %s167, [#allocation18], 64, 64, 4
    $region81: #{transformer_forward.1} parent=1 // pred_fallthru
      _
    // Predicated region
    $region82: #{transformer_forward.1} parent=1 // pred_check
      _
    $region83: #{transformer_forward.1} parent=1 // pred_check_branch
      %174 = sbr.rel (0) target = $region85
    $region84: #{transformer_forward.1} parent=1 // pred_region
      _
    $region85: #{transformer_forward.1} parent=1 // pred_fallthru
      _
    // Predicated region
    $region86: #{transformer_forward.1} parent=1 // pred_check
      _
    $region87: #{transformer_forward.1} parent=1 // pred_check_branch
      %176 = sbr.rel (0) target = $region89
    $region88: #{transformer_forward.1} parent=1 // pred_region
      %177 = dma.done [#allocation3], 1024
    $region89: #{transformer_forward.1} parent=1 // pred_fallthru
      _
    // Predicated region
    $region90: #{transformer_forward.1} parent=1 // pred_check
      _
    $region91: #{transformer_forward.1} parent=1 // pred_check_branch
      %179 = sbr.rel (0) target = $region93
    $region92: #{transformer_forward.1} parent=1 // pred_region
      %180 = dma.done [#allocation6], 1024
    $region93: #{transformer_forward.1} parent=1 // pred_fallthru
      _
    // Predicated region
    $region94: #{transformer_forward.1} parent=1 // pred_check
      _
    $region95: #{transformer_forward.1} parent=1 // pred_check_branch
      %182 = sbr.rel (0) target = $region97
    $region96: #{transformer_forward.1} parent=1 // pred_region
      %183 = dma.done [#allocation6], 1024
    $region97: #{transformer_forward.1} parent=1 // pred_fallthru
      _
    // Predicated region
    $region98: #{transformer_forward.1} parent=1 // pred_check
      _
    $region99: #{transformer_forward.1} parent=1 // pred_check_branch
      %185 = sbr.rel (0) target = $region101
    $region100: #{transformer_forward.1} parent=1 // pred_region
      %186 = dma.done [#allocation9], 1024
    $region101: #{transformer_forward.1} parent=1 // pred_fallthru
      _
    // Predicated region
    $region102: #{transformer_forward.1} parent=1 // pred_check
      _
    $region103: #{transformer_forward.1} parent=1 // pred_check_branch
      %188 = sbr.rel (0) target = $region105
    $region104: #{transformer_forward.1} parent=1 // pred_region
      %189 = dma.done [#allocation9], 1024
    $region105: #{transformer_forward.1} parent=1 // pred_fallthru
      _
    // Predicated region
    $region106: #{transformer_forward.1} parent=1 // pred_check
      _
    $region107: #{transformer_forward.1} parent=1 // pred_check_branch
      %191 = sbr.rel (0) target = $region109
    $region108: #{transformer_forward.1} parent=1 // pred_region
      %192 = dma.done [#allocation12], 1024
    $region109: #{transformer_forward.1} parent=1 // pred_fallthru
      _
    // Predicated region
    $region110: #{transformer_forward.1} parent=1 // pred_check
      _
    $region111: #{transformer_forward.1} parent=1 // pred_check_branch
      %194 = sbr.rel (0) target = $region113
    $region112: #{transformer_forward.1} parent=1 // pred_region
      %195 = dma.done [#allocation12], 2048
    $region113: #{transformer_forward.1} parent=1 // pred_fallthru
      _
    // Predicated region
    $region114: #{transformer_forward.1} parent=1 // pred_check
      _
    $region115: #{transformer_forward.1} parent=1 // pred_check_branch
      %197 = sbr.rel (0) target = $region117
    $region116: #{transformer_forward.1} parent=1 // pred_region
      %198 = dma.done [#allocation15], 8192
    $region117: #{transformer_forward.1} parent=1 // pred_fallthru
      _
    // Predicated region
    $region118: #{transformer_forward.1} parent=1 // pred_check
      _
    $region119: #{transformer_forward.1} parent=1 // pred_check_branch
      %200 = sbr.rel (0) target = $region121
    $region120: #{transformer_forward.1} parent=1 // pred_region
      %201 = dma.done [#allocation15], 32768
    $region121: #{transformer_forward.1} parent=1 // pred_fallthru
      _
    // Predicated region
    $region122: #{transformer_forward.1} parent=1 // pred_check
      _
    $region123: #{transformer_forward.1} parent=1 // pred_check_branch
      %203 = sbr.rel (0) target = $region125
    $region124: #{transformer_forward.1} parent=1 // pred_region
      %204 = dma.done [#allocation18], 8192
    $region125: #{transformer_forward.1} parent=1 // pred_fallthru
      _
    %v206 = vld [vmem:[%s0] sm:$0xf]
    %v207 = vld [vmem:[#allocation2] sm:$0xf]
    %v208 = vld [vmem:[#allocation2 + $0x4] sm:$0xf]
    %v209 = vld [vmem:[#allocation2 + $0x8] sm:$0xf]
    %v210 = vld [vmem:[#allocation2 + $0xc] sm:$0xf]
    %v211 = vld [vmem:[#allocation2 + $0x10] sm:$0xf]
    %v212 = vld [vmem:[#allocation2 + $0x14] sm:$0xf]
    %v213 = vld [vmem:[#allocation2 + $0x18] sm:$0xf]
    %v214 = vld [vmem:[#allocation2 + $0x1c] sm:$0xf]
    %v215 = vld [vmem:[#allocation2 + $0x20] sm:$0xf]
    %v216 = vld [vmem:[#allocation2 + $0x24] sm:$0xf]
    %v217 = vld [vmem:[#allocation2 + $0x28] sm:$0xf]
    %v218 = vld [vmem:[#allocation2 + $0x2c] sm:$0xf]
    %v219 = vld [vmem:[#allocation2 + $0x30] sm:$0xf]
    %v220 = vld [vmem:[#allocation2 + $0x34] sm:$0xf]
    %v221 = vld [vmem:[#allocation2 + $0x38] sm:$0xf]
    %v222 = vld [vmem:[#allocation2 + $0x3c] sm:$0xf]
    %v223 = vld [vmem:[%s2] sm:$0x1]
    %v225 = vlaneseq
    %v226 = vshrl.u32 %v225, 7
    %v227 = vsub.s32 0, %v226
    %v228 = vrot.slane %v223, %v227
    %v246 = vunpack.c.l.b16 %v207
    %v247 = vunpack.c.l.b16 %v208
    %v248 = vunpack.c.l.b16 %v209
    %v249 = vunpack.c.l.b16 %v210
    %v250 = vunpack.c.l.b16 %v211
    %v251 = vunpack.c.l.b16 %v212
    %v252 = vunpack.c.l.b16 %v213
    %v253 = vunpack.c.l.b16 %v214
    %v254 = vunpack.c.l.b16 %v215
    %v255 = vunpack.c.l.b16 %v216
    %v256 = vunpack.c.l.b16 %v217
    %v257 = vunpack.c.l.b16 %v218
    %v258 = vunpack.c.l.b16 %v219
    %v259 = vunpack.c.l.b16 %v220
    %v260 = vunpack.c.l.b16 %v221
    %v261 = vunpack.c.l.b16 %v222
    %v262 = vpack.c.b16 %v247, %v246
    %v263 = vpack.c.b16 %v249, %v248
    %v264 = vpack.c.b16 %v251, %v250
    %v265 = vpack.c.b16 %v253, %v252
    %v266 = vpack.c.b16 %v255, %v254
    %v267 = vpack.c.b16 %v257, %v256
    %v268 = vpack.c.b16 %v259, %v258
    %v269 = vpack.c.b16 %v261, %v260
    %278 = vmatprep.subr.bf16.mxu0 0
    %279 = vmatpush1.bf16.msra.mxu0 %v269
    %280 = vmatprep.subr.bf16.mxu0 0
    %281 = vmatpush1.bf16.msra.mxu0 %v268
    %282 = vmatprep.subr.bf16.mxu0 0
    %283 = vmatpush1.bf16.msra.mxu0 %v267
    %284 = vmatprep.subr.bf16.mxu0 0
    %285 = vmatpush1.bf16.msra.mxu0 %v266
    %286 = vmatprep.subr.bf16.mxu0 0
    %287 = vmatpush1.bf16.msra.mxu0 %v265
    %288 = vmatprep.subr.bf16.mxu0 0
    %289 = vmatpush1.bf16.msra.mxu0 %v264
    %290 = vmatprep.subr.bf16.mxu0 0
    %291 = vmatpush1.bf16.msra.mxu0 %v263
    %292 = vmatprep.subr.bf16.mxu0 0
    %293 = vmatpush1.bf16.msra.mxu0 %v262
    %294 = vmatprep.subr.bf16.mxu0 0
    %295 = vmatpush2.bf16.msra.mxu0 0
    %296 = vmatprep.subr.bf16.mxu0 0
    %297 = vmatpush2.bf16.msra.mxu0 0
    %298 = vmatprep.subr.bf16.mxu0 0
    %299 = vmatpush2.bf16.msra.mxu0 0
    %300 = vmatprep.subr.bf16.mxu0 0
    %301 = vmatpush2.bf16.msra.mxu0 0
    %302 = vmatprep.subr.bf16.mxu0 0
    %303 = vmatpush2.bf16.msra.mxu0 0
    %304 = vmatprep.subr.bf16.mxu0 0
    %305 = vmatpush2.bf16.msra.mxu0 0
    %306 = vmatprep.subr.bf16.mxu0 0
    %307 = vmatpush2.bf16.msra.mxu0 0
    %308 = vmatprep.subr.bf16.mxu0 0
    %309 = vmatpush2.bf16.msra.mxu0 0
    %310 = vmatprep.mubr.bf16.mxu0 0
    %311 = vmatmul.mubr.bf16.gmra.mxu0 %v206
    %v312 = vpop.f32.mrf.mxu0
    %v313 = vadd.f32 %v228, %v312
    %v314 = vpop.f32.mrf.mxu0
    %v315 = vpop.f32.mrf.mxu0
    %v316 = vpop.f32.mrf.mxu0
    %317 = vdwg.mxu0
    %v318 = vmax.f32 %v313, 0.0
    %v319 = vpack.c.bf16 %v318, %v318
    %v320 = vld [vmem:[#allocation5] sm:$0xf]
    %v321 = vld [vmem:[#allocation5 + $0x4] sm:$0xf]
    %v322 = vld [vmem:[#allocation5 + $0x8] sm:$0xf]
    %v323 = vld [vmem:[#allocation5 + $0xc] sm:$0xf]
    %v324 = vld [vmem:[#allocation5 + $0x10] sm:$0xf]
    %v325 = vld [vmem:[#allocation5 + $0x14] sm:$0xf]
    %v326 = vld [vmem:[#allocation5 + $0x18] sm:$0xf]
    %v327 = vld [vmem:[#allocation5 + $0x1c] sm:$0xf]
    %v328 = vld [vmem:[#allocation5 + $0x20] sm:$0xf]
    %v329 = vld [vmem:[#allocation5 + $0x24] sm:$0xf]
    %v330 = vld [vmem:[#allocation5 + $0x28] sm:$0xf]
    %v331 = vld [vmem:[#allocation5 + $0x2c] sm:$0xf]
    %v332 = vld [vmem:[#allocation5 + $0x30] sm:$0xf]
    %v333 = vld [vmem:[#allocation5 + $0x34] sm:$0xf]
    %v334 = vld [vmem:[#allocation5 + $0x38] sm:$0xf]
    %v335 = vld [vmem:[#allocation5 + $0x3c] sm:$0xf]
    %v336 = vld [vmem:[%s4] sm:$0x1]
    %v338 = vlaneseq
    %v339 = vshrl.u32 %v338, 7
    %v340 = vsub.s32 0, %v339
    %v341 = vrot.slane %v336, %v340
    %v359 = vunpack.c.l.b16 %v320
    %v360 = vunpack.c.l.b16 %v321
    %v361 = vunpack.c.l.b16 %v322
    %v362 = vunpack.c.l.b16 %v323
    %v363 = vunpack.c.l.b16 %v324
    %v364 = vunpack.c.l.b16 %v325
    %v365 = vunpack.c.l.b16 %v326
    %v366 = vunpack.c.l.b16 %v327
    %v367 = vunpack.c.l.b16 %v328
    %v368 = vunpack.c.l.b16 %v329
    %v369 = vunpack.c.l.b16 %v330
    %v370 = vunpack.c.l.b16 %v331
    %v371 = vunpack.c.l.b16 %v332
    %v372 = vunpack.c.l.b16 %v333
    %v373 = vunpack.c.l.b16 %v334
    %v374 = vunpack.c.l.b16 %v335
    %v375 = vpack.c.b16 %v360, %v359
    %v376 = vpack.c.b16 %v362, %v361
    %v377 = vpack.c.b16 %v364, %v363
    %v378 = vpack.c.b16 %v366, %v365
    %v379 = vpack.c.b16 %v368, %v367
    %v380 = vpack.c.b16 %v370, %v369
    %v381 = vpack.c.b16 %v372, %v371
    %v382 = vpack.c.b16 %v374, %v373
    %391 = vmatprep.subr.bf16.mxu0 0
    %392 = vmatpush1.bf16.msra.mxu0 %v382
    %393 = vmatprep.subr.bf16.mxu0 0
    %394 = vmatpush1.bf16.msra.mxu0 %v381
    %395 = vmatprep.subr.bf16.mxu0 0
    %396 = vmatpush1.bf16.msra.mxu0 %v380
    %397 = vmatprep.subr.bf16.mxu0 0
    %398 = vmatpush1.bf16.msra.mxu0 %v379
    %399 = vmatprep.subr.bf16.mxu0 0
    %400 = vmatpush1.bf16.msra.mxu0 %v378
    %401 = vmatprep.subr.bf16.mxu0 0
    %402 = vmatpush1.bf16.msra.mxu0 %v377
    %403 = vmatprep.subr.bf16.mxu0 0
    %404 = vmatpush1.bf16.msra.mxu0 %v376
    %405 = vmatprep.subr.bf16.mxu0 0
    %406 = vmatpush1.bf16.msra.mxu0 %v375
    %407 = vmatprep.subr.bf16.mxu0 0
    %408 = vmatpush2.bf16.msra.mxu0 0
    %409 = vmatprep.subr.bf16.mxu0 0
    %410 = vmatpush2.bf16.msra.mxu0 0
    %411 = vmatprep.subr.bf16.mxu0 0
    %412 = vmatpush2.bf16.msra.mxu0 0
    %413 = vmatprep.subr.bf16.mxu0 0
    %414 = vmatpush2.bf16.msra.mxu0 0
    %415 = vmatprep.subr.bf16.mxu0 0
    %416 = vmatpush2.bf16.msra.mxu0 0
    %417 = vmatprep.subr.bf16.mxu0 0
    %418 = vmatpush2.bf16.msra.mxu0 0
    %419 = vmatprep.subr.bf16.mxu0 0
    %420 = vmatpush2.bf16.msra.mxu0 0
    %421 = vmatprep.subr.bf16.mxu0 0
    %422 = vmatpush2.bf16.msra.mxu0 0
    %423 = vmatprep.mubr.bf16.mxu0 0
    %424 = vmatmul.mubr.bf16.gmra.mxu0 %v319
    %v425 = vpop.f32.mrf.mxu0
    %v426 = vadd.f32 %v341, %v425
    %v427 = vpop.f32.mrf.mxu0
    %v428 = vpop.f32.mrf.mxu0
    %v429 = vpop.f32.mrf.mxu0
    %430 = vdwg.mxu0
    %v431 = vmax.f32 %v426, 0.0
    %v432 = vpack.c.bf16 %v431, %v431
    %v433 = vld [vmem:[#allocation7] sm:$0xf]
    %v434 = vld [vmem:[#allocation7 + $0x4] sm:$0xf]
    %v435 = vld [vmem:[#allocation7 + $0x8] sm:$0xf]
    %v436 = vld [vmem:[#allocation7 + $0xc] sm:$0xf]
    %v437 = vld [vmem:[#allocation7 + $0x10] sm:$0xf]
    %v438 = vld [vmem:[#allocation7 + $0x14] sm:$0xf]
    %v439 = vld [vmem:[#allocation7 + $0x18] sm:$0xf]
    %v440 = vld [vmem:[#allocation7 + $0x1c] sm:$0xf]
    %v441 = vld [vmem:[#allocation7 + $0x20] sm:$0xf]
    %v442 = vld [vmem:[#allocation7 + $0x24] sm:$0xf]
    %v443 = vld [vmem:[#allocation7 + $0x28] sm:$0xf]
    %v444 = vld [vmem:[#allocation7 + $0x2c] sm:$0xf]
    %v445 = vld [vmem:[#allocation7 + $0x30] sm:$0xf]
    %v446 = vld [vmem:[#allocation7 + $0x34] sm:$0xf]
    %v447 = vld [vmem:[#allocation7 + $0x38] sm:$0xf]
    %v448 = vld [vmem:[#allocation7 + $0x3c] sm:$0xf]
    %v449 = vld [vmem:[%s6] sm:$0x1]
    %v451 = vlaneseq
    %v452 = vshrl.u32 %v451, 7
    %v453 = vsub.s32 0, %v452
    %v454 = vrot.slane %v449, %v453
    %v472 = vunpack.c.l.b16 %v433
    %v473 = vunpack.c.l.b16 %v434
    %v474 = vunpack.c.l.b16 %v435
    %v475 = vunpack.c.l.b16 %v436
    %v476 = vunpack.c.l.b16 %v437
    %v477 = vunpack.c.l.b16 %v438
    %v478 = vunpack.c.l.b16 %v439
    %v479 = vunpack.c.l.b16 %v440
    %v480 = vunpack.c.l.b16 %v441
    %v481 = vunpack.c.l.b16 %v442
    %v482 = vunpack.c.l.b16 %v443
    %v483 = vunpack.c.l.b16 %v444
    %v484 = vunpack.c.l.b16 %v445
    %v485 = vunpack.c.l.b16 %v446
    %v486 = vunpack.c.l.b16 %v447
    %v487 = vunpack.c.l.b16 %v448
    %v488 = vpack.c.b16 %v473, %v472
    %v489 = vpack.c.b16 %v475, %v474
    %v490 = vpack.c.b16 %v477, %v476
    %v491 = vpack.c.b16 %v479, %v478
    %v492 = vpack.c.b16 %v481, %v480
    %v493 = vpack.c.b16 %v483, %v482
    %v494 = vpack.c.b16 %v485, %v484
    %v495 = vpack.c.b16 %v487, %v486
    %504 = vmatprep.subr.bf16.mxu0 0
    %505 = vmatpush1.bf16.msra.mxu0 %v495
    %506 = vmatprep.subr.bf16.mxu0 0
    %507 = vmatpush1.bf16.msra.mxu0 %v494
    %508 = vmatprep.subr.bf16.mxu0 0
    %509 = vmatpush1.bf16.msra.mxu0 %v493
    %510 = vmatprep.subr.bf16.mxu0 0
    %511 = vmatpush1.bf16.msra.mxu0 %v492
    %512 = vmatprep.subr.bf16.mxu0 0
    %513 = vmatpush1.bf16.msra.mxu0 %v491
    %514 = vmatprep.subr.bf16.mxu0 0
    %515 = vmatpush1.bf16.msra.mxu0 %v490
    %516 = vmatprep.subr.bf16.mxu0 0
    %517 = vmatpush1.bf16.msra.mxu0 %v489
    %518 = vmatprep.subr.bf16.mxu0 0
    %519 = vmatpush1.bf16.msra.mxu0 %v488
    %520 = vmatprep.subr.bf16.mxu0 0
    %521 = vmatpush2.bf16.msra.mxu0 0
    %522 = vmatprep.subr.bf16.mxu0 0
    %523 = vmatpush2.bf16.msra.mxu0 0
    %524 = vmatprep.subr.bf16.mxu0 0
    %525 = vmatpush2.bf16.msra.mxu0 0
    %526 = vmatprep.subr.bf16.mxu0 0
    %527 = vmatpush2.bf16.msra.mxu0 0
    %528 = vmatprep.subr.bf16.mxu0 0
    %529 = vmatpush2.bf16.msra.mxu0 0
    %530 = vmatprep.subr.bf16.mxu0 0
    %531 = vmatpush2.bf16.msra.mxu0 0
    %532 = vmatprep.subr.bf16.mxu0 0
    %533 = vmatpush2.bf16.msra.mxu0 0
    %534 = vmatprep.subr.bf16.mxu0 0
    %535 = vmatpush2.bf16.msra.mxu0 0
    %536 = vmatprep.mubr.bf16.mxu0 0
    %537 = vmatmul.mubr.bf16.gmra.mxu0 %v432
    %v538 = vpop.f32.mrf.mxu0
    %v539 = vadd.f32 %v454, %v538
    %v540 = vpop.f32.mrf.mxu0
    %v541 = vpop.f32.mrf.mxu0
    %v542 = vpop.f32.mrf.mxu0
    %543 = vdwg.mxu0
    %v544 = vmax.f32 %v539, 0.0
    %v545 = vpack.c.bf16 %v544, %v544
    %v546 = vld [vmem:[#allocation8] sm:$0xf]
    %v547 = vld [vmem:[#allocation8 + $0x4] sm:$0xf]
    %v548 = vld [vmem:[#allocation8 + $0x8] sm:$0xf]
    %v549 = vld [vmem:[#allocation8 + $0xc] sm:$0xf]
    %v550 = vld [vmem:[#allocation8 + $0x10] sm:$0xf]
    %v551 = vld [vmem:[#allocation8 + $0x14] sm:$0xf]
    %v552 = vld [vmem:[#allocation8 + $0x18] sm:$0xf]
    %v553 = vld [vmem:[#allocation8 + $0x1c] sm:$0xf]
    %v554 = vld [vmem:[#allocation8 + $0x20] sm:$0xf]
    %v555 = vld [vmem:[#allocation8 + $0x24] sm:$0xf]
    %v556 = vld [vmem:[#allocation8 + $0x28] sm:$0xf]
    %v557 = vld [vmem:[#allocation8 + $0x2c] sm:$0xf]
    %v558 = vld [vmem:[#allocation8 + $0x30] sm:$0xf]
    %v559 = vld [vmem:[#allocation8 + $0x34] sm:$0xf]
    %v560 = vld [vmem:[#allocation8 + $0x38] sm:$0xf]
    %v561 = vld [vmem:[#allocation8 + $0x3c] sm:$0xf]
    %v562 = vld [vmem:[%s8] sm:$0x1]
    %v564 = vlaneseq
    %v565 = vshrl.u32 %v564, 7
    %v566 = vsub.s32 0, %v565
    %v567 = vrot.slane %v562, %v566
    %v585 = vunpack.c.l.b16 %v546
    %v586 = vunpack.c.l.b16 %v547
    %v587 = vunpack.c.l.b16 %v548
    %v588 = vunpack.c.l.b16 %v549
    %v589 = vunpack.c.l.b16 %v550
    %v590 = vunpack.c.l.b16 %v551
    %v591 = vunpack.c.l.b16 %v552
    %v592 = vunpack.c.l.b16 %v553
    %v593 = vunpack.c.l.b16 %v554
    %v594 = vunpack.c.l.b16 %v555
    %v595 = vunpack.c.l.b16 %v556
    %v596 = vunpack.c.l.b16 %v557
    %v597 = vunpack.c.l.b16 %v558
    %v598 = vunpack.c.l.b16 %v559
    %v599 = vunpack.c.l.b16 %v560
    %v600 = vunpack.c.l.b16 %v561
    %v601 = vpack.c.b16 %v586, %v585
    %v602 = vpack.c.b16 %v588, %v587
    %v603 = vpack.c.b16 %v590, %v589
    %v604 = vpack.c.b16 %v592, %v591
    %v605 = vpack.c.b16 %v594, %v593
    %v606 = vpack.c.b16 %v596, %v595
    %v607 = vpack.c.b16 %v598, %v597
    %v608 = vpack.c.b16 %v600, %v599
    %617 = vmatprep.subr.bf16.mxu0 0
    %618 = vmatpush1.bf16.msra.mxu0 %v608
    %619 = vmatprep.subr.bf16.mxu0 0
    %620 = vmatpush1.bf16.msra.mxu0 %v607
    %621 = vmatprep.subr.bf16.mxu0 0
    %622 = vmatpush1.bf16.msra.mxu0 %v606
    %623 = vmatprep.subr.bf16.mxu0 0
    %624 = vmatpush1.bf16.msra.mxu0 %v605
    %625 = vmatprep.subr.bf16.mxu0 0
    %626 = vmatpush1.bf16.msra.mxu0 %v604
    %627 = vmatprep.subr.bf16.mxu0 0
    %628 = vmatpush1.bf16.msra.mxu0 %v603
    %629 = vmatprep.subr.bf16.mxu0 0
    %630 = vmatpush1.bf16.msra.mxu0 %v602
    %631 = vmatprep.subr.bf16.mxu0 0
    %632 = vmatpush1.bf16.msra.mxu0 %v601
    %633 = vmatprep.subr.bf16.mxu0 0
    %634 = vmatpush2.bf16.msra.mxu0 0
    %635 = vmatprep.subr.bf16.mxu0 0
    %636 = vmatpush2.bf16.msra.mxu0 0
    %637 = vmatprep.subr.bf16.mxu0 0
    %638 = vmatpush2.bf16.msra.mxu0 0
    %639 = vmatprep.subr.bf16.mxu0 0
    %640 = vmatpush2.bf16.msra.mxu0 0
    %641 = vmatprep.subr.bf16.mxu0 0
    %642 = vmatpush2.bf16.msra.mxu0 0
    %643 = vmatprep.subr.bf16.mxu0 0
    %644 = vmatpush2.bf16.msra.mxu0 0
    %645 = vmatprep.subr.bf16.mxu0 0
    %646 = vmatpush2.bf16.msra.mxu0 0
    %647 = vmatprep.subr.bf16.mxu0 0
    %648 = vmatpush2.bf16.msra.mxu0 0
    %649 = vmatprep.mubr.bf16.mxu0 0
    %650 = vmatmul.mubr.bf16.gmra.mxu0 %v545
    %v651 = vpop.f32.mrf.mxu0
    %v652 = vadd.f32 %v567, %v651
    %v653 = vpop.f32.mrf.mxu0
    %v654 = vpop.f32.mrf.mxu0
    %v655 = vpop.f32.mrf.mxu0
    %656 = vdwg.mxu0
    %v657 = vmax.f32 %v652, 0.0
    %v658 = vpack.c.bf16 %v657, %v657
    %v659 = vld [vmem:[#allocation10] sm:$0xf]
    %v660 = vld [vmem:[#allocation10 + $0x4] sm:$0xf]
    %v661 = vld [vmem:[#allocation10 + $0x8] sm:$0xf]
    %v662 = vld [vmem:[#allocation10 + $0xc] sm:$0xf]
    %v663 = vld [vmem:[#allocation10 + $0x10] sm:$0xf]
    %v664 = vld [vmem:[#allocation10 + $0x14] sm:$0xf]
    %v665 = vld [vmem:[#allocation10 + $0x18] sm:$0xf]
    %v666 = vld [vmem:[#allocation10 + $0x1c] sm:$0xf]
    %v667 = vld [vmem:[#allocation10 + $0x20] sm:$0xf]
    %v668 = vld [vmem:[#allocation10 + $0x24] sm:$0xf]
    %v669 = vld [vmem:[#allocation10 + $0x28] sm:$0xf]
    %v670 = vld [vmem:[#allocation10 + $0x2c] sm:$0xf]
    %v671 = vld [vmem:[#allocation10 + $0x30] sm:$0xf]
    %v672 = vld [vmem:[#allocation10 + $0x34] sm:$0xf]
    %v673 = vld [vmem:[#allocation10 + $0x38] sm:$0xf]
    %v674 = vld [vmem:[#allocation10 + $0x3c] sm:$0xf]
    %v675 = vld [vmem:[%s10] sm:$0x1]
    %v677 = vlaneseq
    %v678 = vshrl.u32 %v677, 7
    %v679 = vsub.s32 0, %v678
    %v680 = vrot.slane %v675, %v679
    %v698 = vunpack.c.l.b16 %v659
    %v699 = vunpack.c.l.b16 %v660
    %v700 = vunpack.c.l.b16 %v661
    %v701 = vunpack.c.l.b16 %v662
    %v702 = vunpack.c.l.b16 %v663
    %v703 = vunpack.c.l.b16 %v664
    %v704 = vunpack.c.l.b16 %v665
    %v705 = vunpack.c.l.b16 %v666
    %v706 = vunpack.c.l.b16 %v667
    %v707 = vunpack.c.l.b16 %v668
    %v708 = vunpack.c.l.b16 %v669
    %v709 = vunpack.c.l.b16 %v670
    %v710 = vunpack.c.l.b16 %v671
    %v711 = vunpack.c.l.b16 %v672
    %v712 = vunpack.c.l.b16 %v673
    %v713 = vunpack.c.l.b16 %v674
    %v714 = vpack.c.b16 %v699, %v698
    %v715 = vpack.c.b16 %v701, %v700
    %v716 = vpack.c.b16 %v703, %v702
    %v717 = vpack.c.b16 %v705, %v704
    %v718 = vpack.c.b16 %v707, %v706
    %v719 = vpack.c.b16 %v709, %v708
    %v720 = vpack.c.b16 %v711, %v710
    %v721 = vpack.c.b16 %v713, %v712
    %730 = vmatprep.subr.bf16.mxu0 0
    %731 = vmatpush1.bf16.msra.mxu0 %v721
    %732 = vmatprep.subr.bf16.mxu0 0
    %733 = vmatpush1.bf16.msra.mxu0 %v720
    %734 = vmatprep.subr.bf16.mxu0 0
    %735 = vmatpush1.bf16.msra.mxu0 %v719
    %736 = vmatprep.subr.bf16.mxu0 0
    %737 = vmatpush1.bf16.msra.mxu0 %v718
    %738 = vmatprep.subr.bf16.mxu0 0
    %739 = vmatpush1.bf16.msra.mxu0 %v717
    %740 = vmatprep.subr.bf16.mxu0 0
    %741 = vmatpush1.bf16.msra.mxu0 %v716
    %742 = vmatprep.subr.bf16.mxu0 0
    %743 = vmatpush1.bf16.msra.mxu0 %v715
    %744 = vmatprep.subr.bf16.mxu0 0
    %745 = vmatpush1.bf16.msra.mxu0 %v714
    %746 = vmatprep.subr.bf16.mxu0 0
    %747 = vmatpush2.bf16.msra.mxu0 0
    %748 = vmatprep.subr.bf16.mxu0 0
    %749 = vmatpush2.bf16.msra.mxu0 0
    %750 = vmatprep.subr.bf16.mxu0 0
    %751 = vmatpush2.bf16.msra.mxu0 0
    %752 = vmatprep.subr.bf16.mxu0 0
    %753 = vmatpush2.bf16.msra.mxu0 0
    %754 = vmatprep.subr.bf16.mxu0 0
    %755 = vmatpush2.bf16.msra.mxu0 0
    %756 = vmatprep.subr.bf16.mxu0 0
    %757 = vmatpush2.bf16.msra.mxu0 0
    %758 = vmatprep.subr.bf16.mxu0 0
    %759 = vmatpush2.bf16.msra.mxu0 0
    %760 = vmatprep.subr.bf16.mxu0 0
    %761 = vmatpush2.bf16.msra.mxu0 0
    %762 = vmatprep.mubr.bf16.mxu0 0
    %763 = vmatmul.mubr.bf16.gmra.mxu0 %v658
    %v764 = vpop.f32.mrf.mxu0
    %v765 = vadd.f32 %v680, %v764
    %v766 = vpop.f32.mrf.mxu0
    %v767 = vpop.f32.mrf.mxu0
    %v768 = vpop.f32.mrf.mxu0
    %769 = vdwg.mxu0
    %v770 = vmax.f32 %v765, 0.0
    %v771 = vpack.c.bf16 %v770, %v770
    %v772 = vld [vmem:[#allocation11] sm:$0xf]
    %v773 = vld [vmem:[#allocation11 + $0x4] sm:$0xf]
    %v774 = vld [vmem:[#allocation11 + $0x8] sm:$0xf]
    %v775 = vld [vmem:[#allocation11 + $0xc] sm:$0xf]
    %v776 = vld [vmem:[#allocation11 + $0x10] sm:$0xf]
    %v777 = vld [vmem:[#allocation11 + $0x14] sm:$0xf]
    %v778 = vld [vmem:[#allocation11 + $0x18] sm:$0xf]
    %v779 = vld [vmem:[#allocation11 + $0x1c] sm:$0xf]
    %v780 = vld [vmem:[#allocation11 + $0x20] sm:$0xf]
    %v781 = vld [vmem:[#allocation11 + $0x24] sm:$0xf]
    %v782 = vld [vmem:[#allocation11 + $0x28] sm:$0xf]
    %v783 = vld [vmem:[#allocation11 + $0x2c] sm:$0xf]
    %v784 = vld [vmem:[#allocation11 + $0x30] sm:$0xf]
    %v785 = vld [vmem:[#allocation11 + $0x34] sm:$0xf]
    %v786 = vld [vmem:[#allocation11 + $0x38] sm:$0xf]
    %v787 = vld [vmem:[#allocation11 + $0x3c] sm:$0xf]
    %v788 = vld [vmem:[%s12] sm:$0x1]
    %v790 = vlaneseq
    %v791 = vshrl.u32 %v790, 7
    %v792 = vsub.s32 0, %v791
    %v793 = vrot.slane %v788, %v792
    %v811 = vunpack.c.l.b16 %v772
    %v812 = vunpack.c.l.b16 %v773
    %v813 = vunpack.c.l.b16 %v774
    %v814 = vunpack.c.l.b16 %v775
    %v815 = vunpack.c.l.b16 %v776
    %v816 = vunpack.c.l.b16 %v777
    %v817 = vunpack.c.l.b16 %v778
    %v818 = vunpack.c.l.b16 %v779
    %v819 = vunpack.c.l.b16 %v780
    %v820 = vunpack.c.l.b16 %v781
    %v821 = vunpack.c.l.b16 %v782
    %v822 = vunpack.c.l.b16 %v783
    %v823 = vunpack.c.l.b16 %v784
    %v824 = vunpack.c.l.b16 %v785
    %v825 = vunpack.c.l.b16 %v786
    %v826 = vunpack.c.l.b16 %v787
    %v827 = vpack.c.b16 %v812, %v811
    %v828 = vpack.c.b16 %v814, %v813
    %v829 = vpack.c.b16 %v816, %v815
    %v830 = vpack.c.b16 %v818, %v817
    %v831 = vpack.c.b16 %v820, %v819
    %v832 = vpack.c.b16 %v822, %v821
    %v833 = vpack.c.b16 %v824, %v823
    %v834 = vpack.c.b16 %v826, %v825
    %843 = vmatprep.subr.bf16.mxu0 0
    %844 = vmatpush1.bf16.msra.mxu0 %v834
    %845 = vmatprep.subr.bf16.mxu0 0
    %846 = vmatpush1.bf16.msra.mxu0 %v833
    %847 = vmatprep.subr.bf16.mxu0 0
    %848 = vmatpush1.bf16.msra.mxu0 %v832
    %849 = vmatprep.subr.bf16.mxu0 0
    %850 = vmatpush1.bf16.msra.mxu0 %v831
    %851 = vmatprep.subr.bf16.mxu0 0
    %852 = vmatpush1.bf16.msra.mxu0 %v830
    %853 = vmatprep.subr.bf16.mxu0 0
    %854 = vmatpush1.bf16.msra.mxu0 %v829
    %855 = vmatprep.subr.bf16.mxu0 0
    %856 = vmatpush1.bf16.msra.mxu0 %v828
    %857 = vmatprep.subr.bf16.mxu0 0
    %858 = vmatpush1.bf16.msra.mxu0 %v827
    %859 = vmatprep.subr.bf16.mxu0 0
    %860 = vmatpush2.bf16.msra.mxu0 0
    %861 = vmatprep.subr.bf16.mxu0 0
    %862 = vmatpush2.bf16.msra.mxu0 0
    %863 = vmatprep.subr.bf16.mxu0 0
    %864 = vmatpush2.bf16.msra.mxu0 0
    %865 = vmatprep.subr.bf16.mxu0 0
    %866 = vmatpush2.bf16.msra.mxu0 0
    %867 = vmatprep.subr.bf16.mxu0 0
    %868 = vmatpush2.bf16.msra.mxu0 0
    %869 = vmatprep.subr.bf16.mxu0 0
    %870 = vmatpush2.bf16.msra.mxu0 0
    %871 = vmatprep.subr.bf16.mxu0 0
    %872 = vmatpush2.bf16.msra.mxu0 0
    %873 = vmatprep.subr.bf16.mxu0 0
    %874 = vmatpush2.bf16.msra.mxu0 0
    %875 = vmatprep.mubr.bf16.mxu0 0
    %876 = vmatmul.mubr.bf16.gmra.mxu0 %v771
    %v877 = vpop.f32.mrf.mxu0
    %v878 = vadd.f32 %v793, %v877
    %v879 = vpop.f32.mrf.mxu0
    %v880 = vpop.f32.mrf.mxu0
    %v881 = vpop.f32.mrf.mxu0
    %882 = vdwg.mxu0
    %v883 = vmax.f32 %v878, 0.0
    %v884 = vpack.c.bf16 %v883, %v883
    %v885 = vld [vmem:[#allocation13] sm:$0xff]
    %v886 = vld [vmem:[#allocation13 + $0x8] sm:$0xff]
    %v887 = vld [vmem:[#allocation13 + $0x10] sm:$0xff]
    %v888 = vld [vmem:[#allocation13 + $0x18] sm:$0xff]
    %v889 = vld [vmem:[#allocation13 + $0x20] sm:$0xff]
    %v890 = vld [vmem:[#allocation13 + $0x28] sm:$0xff]
    %v891 = vld [vmem:[#allocation13 + $0x30] sm:$0xff]
    %v892 = vld [vmem:[#allocation13 + $0x38] sm:$0xff]
    %v893 = vld [vmem:[#allocation13 + $0x40] sm:$0xff]
    %v894 = vld [vmem:[#allocation13 + $0x48] sm:$0xff]
    %v895 = vld [vmem:[#allocation13 + $0x50] sm:$0xff]
    %v896 = vld [vmem:[#allocation13 + $0x58] sm:$0xff]
    %v897 = vld [vmem:[#allocation13 + $0x60] sm:$0xff]
    %v898 = vld [vmem:[#allocation13 + $0x68] sm:$0xff]
    %v899 = vld [vmem:[#allocation13 + $0x70] sm:$0xff]
    %v900 = vld [vmem:[#allocation13 + $0x78] sm:$0xff]
    %v901 = vld [vmem:[%s14] sm:$0x3]
    %v903 = vlaneseq
    %v904 = vshrl.u32 %v903, 7
    %v905 = vsub.s32 0, %v904
    %v906 = vrot.slane %v901, %v905
    %v907 = vlaneseq
    %v908 = vshrl.u32 %v907, 7
    %v909 = vsub.s32 1, %v908
    %v910 = vrot.slane %v901, %v909
    %v929 = vunpack.c.l.b16 %v885
    %v930 = vunpack.c.h.b16 %v885
    %v931 = vunpack.c.l.b16 %v886
    %v932 = vunpack.c.h.b16 %v886
    %v933 = vunpack.c.l.b16 %v887
    %v934 = vunpack.c.h.b16 %v887
    %v935 = vunpack.c.l.b16 %v888
    %v936 = vunpack.c.h.b16 %v888
    %v937 = vunpack.c.l.b16 %v889
    %v938 = vunpack.c.h.b16 %v889
    %v939 = vunpack.c.l.b16 %v890
    %v940 = vunpack.c.h.b16 %v890
    %v941 = vunpack.c.l.b16 %v891
    %v942 = vunpack.c.h.b16 %v891
    %v943 = vunpack.c.l.b16 %v892
    %v944 = vunpack.c.h.b16 %v892
    %v945 = vunpack.c.l.b16 %v893
    %v946 = vunpack.c.h.b16 %v893
    %v947 = vunpack.c.l.b16 %v894
    %v948 = vunpack.c.h.b16 %v894
    %v949 = vunpack.c.l.b16 %v895
    %v950 = vunpack.c.h.b16 %v895
    %v951 = vunpack.c.l.b16 %v896
    %v952 = vunpack.c.h.b16 %v896
    %v953 = vunpack.c.l.b16 %v897
    %v954 = vunpack.c.h.b16 %v897
    %v955 = vunpack.c.l.b16 %v898
    %v956 = vunpack.c.h.b16 %v898
    %v957 = vunpack.c.l.b16 %v899
    %v958 = vunpack.c.h.b16 %v899
    %v959 = vunpack.c.l.b16 %v900
    %v960 = vunpack.c.h.b16 %v900
    %v961 = vpack.c.b16 %v931, %v929
    %v962 = vpack.c.b16 %v932, %v930
    %v963 = vpack.c.b16 %v935, %v933
    %v964 = vpack.c.b16 %v936, %v934
    %v965 = vpack.c.b16 %v939, %v937
    %v966 = vpack.c.b16 %v940, %v938
    %v967 = vpack.c.b16 %v943, %v941
    %v968 = vpack.c.b16 %v944, %v942
    %v969 = vpack.c.b16 %v947, %v945
    %v970 = vpack.c.b16 %v948, %v946
    %v971 = vpack.c.b16 %v951, %v949
    %v972 = vpack.c.b16 %v952, %v950
    %v973 = vpack.c.b16 %v955, %v953
    %v974 = vpack.c.b16 %v956, %v954
    %v975 = vpack.c.b16 %v959, %v957
    %v976 = vpack.c.b16 %v960, %v958
    %993 = vmatprep.subr.bf16.mxu0 %v976
    %994 = vmatpush1.bf16.msra.mxu0 %v975
    %995 = vmatprep.subr.bf16.mxu0 %v974
    %996 = vmatpush1.bf16.msra.mxu0 %v973
    %997 = vmatprep.subr.bf16.mxu0 %v972
    %998 = vmatpush1.bf16.msra.mxu0 %v971
    %999 = vmatprep.subr.bf16.mxu0 %v970
    %1000 = vmatpush1.bf16.msra.mxu0 %v969
    %1001 = vmatprep.subr.bf16.mxu0 %v968
    %1002 = vmatpush1.bf16.msra.mxu0 %v967
    %1003 = vmatprep.subr.bf16.mxu0 %v966
    %1004 = vmatpush1.bf16.msra.mxu0 %v965
    %1005 = vmatprep.subr.bf16.mxu0 %v964
    %1006 = vmatpush1.bf16.msra.mxu0 %v963
    %1007 = vmatprep.subr.bf16.mxu0 %v962
    %1008 = vmatpush1.bf16.msra.mxu0 %v961
    %1009 = vmatprep.subr.bf16.mxu0 0
    %1010 = vmatpush2.bf16.msra.mxu0 0
    %1011 = vmatprep.subr.bf16.mxu0 0
    %1012 = vmatpush2.bf16.msra.mxu0 0
    %1013 = vmatprep.subr.bf16.mxu0 0
    %1014 = vmatpush2.bf16.msra.mxu0 0
    %1015 = vmatprep.subr.bf16.mxu0 0
    %1016 = vmatpush2.bf16.msra.mxu0 0
    %1017 = vmatprep.subr.bf16.mxu0 0
    %1018 = vmatpush2.bf16.msra.mxu0 0
    %1019 = vmatprep.subr.bf16.mxu0 0
    %1020 = vmatpush2.bf16.msra.mxu0 0
    %1021 = vmatprep.subr.bf16.mxu0 0
    %1022 = vmatpush2.bf16.msra.mxu0 0
    %1023 = vmatprep.subr.bf16.mxu0 0
    %1024 = vmatpush2.bf16.msra.mxu0 0
    %1025 = vmatprep.mubr.bf16.mxu0 0
    %1026 = vmatmul.mubr.bf16.gmra.mxu0 %v884
    %v1027 = vpop.f32.mrf.mxu0
    %v1028 = vadd.f32 %v906, %v1027
    %v1029 = vpop.f32.mrf.mxu0
    %v1030 = vadd.f32 %v910, %v1029
    %v1031 = vpop.f32.mrf.mxu0
    %v1032 = vpop.f32.mrf.mxu0
    %1033 = vdwg.mxu0
    %v1034 = vmax.f32 %v1028, 0.0
    %v1035 = vmax.f32 %v1030, 0.0
    %v1036 = vpack.c.bf16 %v1034, %v1034
    %v1037 = vpack.c.bf16 %v1035, %v1035
    %v1038 = vld [vmem:[#allocation14] sm:$0xff]
    %v1039 = vld [vmem:[#allocation14 + $0x8] sm:$0xff]
    %v1040 = vld [vmem:[#allocation14 + $0x10] sm:$0xff]
    %v1041 = vld [vmem:[#allocation14 + $0x18] sm:$0xff]
    %v1042 = vld [vmem:[#allocation14 + $0x20] sm:$0xff]
    %v1043 = vld [vmem:[#allocation14 + $0x28] sm:$0xff]
    %v1044 = vld [vmem:[#allocation14 + $0x30] sm:$0xff]
    %v1045 = vld [vmem:[#allocation14 + $0x38] sm:$0xff]
    %v1046 = vld [vmem:[#allocation14 + $0x40] sm:$0xff]
    %v1047 = vld [vmem:[#allocation14 + $0x48] sm:$0xff]
    %v1048 = vld [vmem:[#allocation14 + $0x50] sm:$0xff]
    %v1049 = vld [vmem:[#allocation14 + $0x58] sm:$0xff]
    %v1050 = vld [vmem:[#allocation14 + $0x60] sm:$0xff]
    %v1051 = vld [vmem:[#allocation14 + $0x68] sm:$0xff]
    %v1052 = vld [vmem:[#allocation14 + $0x70] sm:$0xff]
    %v1053 = vld [vmem:[#allocation14 + $0x78] sm:$0xff]
    %v1054 = vld [vmem:[#allocation14 + $0x80] sm:$0xff]
    %v1055 = vld [vmem:[#allocation14 + $0x88] sm:$0xff]
    %v1056 = vld [vmem:[#allocation14 + $0x90] sm:$0xff]
    %v1057 = vld [vmem:[#allocation14 + $0x98] sm:$0xff]
    %v1058 = vld [vmem:[#allocation14 + $0xa0] sm:$0xff]
    %v1059 = vld [vmem:[#allocation14 + $0xa8] sm:$0xff]
    %v1060 = vld [vmem:[#allocation14 + $0xb0] sm:$0xff]
    %v1061 = vld [vmem:[#allocation14 + $0xb8] sm:$0xff]
    %v1062 = vld [vmem:[#allocation14 + $0xc0] sm:$0xff]
    %v1063 = vld [vmem:[#allocation14 + $0xc8] sm:$0xff]
    %v1064 = vld [vmem:[#allocation14 + $0xd0] sm:$0xff]
    %v1065 = vld [vmem:[#allocation14 + $0xd8] sm:$0xff]
    %v1066 = vld [vmem:[#allocation14 + $0xe0] sm:$0xff]
    %v1067 = vld [vmem:[#allocation14 + $0xe8] sm:$0xff]
    %v1068 = vld [vmem:[#allocation14 + $0xf0] sm:$0xff]
    %v1069 = vld [vmem:[#allocation14 + $0xf8] sm:$0xff]
    %v1070 = vld [vmem:[#allocation14 + $0x100] sm:$0xff]
    %v1071 = vld [vmem:[#allocation14 + $0x108] sm:$0xff]
    %v1072 = vld [vmem:[#allocation14 + $0x110] sm:$0xff]
    %v1073 = vld [vmem:[#allocation14 + $0x118] sm:$0xff]
    %v1074 = vld [vmem:[#allocation14 + $0x120] sm:$0xff]
    %v1075 = vld [vmem:[#allocation14 + $0x128] sm:$0xff]
    %v1076 = vld [vmem:[#allocation14 + $0x130] sm:$0xff]
    %v1077 = vld [vmem:[#allocation14 + $0x138] sm:$0xff]
    %v1078 = vld [vmem:[#allocation14 + $0x140] sm:$0xff]
    %v1079 = vld [vmem:[#allocation14 + $0x148] sm:$0xff]
    %v1080 = vld [vmem:[#allocation14 + $0x150] sm:$0xff]
    %v1081 = vld [vmem:[#allocation14 + $0x158] sm:$0xff]
    %v1082 = vld [vmem:[#allocation14 + $0x160] sm:$0xff]
    %v1083 = vld [vmem:[#allocation14 + $0x168] sm:$0xff]
    %v1084 = vld [vmem:[#allocation14 + $0x170] sm:$0xff]
    %v1085 = vld [vmem:[#allocation14 + $0x178] sm:$0xff]
    %v1086 = vld [vmem:[#allocation14 + $0x180] sm:$0xff]
    %v1087 = vld [vmem:[#allocation14 + $0x188] sm:$0xff]
    %v1088 = vld [vmem:[#allocation14 + $0x190] sm:$0xff]
    %v1089 = vld [vmem:[#allocation14 + $0x198] sm:$0xff]
    %v1090 = vld [vmem:[#allocation14 + $0x1a0] sm:$0xff]
    %v1091 = vld [vmem:[#allocation14 + $0x1a8] sm:$0xff]
    %v1092 = vld [vmem:[#allocation14 + $0x1b0] sm:$0xff]
    %v1093 = vld [vmem:[#allocation14 + $0x1b8] sm:$0xff]
    %v1094 = vld [vmem:[#allocation14 + $0x1c0] sm:$0xff]
    %v1095 = vld [vmem:[#allocation14 + $0x1c8] sm:$0xff]
    %v1096 = vld [vmem:[#allocation14 + $0x1d0] sm:$0xff]
    %v1097 = vld [vmem:[#allocation14 + $0x1d8] sm:$0xff]
    %v1098 = vld [vmem:[#allocation14 + $0x1e0] sm:$0xff]
    %v1099 = vld [vmem:[#allocation14 + $0x1e8] sm:$0xff]
    %v1100 = vld [vmem:[#allocation14 + $0x1f0] sm:$0xff]
    %v1101 = vld [vmem:[#allocation14 + $0x1f8] sm:$0xff]
    %v1102 = vld [vmem:[%s16] sm:$0xf]
    %v1104 = vlaneseq
    %v1105 = vshrl.u32 %v1104, 7
    %v1106 = vsub.s32 0, %v1105
    %v1107 = vrot.slane %v1102, %v1106
    %v1108 = vlaneseq
    %v1109 = vshrl.u32 %v1108, 7
    %v1110 = vsub.s32 1, %v1109
    %v1111 = vrot.slane %v1102, %v1110
    %v1112 = vlaneseq
    %v1113 = vshrl.u32 %v1112, 7
    %v1114 = vsub.s32 2, %v1113
    %v1115 = vrot.slane %v1102, %v1114
    %v1116 = vlaneseq
    %v1117 = vshrl.u32 %v1116, 7
    %v1118 = vsub.s32 3, %v1117
    %v1119 = vrot.slane %v1102, %v1118
    %v1188 = vunpack.c.l.b16 %v1038
    %v1189 = vunpack.c.h.b16 %v1038
    %v1190 = vunpack.c.l.b16 %v1039
    %v1191 = vunpack.c.h.b16 %v1039
    %v1192 = vunpack.c.l.b16 %v1040
    %v1193 = vunpack.c.h.b16 %v1040
    %v1194 = vunpack.c.l.b16 %v1041
    %v1195 = vunpack.c.h.b16 %v1041
    %v1196 = vunpack.c.l.b16 %v1042
    %v1197 = vunpack.c.h.b16 %v1042
    %v1198 = vunpack.c.l.b16 %v1043
    %v1199 = vunpack.c.h.b16 %v1043
    %v1200 = vunpack.c.l.b16 %v1044
    %v1201 = vunpack.c.h.b16 %v1044
    %v1202 = vunpack.c.l.b16 %v1045
    %v1203 = vunpack.c.h.b16 %v1045
    %v1204 = vunpack.c.l.b16 %v1046
    %v1205 = vunpack.c.h.b16 %v1046
    %v1206 = vunpack.c.l.b16 %v1047
    %v1207 = vunpack.c.h.b16 %v1047
    %v1208 = vunpack.c.l.b16 %v1048
    %v1209 = vunpack.c.h.b16 %v1048
    %v1210 = vunpack.c.l.b16 %v1049
    %v1211 = vunpack.c.h.b16 %v1049
    %v1212 = vunpack.c.l.b16 %v1050
    %v1213 = vunpack.c.h.b16 %v1050
    %v1214 = vunpack.c.l.b16 %v1051
    %v1215 = vunpack.c.h.b16 %v1051
    %v1216 = vunpack.c.l.b16 %v1052
    %v1217 = vunpack.c.h.b16 %v1052
    %v1218 = vunpack.c.l.b16 %v1053
    %v1219 = vunpack.c.h.b16 %v1053
    %v1220 = vunpack.c.l.b16 %v1054
    %v1221 = vunpack.c.h.b16 %v1054
    %v1222 = vunpack.c.l.b16 %v1055
    %v1223 = vunpack.c.h.b16 %v1055
    %v1224 = vunpack.c.l.b16 %v1056
    %v1225 = vunpack.c.h.b16 %v1056
    %v1226 = vunpack.c.l.b16 %v1057
    %v1227 = vunpack.c.h.b16 %v1057
    %v1228 = vunpack.c.l.b16 %v1058
    %v1229 = vunpack.c.h.b16 %v1058
    %v1230 = vunpack.c.l.b16 %v1059
    %v1231 = vunpack.c.h.b16 %v1059
    %v1232 = vunpack.c.l.b16 %v1060
    %v1233 = vunpack.c.h.b16 %v1060
    %v1234 = vunpack.c.l.b16 %v1061
    %v1235 = vunpack.c.h.b16 %v1061
    %v1236 = vunpack.c.l.b16 %v1062
    %v1237 = vunpack.c.h.b16 %v1062
    %v1238 = vunpack.c.l.b16 %v1063
    %v1239 = vunpack.c.h.b16 %v1063
    %v1240 = vunpack.c.l.b16 %v1064
    %v1241 = vunpack.c.h.b16 %v1064
    %v1242 = vunpack.c.l.b16 %v1065
    %v1243 = vunpack.c.h.b16 %v1065
    %v1244 = vunpack.c.l.b16 %v1066
    %v1245 = vunpack.c.h.b16 %v1066
    %v1246 = vunpack.c.l.b16 %v1067
    %v1247 = vunpack.c.h.b16 %v1067
    %v1248 = vunpack.c.l.b16 %v1068
    %v1249 = vunpack.c.h.b16 %v1068
    %v1250 = vunpack.c.l.b16 %v1069
    %v1251 = vunpack.c.h.b16 %v1069
    %v1252 = vunpack.c.l.b16 %v1070
    %v1253 = vunpack.c.h.b16 %v1070
    %v1254 = vunpack.c.l.b16 %v1071
    %v1255 = vunpack.c.h.b16 %v1071
    %v1256 = vunpack.c.l.b16 %v1072
    %v1257 = vunpack.c.h.b16 %v1072
    %v1258 = vunpack.c.l.b16 %v1073
    %v1259 = vunpack.c.h.b16 %v1073
    %v1260 = vunpack.c.l.b16 %v1074
    %v1261 = vunpack.c.h.b16 %v1074
    %v1262 = vunpack.c.l.b16 %v1075
    %v1263 = vunpack.c.h.b16 %v1075
    %v1264 = vunpack.c.l.b16 %v1076
    %v1265 = vunpack.c.h.b16 %v1076
    %v1266 = vunpack.c.l.b16 %v1077
    %v1267 = vunpack.c.h.b16 %v1077
    %v1268 = vunpack.c.l.b16 %v1078
    %v1269 = vunpack.c.h.b16 %v1078
    %v1270 = vunpack.c.l.b16 %v1079
    %v1271 = vunpack.c.h.b16 %v1079
    %v1272 = vunpack.c.l.b16 %v1080
    %v1273 = vunpack.c.h.b16 %v1080
    %v1274 = vunpack.c.l.b16 %v1081
    %v1275 = vunpack.c.h.b16 %v1081
    %v1276 = vunpack.c.l.b16 %v1082
    %v1277 = vunpack.c.h.b16 %v1082
    %v1278 = vunpack.c.l.b16 %v1083
    %v1279 = vunpack.c.h.b16 %v1083
    %v1280 = vunpack.c.l.b16 %v1084
    %v1281 = vunpack.c.h.b16 %v1084
    %v1282 = vunpack.c.l.b16 %v1085
    %v1283 = vunpack.c.h.b16 %v1085
    %v1284 = vunpack.c.l.b16 %v1086
    %v1285 = vunpack.c.h.b16 %v1086
    %v1286 = vunpack.c.l.b16 %v1087
    %v1287 = vunpack.c.h.b16 %v1087
    %v1288 = vunpack.c.l.b16 %v1088
    %v1289 = vunpack.c.h.b16 %v1088
    %v1290 = vunpack.c.l.b16 %v1089
    %v1291 = vunpack.c.h.b16 %v1089
    %v1292 = vunpack.c.l.b16 %v1090
    %v1293 = vunpack.c.h.b16 %v1090
    %v1294 = vunpack.c.l.b16 %v1091
    %v1295 = vunpack.c.h.b16 %v1091
    %v1296 = vunpack.c.l.b16 %v1092
    %v1297 = vunpack.c.h.b16 %v1092
    %v1298 = vunpack.c.l.b16 %v1093
    %v1299 = vunpack.c.h.b16 %v1093
    %v1300 = vunpack.c.l.b16 %v1094
    %v1301 = vunpack.c.h.b16 %v1094
    %v1302 = vunpack.c.l.b16 %v1095
    %v1303 = vunpack.c.h.b16 %v1095
    %v1304 = vunpack.c.l.b16 %v1096
    %v1305 = vunpack.c.h.b16 %v1096
    %v1306 = vunpack.c.l.b16 %v1097
    %v1307 = vunpack.c.h.b16 %v1097
    %v1308 = vunpack.c.l.b16 %v1098
    %v1309 = vunpack.c.h.b16 %v1098
    %v1310 = vunpack.c.l.b16 %v1099
    %v1311 = vunpack.c.h.b16 %v1099
    %v1312 = vunpack.c.l.b16 %v1100
    %v1313 = vunpack.c.h.b16 %v1100
    %v1314 = vunpack.c.l.b16 %v1101
    %v1315 = vunpack.c.h.b16 %v1101
    %v1316 = vpack.c.b16 %v1192, %v1188
    %v1317 = vpack.c.b16 %v1193, %v1189
    %v1318 = vpack.c.b16 %v1194, %v1190
    %v1319 = vpack.c.b16 %v1195, %v1191
    %v1320 = vpack.c.b16 %v1200, %v1196
    %v1321 = vpack.c.b16 %v1201, %v1197
    %v1322 = vpack.c.b16 %v1202, %v1198
    %v1323 = vpack.c.b16 %v1203, %v1199
    %v1324 = vpack.c.b16 %v1208, %v1204
    %v1325 = vpack.c.b16 %v1209, %v1205
    %v1326 = vpack.c.b16 %v1210, %v1206
    %v1327 = vpack.c.b16 %v1211, %v1207
    %v1328 = vpack.c.b16 %v1216, %v1212
    %v1329 = vpack.c.b16 %v1217, %v1213
    %v1330 = vpack.c.b16 %v1218, %v1214
    %v1331 = vpack.c.b16 %v1219, %v1215
    %v1332 = vpack.c.b16 %v1224, %v1220
    %v1333 = vpack.c.b16 %v1225, %v1221
    %v1334 = vpack.c.b16 %v1226, %v1222
    %v1335 = vpack.c.b16 %v1227, %v1223
    %v1336 = vpack.c.b16 %v1232, %v1228
    %v1337 = vpack.c.b16 %v1233, %v1229
    %v1338 = vpack.c.b16 %v1234, %v1230
    %v1339 = vpack.c.b16 %v1235, %v1231
    %v1340 = vpack.c.b16 %v1240, %v1236
    %v1341 = vpack.c.b16 %v1241, %v1237
    %v1342 = vpack.c.b16 %v1242, %v1238
    %v1343 = vpack.c.b16 %v1243, %v1239
    %v1344 = vpack.c.b16 %v1248, %v1244
    %v1345 = vpack.c.b16 %v1249, %v1245
    %v1346 = vpack.c.b16 %v1250, %v1246
    %v1347 = vpack.c.b16 %v1251, %v1247
    %v1348 = vpack.c.b16 %v1256, %v1252
    %v1349 = vpack.c.b16 %v1257, %v1253
    %v1350 = vpack.c.b16 %v1258, %v1254
    %v1351 = vpack.c.b16 %v1259, %v1255
    %v1352 = vpack.c.b16 %v1264, %v1260
    %v1353 = vpack.c.b16 %v1265, %v1261
    %v1354 = vpack.c.b16 %v1266, %v1262
    %v1355 = vpack.c.b16 %v1267, %v1263
    %v1356 = vpack.c.b16 %v1272, %v1268
    %v1357 = vpack.c.b16 %v1273, %v1269
    %v1358 = vpack.c.b16 %v1274, %v1270
    %v1359 = vpack.c.b16 %v1275, %v1271
    %v1360 = vpack.c.b16 %v1280, %v1276
    %v1361 = vpack.c.b16 %v1281, %v1277
    %v1362 = vpack.c.b16 %v1282, %v1278
    %v1363 = vpack.c.b16 %v1283, %v1279
    %v1364 = vpack.c.b16 %v1288, %v1284
    %v1365 = vpack.c.b16 %v1289, %v1285
    %v1366 = vpack.c.b16 %v1290, %v1286
    %v1367 = vpack.c.b16 %v1291, %v1287
    %v1368 = vpack.c.b16 %v1296, %v1292
    %v1369 = vpack.c.b16 %v1297, %v1293
    %v1370 = vpack.c.b16 %v1298, %v1294
    %v1371 = vpack.c.b16 %v1299, %v1295
    %v1372 = vpack.c.b16 %v1304, %v1300
    %v1373 = vpack.c.b16 %v1305, %v1301
    %v1374 = vpack.c.b16 %v1306, %v1302
    %v1375 = vpack.c.b16 %v1307, %v1303
    %v1376 = vpack.c.b16 %v1312, %v1308
    %v1377 = vpack.c.b16 %v1313, %v1309
    %v1378 = vpack.c.b16 %v1314, %v1310
    %v1379 = vpack.c.b16 %v1315, %v1311
    %1444 = vmatprep.subr.bf16.mxu0 %v1345
    %1445 = vmatpush1.bf16.msra.mxu0 %v1344
    %1446 = vmatprep.subr.bf16.mxu0 %v1341
    %1447 = vmatpush1.bf16.msra.mxu0 %v1340
    %1448 = vmatprep.subr.bf16.mxu0 %v1337
    %1449 = vmatpush1.bf16.msra.mxu0 %v1336
    %1450 = vmatprep.subr.bf16.mxu0 %v1333
    %1451 = vmatpush1.bf16.msra.mxu0 %v1332
    %1452 = vmatprep.subr.bf16.mxu0 %v1329
    %1453 = vmatpush1.bf16.msra.mxu0 %v1328
    %1454 = vmatprep.subr.bf16.mxu0 %v1325
    %1455 = vmatpush1.bf16.msra.mxu0 %v1324
    %1456 = vmatprep.subr.bf16.mxu0 %v1321
    %1457 = vmatpush1.bf16.msra.mxu0 %v1320
    %1458 = vmatprep.subr.bf16.mxu0 %v1317
    %1459 = vmatpush1.bf16.msra.mxu0 %v1316
    %1460 = vmatprep.subr.bf16.mxu0 %v1377
    %1461 = vmatpush2.bf16.msra.mxu0 %v1376
    %1462 = vmatprep.subr.bf16.mxu0 %v1373
    %1463 = vmatpush2.bf16.msra.mxu0 %v1372
    %1464 = vmatprep.subr.bf16.mxu0 %v1369
    %1465 = vmatpush2.bf16.msra.mxu0 %v1368
    %1466 = vmatprep.subr.bf16.mxu0 %v1365
    %1467 = vmatpush2.bf16.msra.mxu0 %v1364
    %1468 = vmatprep.subr.bf16.mxu0 %v1361
    %1469 = vmatpush2.bf16.msra.mxu0 %v1360
    %1470 = vmatprep.subr.bf16.mxu0 %v1357
    %1471 = vmatpush2.bf16.msra.mxu0 %v1356
    %1472 = vmatprep.subr.bf16.mxu0 %v1353
    %1473 = vmatpush2.bf16.msra.mxu0 %v1352
    %1474 = vmatprep.subr.bf16.mxu0 %v1349
    %1475 = vmatpush2.bf16.msra.mxu0 %v1348
    %1476 = vmatprep.mubr.bf16.mxu0 %v1037
    %1477 = vmatmul.mubr.bf16.gmra.mxu0 %v1036
    %v1478 = vpop.f32.mrf.mxu0
    %v1479 = vadd.f32 %v1107, %v1478
    %v1480 = vpop.f32.mrf.mxu0
    %v1481 = vadd.f32 %v1111, %v1480
    %v1482 = vpop.f32.mrf.mxu0
    %v1483 = vpop.f32.mrf.mxu0
    %1484 = vdwg.mxu0
    %1485 = vmatprep.subr.bf16.mxu0 %v1347
    %1486 = vmatpush1.bf16.msra.mxu0 %v1346
    %1487 = vmatprep.subr.bf16.mxu0 %v1343
    %1488 = vmatpush1.bf16.msra.mxu0 %v1342
    %1489 = vmatprep.subr.bf16.mxu0 %v1339
    %1490 = vmatpush1.bf16.msra.mxu0 %v1338
    %1491 = vmatprep.subr.bf16.mxu0 %v1335
    %1492 = vmatpush1.bf16.msra.mxu0 %v1334
    %1493 = vmatprep.subr.bf16.mxu0 %v1331
    %1494 = vmatpush1.bf16.msra.mxu0 %v1330
    %1495 = vmatprep.subr.bf16.mxu0 %v1327
    %1496 = vmatpush1.bf16.msra.mxu0 %v1326
    %1497 = vmatprep.subr.bf16.mxu0 %v1323
    %1498 = vmatpush1.bf16.msra.mxu0 %v1322
    %1499 = vmatprep.subr.bf16.mxu0 %v1319
    %1500 = vmatpush1.bf16.msra.mxu0 %v1318
    %1501 = vmatprep.subr.bf16.mxu0 %v1379
    %1502 = vmatpush2.bf16.msra.mxu0 %v1378
    %1503 = vmatprep.subr.bf16.mxu0 %v1375
    %1504 = vmatpush2.bf16.msra.mxu0 %v1374
    %1505 = vmatprep.subr.bf16.mxu0 %v1371
    %1506 = vmatpush2.bf16.msra.mxu0 %v1370
    %1507 = vmatprep.subr.bf16.mxu0 %v1367
    %1508 = vmatpush2.bf16.msra.mxu0 %v1366
    %1509 = vmatprep.subr.bf16.mxu0 %v1363
    %1510 = vmatpush2.bf16.msra.mxu0 %v1362
    %1511 = vmatprep.subr.bf16.mxu0 %v1359
    %1512 = vmatpush2.bf16.msra.mxu0 %v1358
    %1513 = vmatprep.subr.bf16.mxu0 %v1355
    %1514 = vmatpush2.bf16.msra.mxu0 %v1354
    %1515 = vmatprep.subr.bf16.mxu0 %v1351
    %1516 = vmatpush2.bf16.msra.mxu0 %v1350
    %1517 = vmatprep.mubr.bf16.mxu0 %v1037
    %1518 = vmatmul.mubr.bf16.gmra.mxu0 %v1036
    %v1519 = vpop.f32.mrf.mxu0
    %v1520 = vadd.f32 %v1115, %v1519
    %v1521 = vpop.f32.mrf.mxu0
    %v1522 = vadd.f32 %v1119, %v1521
    %v1523 = vpop.f32.mrf.mxu0
    %v1524 = vpop.f32.mrf.mxu0
    %1525 = vdwg.mxu0
    %v1526 = vmax.f32 %v1479, 0.0
    %v1527 = vmax.f32 %v1481, 0.0
    %v1528 = vmax.f32 %v1520, 0.0
    %v1529 = vmax.f32 %v1522, 0.0
    %v1530 = vpack.c.bf16 %v1526, %v1526
    %v1531 = vpack.c.bf16 %v1527, %v1527
    %v1532 = vpack.c.bf16 %v1528, %v1528
    %v1533 = vpack.c.bf16 %v1529, %v1529
    %v1534 = vld [vmem:[#allocation16] sm:$0xff]
    %v1535 = vld [vmem:[#allocation16 + $0x8] sm:$0xff]
    %v1536 = vld [vmem:[#allocation16 + $0x10] sm:$0xff]
    %v1537 = vld [vmem:[#allocation16 + $0x18] sm:$0xff]
    %v1538 = vld [vmem:[#allocation16 + $0x20] sm:$0xff]
    %v1539 = vld [vmem:[#allocation16 + $0x28] sm:$0xff]
    %v1540 = vld [vmem:[#allocation16 + $0x30] sm:$0xff]
    %v1541 = vld [vmem:[#allocation16 + $0x38] sm:$0xff]
    %v1542 = vld [vmem:[#allocation16 + $0x40] sm:$0xff]
    %v1543 = vld [vmem:[#allocation16 + $0x48] sm:$0xff]
    %v1544 = vld [vmem:[#allocation16 + $0x50] sm:$0xff]
    %v1545 = vld [vmem:[#allocation16 + $0x58] sm:$0xff]
    %v1546 = vld [vmem:[#allocation16 + $0x60] sm:$0xff]
    %v1547 = vld [vmem:[#allocation16 + $0x68] sm:$0xff]
    %v1548 = vld [vmem:[#allocation16 + $0x70] sm:$0xff]
    %v1549 = vld [vmem:[#allocation16 + $0x78] sm:$0xff]
    %v1550 = vld [vmem:[#allocation16 + $0x80] sm:$0xff]
    %v1551 = vld [vmem:[#allocation16 + $0x88] sm:$0xff]
    %v1552 = vld [vmem:[#allocation16 + $0x90] sm:$0xff]
    %v1553 = vld [vmem:[#allocation16 + $0x98] sm:$0xff]
    %v1554 = vld [vmem:[#allocation16 + $0xa0] sm:$0xff]
    %v1555 = vld [vmem:[#allocation16 + $0xa8] sm:$0xff]
    %v1556 = vld [vmem:[#allocation16 + $0xb0] sm:$0xff]
    %v1557 = vld [vmem:[#allocation16 + $0xb8] sm:$0xff]
    %v1558 = vld [vmem:[#allocation16 + $0xc0] sm:$0xff]
    %v1559 = vld [vmem:[#allocation16 + $0xc8] sm:$0xff]
    %v1560 = vld [vmem:[#allocation16 + $0xd0] sm:$0xff]
    %v1561 = vld [vmem:[#allocation16 + $0xd8] sm:$0xff]
    %v1562 = vld [vmem:[#allocation16 + $0xe0] sm:$0xff]
    %v1563 = vld [vmem:[#allocation16 + $0xe8] sm:$0xff]
    %v1564 = vld [vmem:[#allocation16 + $0xf0] sm:$0xff]
    %v1565 = vld [vmem:[#allocation16 + $0xf8] sm:$0xff]
    %v1566 = vld [vmem:[#allocation16 + $0x100] sm:$0xff]
    %v1567 = vld [vmem:[#allocation16 + $0x108] sm:$0xff]
    %v1568 = vld [vmem:[#allocation16 + $0x110] sm:$0xff]
    %v1569 = vld [vmem:[#allocation16 + $0x118] sm:$0xff]
    %v1570 = vld [vmem:[#allocation16 + $0x120] sm:$0xff]
    %v1571 = vld [vmem:[#allocation16 + $0x128] sm:$0xff]
    %v1572 = vld [vmem:[#allocation16 + $0x130] sm:$0xff]
    %v1573 = vld [vmem:[#allocation16 + $0x138] sm:$0xff]
    %v1574 = vld [vmem:[#allocation16 + $0x140] sm:$0xff]
    %v1575 = vld [vmem:[#allocation16 + $0x148] sm:$0xff]
    %v1576 = vld [vmem:[#allocation16 + $0x150] sm:$0xff]
    %v1577 = vld [vmem:[#allocation16 + $0x158] sm:$0xff]
    %v1578 = vld [vmem:[#allocation16 + $0x160] sm:$0xff]
    %v1579 = vld [vmem:[#allocation16 + $0x168] sm:$0xff]
    %v1580 = vld [vmem:[#allocation16 + $0x170] sm:$0xff]
    %v1581 = vld [vmem:[#allocation16 + $0x178] sm:$0xff]
    %v1582 = vld [vmem:[#allocation16 + $0x180] sm:$0xff]
    %v1583 = vld [vmem:[#allocation16 + $0x188] sm:$0xff]
    %v1584 = vld [vmem:[#allocation16 + $0x190] sm:$0xff]
    %v1585 = vld [vmem:[#allocation16 + $0x198] sm:$0xff]
    %v1586 = vld [vmem:[#allocation16 + $0x1a0] sm:$0xff]
    %v1587 = vld [vmem:[#allocation16 + $0x1a8] sm:$0xff]
    %v1588 = vld [vmem:[#allocation16 + $0x1b0] sm:$0xff]
    %v1589 = vld [vmem:[#allocation16 + $0x1b8] sm:$0xff]
    %v1590 = vld [vmem:[#allocation16 + $0x1c0] sm:$0xff]
    %v1591 = vld [vmem:[#allocation16 + $0x1c8] sm:$0xff]
    %v1592 = vld [vmem:[#allocation16 + $0x1d0] sm:$0xff]
    %v1593 = vld [vmem:[#allocation16 + $0x1d8] sm:$0xff]
    %v1594 = vld [vmem:[#allocation16 + $0x1e0] sm:$0xff]
    %v1595 = vld [vmem:[#allocation16 + $0x1e8] sm:$0xff]
    %v1596 = vld [vmem:[#allocation16 + $0x1f0] sm:$0xff]
    %v1597 = vld [vmem:[#allocation16 + $0x1f8] sm:$0xff]
    %v1598 = vld [vmem:[#allocation16 + $0x200] sm:$0xff]
    %v1599 = vld [vmem:[#allocation16 + $0x208] sm:$0xff]
    %v1600 = vld [vmem:[#allocation16 + $0x210] sm:$0xff]
    %v1601 = vld [vmem:[#allocation16 + $0x218] sm:$0xff]
    %v1602 = vld [vmem:[#allocation16 + $0x220] sm:$0xff]
    %v1603 = vld [vmem:[#allocation16 + $0x228] sm:$0xff]
    %v1604 = vld [vmem:[#allocation16 + $0x230] sm:$0xff]
    %v1605 = vld [vmem:[#allocation16 + $0x238] sm:$0xff]
    %v1606 = vld [vmem:[#allocation16 + $0x240] sm:$0xff]
    %v1607 = vld [vmem:[#allocation16 + $0x248] sm:$0xff]
    %v1608 = vld [vmem:[#allocation16 + $0x250] sm:$0xff]
    %v1609 = vld [vmem:[#allocation16 + $0x258] sm:$0xff]
    %v1610 = vld [vmem:[#allocation16 + $0x260] sm:$0xff]
    %v1611 = vld [vmem:[#allocation16 + $0x268] sm:$0xff]
    %v1612 = vld [vmem:[#allocation16 + $0x270] sm:$0xff]
    %v1613 = vld [vmem:[#allocation16 + $0x278] sm:$0xff]
    %v1614 = vld [vmem:[#allocation16 + $0x280] sm:$0xff]
    %v1615 = vld [vmem:[#allocation16 + $0x288] sm:$0xff]
    %v1616 = vld [vmem:[#allocation16 + $0x290] sm:$0xff]
    %v1617 = vld [vmem:[#allocation16 + $0x298] sm:$0xff]
    %v1618 = vld [vmem:[#allocation16 + $0x2a0] sm:$0xff]
    %v1619 = vld [vmem:[#allocation16 + $0x2a8] sm:$0xff]
    %v1620 = vld [vmem:[#allocation16 + $0x2b0] sm:$0xff]
    %v1621 = vld [vmem:[#allocation16 + $0x2b8] sm:$0xff]
    %v1622 = vld [vmem:[#allocation16 + $0x2c0] sm:$0xff]
    %v1623 = vld [vmem:[#allocation16 + $0x2c8] sm:$0xff]
    %v1624 = vld [vmem:[#allocation16 + $0x2d0] sm:$0xff]
    %v1625 = vld [vmem:[#allocation16 + $0x2d8] sm:$0xff]
    %v1626 = vld [vmem:[#allocation16 + $0x2e0] sm:$0xff]
    %v1627 = vld [vmem:[#allocation16 + $0x2e8] sm:$0xff]
    %v1628 = vld [vmem:[#allocation16 + $0x2f0] sm:$0xff]
    %v1629 = vld [vmem:[#allocation16 + $0x2f8] sm:$0xff]
    %v1630 = vld [vmem:[#allocation16 + $0x300] sm:$0xff]
    %v1631 = vld [vmem:[#allocation16 + $0x308] sm:$0xff]
    %v1632 = vld [vmem:[#allocation16 + $0x310] sm:$0xff]
    %v1633 = vld [vmem:[#allocation16 + $0x318] sm:$0xff]
    %v1634 = vld [vmem:[#allocation16 + $0x320] sm:$0xff]
    %v1635 = vld [vmem:[#allocation16 + $0x328] sm:$0xff]
    %v1636 = vld [vmem:[#allocation16 + $0x330] sm:$0xff]
    %v1637 = vld [vmem:[#allocation16 + $0x338] sm:$0xff]
    %v1638 = vld [vmem:[#allocation16 + $0x340] sm:$0xff]
    %v1639 = vld [vmem:[#allocation16 + $0x348] sm:$0xff]
    %v1640 = vld [vmem:[#allocation16 + $0x350] sm:$0xff]
    %v1641 = vld [vmem:[#allocation16 + $0x358] sm:$0xff]
    %v1642 = vld [vmem:[#allocation16 + $0x360] sm:$0xff]
    %v1643 = vld [vmem:[#allocation16 + $0x368] sm:$0xff]
    %v1644 = vld [vmem:[#allocation16 + $0x370] sm:$0xff]
    %v1645 = vld [vmem:[#allocation16 + $0x378] sm:$0xff]
    %v1646 = vld [vmem:[#allocation16 + $0x380] sm:$0xff]
    %v1647 = vld [vmem:[#allocation16 + $0x388] sm:$0xff]
    %v1648 = vld [vmem:[#allocation16 + $0x390] sm:$0xff]
    %v1649 = vld [vmem:[#allocation16 + $0x398] sm:$0xff]
    %v1650 = vld [vmem:[#allocation16 + $0x3a0] sm:$0xff]
    %v1651 = vld [vmem:[#allocation16 + $0x3a8] sm:$0xff]
    %v1652 = vld [vmem:[#allocation16 + $0x3b0] sm:$0xff]
    %v1653 = vld [vmem:[#allocation16 + $0x3b8] sm:$0xff]
    %v1654 = vld [vmem:[#allocation16 + $0x3c0] sm:$0xff]
    %v1655 = vld [vmem:[#allocation16 + $0x3c8] sm:$0xff]
    %v1656 = vld [vmem:[#allocation16 + $0x3d0] sm:$0xff]
    %v1657 = vld [vmem:[#allocation16 + $0x3d8] sm:$0xff]
    %v1658 = vld [vmem:[#allocation16 + $0x3e0] sm:$0xff]
    %v1659 = vld [vmem:[#allocation16 + $0x3e8] sm:$0xff]
    %v1660 = vld [vmem:[#allocation16 + $0x3f0] sm:$0xff]
    %v1661 = vld [vmem:[#allocation16 + $0x3f8] sm:$0xff]
    %v1662 = vld [vmem:[#allocation16 + $0x400] sm:$0xff]
    %v1663 = vld [vmem:[#allocation16 + $0x408] sm:$0xff]
    %v1664 = vld [vmem:[#allocation16 + $0x410] sm:$0xff]
    %v1665 = vld [vmem:[#allocation16 + $0x418] sm:$0xff]
    %v1666 = vld [vmem:[#allocation16 + $0x420] sm:$0xff]
    %v1667 = vld [vmem:[#allocation16 + $0x428] sm:$0xff]
    %v1668 = vld [vmem:[#allocation16 + $0x430] sm:$0xff]
    %v1669 = vld [vmem:[#allocation16 + $0x438] sm:$0xff]
    %v1670 = vld [vmem:[#allocation16 + $0x440] sm:$0xff]
    %v1671 = vld [vmem:[#allocation16 + $0x448] sm:$0xff]
    %v1672 = vld [vmem:[#allocation16 + $0x450] sm:$0xff]
    %v1673 = vld [vmem:[#allocation16 + $0x458] sm:$0xff]
    %v1674 = vld [vmem:[#allocation16 + $0x460] sm:$0xff]
    %v1675 = vld [vmem:[#allocation16 + $0x468] sm:$0xff]
    %v1676 = vld [vmem:[#allocation16 + $0x470] sm:$0xff]
    %v1677 = vld [vmem:[#allocation16 + $0x478] sm:$0xff]
    %v1678 = vld [vmem:[#allocation16 + $0x480] sm:$0xff]
    %v1679 = vld [vmem:[#allocation16 + $0x488] sm:$0xff]
    %v1680 = vld [vmem:[#allocation16 + $0x490] sm:$0xff]
    %v1681 = vld [vmem:[#allocation16 + $0x498] sm:$0xff]
    %v1682 = vld [vmem:[#allocation16 + $0x4a0] sm:$0xff]
    %v1683 = vld [vmem:[#allocation16 + $0x4a8] sm:$0xff]
    %v1684 = vld [vmem:[#allocation16 + $0x4b0] sm:$0xff]
    %v1685 = vld [vmem:[#allocation16 + $0x4b8] sm:$0xff]
    %v1686 = vld [vmem:[#allocation16 + $0x4c0] sm:$0xff]
    %v1687 = vld [vmem:[#allocation16 + $0x4c8] sm:$0xff]
    %v1688 = vld [vmem:[#allocation16 + $0x4d0] sm:$0xff]
    %v1689 = vld [vmem:[#allocation16 + $0x4d8] sm:$0xff]
    %v1690 = vld [vmem:[#allocation16 + $0x4e0] sm:$0xff]
    %v1691 = vld [vmem:[#allocation16 + $0x4e8] sm:$0xff]
    %v1692 = vld [vmem:[#allocation16 + $0x4f0] sm:$0xff]
    %v1693 = vld [vmem:[#allocation16 + $0x4f8] sm:$0xff]
    %v1694 = vld [vmem:[#allocation16 + $0x500] sm:$0xff]
    %v1695 = vld [vmem:[#allocation16 + $0x508] sm:$0xff]
    %v1696 = vld [vmem:[#allocation16 + $0x510] sm:$0xff]
    %v1697 = vld [vmem:[#allocation16 + $0x518] sm:$0xff]
    %v1698 = vld [vmem:[#allocation16 + $0x520] sm:$0xff]
    %v1699 = vld [vmem:[#allocation16 + $0x528] sm:$0xff]
    %v1700 = vld [vmem:[#allocation16 + $0x530] sm:$0xff]
    %v1701 = vld [vmem:[#allocation16 + $0x538] sm:$0xff]
    %v1702 = vld [vmem:[#allocation16 + $0x540] sm:$0xff]
    %v1703 = vld [vmem:[#allocation16 + $0x548] sm:$0xff]
    %v1704 = vld [vmem:[#allocation16 + $0x550] sm:$0xff]
    %v1705 = vld [vmem:[#allocation16 + $0x558] sm:$0xff]
    %v1706 = vld [vmem:[#allocation16 + $0x560] sm:$0xff]
    %v1707 = vld [vmem:[#allocation16 + $0x568] sm:$0xff]
    %v1708 = vld [vmem:[#allocation16 + $0x570] sm:$0xff]
    %v1709 = vld [vmem:[#allocation16 + $0x578] sm:$0xff]
    %v1710 = vld [vmem:[#allocation16 + $0x580] sm:$0xff]
    %v1711 = vld [vmem:[#allocation16 + $0x588] sm:$0xff]
    %v1712 = vld [vmem:[#allocation16 + $0x590] sm:$0xff]
    %v1713 = vld [vmem:[#allocation16 + $0x598] sm:$0xff]
    %v1714 = vld [vmem:[#allocation16 + $0x5a0] sm:$0xff]
    %v1715 = vld [vmem:[#allocation16 + $0x5a8] sm:$0xff]
    %v1716 = vld [vmem:[#allocation16 + $0x5b0] sm:$0xff]
    %v1717 = vld [vmem:[#allocation16 + $0x5b8] sm:$0xff]
    %v1718 = vld [vmem:[#allocation16 + $0x5c0] sm:$0xff]
    %v1719 = vld [vmem:[#allocation16 + $0x5c8] sm:$0xff]
    %v1720 = vld [vmem:[#allocation16 + $0x5d0] sm:$0xff]
    %v1721 = vld [vmem:[#allocation16 + $0x5d8] sm:$0xff]
    %v1722 = vld [vmem:[#allocation16 + $0x5e0] sm:$0xff]
    %v1723 = vld [vmem:[#allocation16 + $0x5e8] sm:$0xff]
    %v1724 = vld [vmem:[#allocation16 + $0x5f0] sm:$0xff]
    %v1725 = vld [vmem:[#allocation16 + $0x5f8] sm:$0xff]
    %v1726 = vld [vmem:[#allocation16 + $0x600] sm:$0xff]
    %v1727 = vld [vmem:[#allocation16 + $0x608] sm:$0xff]
    %v1728 = vld [vmem:[#allocation16 + $0x610] sm:$0xff]
    %v1729 = vld [vmem:[#allocation16 + $0x618] sm:$0xff]
    %v1730 = vld [vmem:[#allocation16 + $0x620] sm:$0xff]
    %v1731 = vld [vmem:[#allocation16 + $0x628] sm:$0xff]
    %v1732 = vld [vmem:[#allocation16 + $0x630] sm:$0xff]
    %v1733 = vld [vmem:[#allocation16 + $0x638] sm:$0xff]
    %v1734 = vld [vmem:[#allocation16 + $0x640] sm:$0xff]
    %v1735 = vld [vmem:[#allocation16 + $0x648] sm:$0xff]
    %v1736 = vld [vmem:[#allocation16 + $0x650] sm:$0xff]
    %v1737 = vld [vmem:[#allocation16 + $0x658] sm:$0xff]
    %v1738 = vld [vmem:[#allocation16 + $0x660] sm:$0xff]
    %v1739 = vld [vmem:[#allocation16 + $0x668] sm:$0xff]
    %v1740 = vld [vmem:[#allocation16 + $0x670] sm:$0xff]
    %v1741 = vld [vmem:[#allocation16 + $0x678] sm:$0xff]
    %v1742 = vld [vmem:[#allocation16 + $0x680] sm:$0xff]
    %v1743 = vld [vmem:[#allocation16 + $0x688] sm:$0xff]
    %v1744 = vld [vmem:[#allocation16 + $0x690] sm:$0xff]
    %v1745 = vld [vmem:[#allocation16 + $0x698] sm:$0xff]
    %v1746 = vld [vmem:[#allocation16 + $0x6a0] sm:$0xff]
    %v1747 = vld [vmem:[#allocation16 + $0x6a8] sm:$0xff]
    %v1748 = vld [vmem:[#allocation16 + $0x6b0] sm:$0xff]
    %v1749 = vld [vmem:[#allocation16 + $0x6b8] sm:$0xff]
    %v1750 = vld [vmem:[#allocation16 + $0x6c0] sm:$0xff]
    %v1751 = vld [vmem:[#allocation16 + $0x6c8] sm:$0xff]
    %v1752 = vld [vmem:[#allocation16 + $0x6d0] sm:$0xff]
    %v1753 = vld [vmem:[#allocation16 + $0x6d8] sm:$0xff]
    %v1754 = vld [vmem:[#allocation16 + $0x6e0] sm:$0xff]
    %v1755 = vld [vmem:[#allocation16 + $0x6e8] sm:$0xff]
    %v1756 = vld [vmem:[#allocation16 + $0x6f0] sm:$0xff]
    %v1757 = vld [vmem:[#allocation16 + $0x6f8] sm:$0xff]
    %v1758 = vld [vmem:[#allocation16 + $0x700] sm:$0xff]
    %v1759 = vld [vmem:[#allocation16 + $0x708] sm:$0xff]
    %v1760 = vld [vmem:[#allocation16 + $0x710] sm:$0xff]
    %v1761 = vld [vmem:[#allocation16 + $0x718] sm:$0xff]
    %v1762 = vld [vmem:[#allocation16 + $0x720] sm:$0xff]
    %v1763 = vld [vmem:[#allocation16 + $0x728] sm:$0xff]
    %v1764 = vld [vmem:[#allocation16 + $0x730] sm:$0xff]
    %v1765 = vld [vmem:[#allocation16 + $0x738] sm:$0xff]
    %v1766 = vld [vmem:[#allocation16 + $0x740] sm:$0xff]
    %v1767 = vld [vmem:[#allocation16 + $0x748] sm:$0xff]
    %v1768 = vld [vmem:[#allocation16 + $0x750] sm:$0xff]
    %v1769 = vld [vmem:[#allocation16 + $0x758] sm:$0xff]
    %v1770 = vld [vmem:[#allocation16 + $0x760] sm:$0xff]
    %v1771 = vld [vmem:[#allocation16 + $0x768] sm:$0xff]
    %v1772 = vld [vmem:[#allocation16 + $0x770] sm:$0xff]
    %v1773 = vld [vmem:[#allocation16 + $0x778] sm:$0xff]
    %v1774 = vld [vmem:[#allocation16 + $0x780] sm:$0xff]
    %v1775 = vld [vmem:[#allocation16 + $0x788] sm:$0xff]
    %v1776 = vld [vmem:[#allocation16 + $0x790] sm:$0xff]
    %v1777 = vld [vmem:[#allocation16 + $0x798] sm:$0xff]
    %v1778 = vld [vmem:[#allocation16 + $0x7a0] sm:$0xff]
    %v1779 = vld [vmem:[#allocation16 + $0x7a8] sm:$0xff]
    %v1780 = vld [vmem:[#allocation16 + $0x7b0] sm:$0xff]
    %v1781 = vld [vmem:[#allocation16 + $0x7b8] sm:$0xff]
    %v1782 = vld [vmem:[#allocation16 + $0x7c0] sm:$0xff]
    %v1783 = vld [vmem:[#allocation16 + $0x7c8] sm:$0xff]
    %v1784 = vld [vmem:[#allocation16 + $0x7d0] sm:$0xff]
    %v1785 = vld [vmem:[#allocation16 + $0x7d8] sm:$0xff]
    %v1786 = vld [vmem:[#allocation16 + $0x7e0] sm:$0xff]
    %v1787 = vld [vmem:[#allocation16 + $0x7e8] sm:$0xff]
    %v1788 = vld [vmem:[#allocation16 + $0x7f0] sm:$0xff]
    %v1789 = vld [vmem:[#allocation16 + $0x7f8] sm:$0xff]
    %v1790 = vld [vmem:[%s18] sm:$0xff]
    %v1792 = vlaneseq
    %v1793 = vshrl.u32 %v1792, 7
    %v1794 = vsub.s32 0, %v1793
    %v1795 = vrot.slane %v1790, %v1794
    %v1796 = vlaneseq
    %v1797 = vshrl.u32 %v1796, 7
    %v1798 = vsub.s32 1, %v1797
    %v1799 = vrot.slane %v1790, %v1798
    %v1800 = vlaneseq
    %v1801 = vshrl.u32 %v1800, 7
    %v1802 = vsub.s32 2, %v1801
    %v1803 = vrot.slane %v1790, %v1802
    %v1804 = vlaneseq
    %v1805 = vshrl.u32 %v1804, 7
    %v1806 = vsub.s32 3, %v1805
    %v1807 = vrot.slane %v1790, %v1806
    %v1808 = vlaneseq
    %v1809 = vshrl.u32 %v1808, 7
    %v1810 = vsub.s32 4, %v1809
    %v1811 = vrot.slane %v1790, %v1810
    %v1812 = vlaneseq
    %v1813 = vshrl.u32 %v1812, 7
    %v1814 = vsub.s32 5, %v1813
    %v1815 = vrot.slane %v1790, %v1814
    %v1816 = vlaneseq
    %v1817 = vshrl.u32 %v1816, 7
    %v1818 = vsub.s32 6, %v1817
    %v1819 = vrot.slane %v1790, %v1818
    %v1820 = vlaneseq
    %v1821 = vshrl.u32 %v1820, 7
    %v1822 = vsub.s32 7, %v1821
    %v1823 = vrot.slane %v1790, %v1822
    %v2088 = vunpack.c.l.b16 %v1534
    %v2089 = vunpack.c.h.b16 %v1534
    %v2090 = vunpack.c.l.b16 %v1535
    %v2091 = vunpack.c.h.b16 %v1535
    %v2092 = vunpack.c.l.b16 %v1536
    %v2093 = vunpack.c.h.b16 %v1536
    %v2094 = vunpack.c.l.b16 %v1537
    %v2095 = vunpack.c.h.b16 %v1537
    %v2096 = vunpack.c.l.b16 %v1538
    %v2097 = vunpack.c.h.b16 %v1538
    %v2098 = vunpack.c.l.b16 %v1539
    %v2099 = vunpack.c.h.b16 %v1539
    %v2100 = vunpack.c.l.b16 %v1540
    %v2101 = vunpack.c.h.b16 %v1540
    %v2102 = vunpack.c.l.b16 %v1541
    %v2103 = vunpack.c.h.b16 %v1541
    %v2104 = vunpack.c.l.b16 %v1542
    %v2105 = vunpack.c.h.b16 %v1542
    %v2106 = vunpack.c.l.b16 %v1543
    %v2107 = vunpack.c.h.b16 %v1543
    %v2108 = vunpack.c.l.b16 %v1544
    %v2109 = vunpack.c.h.b16 %v1544
    %v2110 = vunpack.c.l.b16 %v1545
    %v2111 = vunpack.c.h.b16 %v1545
    %v2112 = vunpack.c.l.b16 %v1546
    %v2113 = vunpack.c.h.b16 %v1546
    %v2114 = vunpack.c.l.b16 %v1547
    %v2115 = vunpack.c.h.b16 %v1547
    %v2116 = vunpack.c.l.b16 %v1548
    %v2117 = vunpack.c.h.b16 %v1548
    %v2118 = vunpack.c.l.b16 %v1549
    %v2119 = vunpack.c.h.b16 %v1549
    %v2120 = vunpack.c.l.b16 %v1550
    %v2121 = vunpack.c.h.b16 %v1550
    %v2122 = vunpack.c.l.b16 %v1551
    %v2123 = vunpack.c.h.b16 %v1551
    %v2124 = vunpack.c.l.b16 %v1552
    %v2125 = vunpack.c.h.b16 %v1552
    %v2126 = vunpack.c.l.b16 %v1553
    %v2127 = vunpack.c.h.b16 %v1553
    %v2128 = vunpack.c.l.b16 %v1554
    %v2129 = vunpack.c.h.b16 %v1554
    %v2130 = vunpack.c.l.b16 %v1555
    %v2131 = vunpack.c.h.b16 %v1555
    %v2132 = vunpack.c.l.b16 %v1556
    %v2133 = vunpack.c.h.b16 %v1556
    %v2134 = vunpack.c.l.b16 %v1557
    %v2135 = vunpack.c.h.b16 %v1557
    %v2136 = vunpack.c.l.b16 %v1558
    %v2137 = vunpack.c.h.b16 %v1558
    %v2138 = vunpack.c.l.b16 %v1559
    %v2139 = vunpack.c.h.b16 %v1559
    %v2140 = vunpack.c.l.b16 %v1560
    %v2141 = vunpack.c.h.b16 %v1560
    %v2142 = vunpack.c.l.b16 %v1561
    %v2143 = vunpack.c.h.b16 %v1561
    %v2144 = vunpack.c.l.b16 %v1562
    %v2145 = vunpack.c.h.b16 %v1562
    %v2146 = vunpack.c.l.b16 %v1563
    %v2147 = vunpack.c.h.b16 %v1563
    %v2148 = vunpack.c.l.b16 %v1564
    %v2149 = vunpack.c.h.b16 %v1564
    %v2150 = vunpack.c.l.b16 %v1565
    %v2151 = vunpack.c.h.b16 %v1565
    %v2152 = vunpack.c.l.b16 %v1566
    %v2153 = vunpack.c.h.b16 %v1566
    %v2154 = vunpack.c.l.b16 %v1567
    %v2155 = vunpack.c.h.b16 %v1567
    %v2156 = vunpack.c.l.b16 %v1568
    %v2157 = vunpack.c.h.b16 %v1568
    %v2158 = vunpack.c.l.b16 %v1569
    %v2159 = vunpack.c.h.b16 %v1569
    %v2160 = vunpack.c.l.b16 %v1570
    %v2161 = vunpack.c.h.b16 %v1570
    %v2162 = vunpack.c.l.b16 %v1571
    %v2163 = vunpack.c.h.b16 %v1571
    %v2164 = vunpack.c.l.b16 %v1572
    %v2165 = vunpack.c.h.b16 %v1572
    %v2166 = vunpack.c.l.b16 %v1573
    %v2167 = vunpack.c.h.b16 %v1573
    %v2168 = vunpack.c.l.b16 %v1574
    %v2169 = vunpack.c.h.b16 %v1574
    %v2170 = vunpack.c.l.b16 %v1575
    %v2171 = vunpack.c.h.b16 %v1575
    %v2172 = vunpack.c.l.b16 %v1576
    %v2173 = vunpack.c.h.b16 %v1576
    %v2174 = vunpack.c.l.b16 %v1577
    %v2175 = vunpack.c.h.b16 %v1577
    %v2176 = vunpack.c.l.b16 %v1578
    %v2177 = vunpack.c.h.b16 %v1578
    %v2178 = vunpack.c.l.b16 %v1579
    %v2179 = vunpack.c.h.b16 %v1579
    %v2180 = vunpack.c.l.b16 %v1580
    %v2181 = vunpack.c.h.b16 %v1580
    %v2182 = vunpack.c.l.b16 %v1581
    %v2183 = vunpack.c.h.b16 %v1581
    %v2184 = vunpack.c.l.b16 %v1582
    %v2185 = vunpack.c.h.b16 %v1582
    %v2186 = vunpack.c.l.b16 %v1583
    %v2187 = vunpack.c.h.b16 %v1583
    %v2188 = vunpack.c.l.b16 %v1584
    %v2189 = vunpack.c.h.b16 %v1584
    %v2190 = vunpack.c.l.b16 %v1585
    %v2191 = vunpack.c.h.b16 %v1585
    %v2192 = vunpack.c.l.b16 %v1586
    %v2193 = vunpack.c.h.b16 %v1586
    %v2194 = vunpack.c.l.b16 %v1587
    %v2195 = vunpack.c.h.b16 %v1587
    %v2196 = vunpack.c.l.b16 %v1588
    %v2197 = vunpack.c.h.b16 %v1588
    %v2198 = vunpack.c.l.b16 %v1589
    %v2199 = vunpack.c.h.b16 %v1589
    %v2200 = vunpack.c.l.b16 %v1590
    %v2201 = vunpack.c.h.b16 %v1590
    %v2202 = vunpack.c.l.b16 %v1591
    %v2203 = vunpack.c.h.b16 %v1591
    %v2204 = vunpack.c.l.b16 %v1592
    %v2205 = vunpack.c.h.b16 %v1592
    %v2206 = vunpack.c.l.b16 %v1593
    %v2207 = vunpack.c.h.b16 %v1593
    %v2208 = vunpack.c.l.b16 %v1594
    %v2209 = vunpack.c.h.b16 %v1594
    %v2210 = vunpack.c.l.b16 %v1595
    %v2211 = vunpack.c.h.b16 %v1595
    %v2212 = vunpack.c.l.b16 %v1596
    %v2213 = vunpack.c.h.b16 %v1596
    %v2214 = vunpack.c.l.b16 %v1597
    %v2215 = vunpack.c.h.b16 %v1597
    %v2216 = vunpack.c.l.b16 %v1598
    %v2217 = vunpack.c.h.b16 %v1598
    %v2218 = vunpack.c.l.b16 %v1599
    %v2219 = vunpack.c.h.b16 %v1599
    %v2220 = vunpack.c.l.b16 %v1600
    %v2221 = vunpack.c.h.b16 %v1600
    %v2222 = vunpack.c.l.b16 %v1601
    %v2223 = vunpack.c.h.b16 %v1601
    %v2224 = vunpack.c.l.b16 %v1602
    %v2225 = vunpack.c.h.b16 %v1602
    %v2226 = vunpack.c.l.b16 %v1603
    %v2227 = vunpack.c.h.b16 %v1603
    %v2228 = vunpack.c.l.b16 %v1604
    %v2229 = vunpack.c.h.b16 %v1604
    %v2230 = vunpack.c.l.b16 %v1605
    %v2231 = vunpack.c.h.b16 %v1605
    %v2232 = vunpack.c.l.b16 %v1606
    %v2233 = vunpack.c.h.b16 %v1606
    %v2234 = vunpack.c.l.b16 %v1607
    %v2235 = vunpack.c.h.b16 %v1607
    %v2236 = vunpack.c.l.b16 %v1608
    %v2237 = vunpack.c.h.b16 %v1608
    %v2238 = vunpack.c.l.b16 %v1609
    %v2239 = vunpack.c.h.b16 %v1609
    %v2240 = vunpack.c.l.b16 %v1610
    %v2241 = vunpack.c.h.b16 %v1610
    %v2242 = vunpack.c.l.b16 %v1611
    %v2243 = vunpack.c.h.b16 %v1611
    %v2244 = vunpack.c.l.b16 %v1612
    %v2245 = vunpack.c.h.b16 %v1612
    %v2246 = vunpack.c.l.b16 %v1613
    %v2247 = vunpack.c.h.b16 %v1613
    %v2248 = vunpack.c.l.b16 %v1614
    %v2249 = vunpack.c.h.b16 %v1614
    %v2250 = vunpack.c.l.b16 %v1615
    %v2251 = vunpack.c.h.b16 %v1615
    %v2252 = vunpack.c.l.b16 %v1616
    %v2253 = vunpack.c.h.b16 %v1616
    %v2254 = vunpack.c.l.b16 %v1617
    %v2255 = vunpack.c.h.b16 %v1617
    %v2256 = vunpack.c.l.b16 %v1618
    %v2257 = vunpack.c.h.b16 %v1618
    %v2258 = vunpack.c.l.b16 %v1619
    %v2259 = vunpack.c.h.b16 %v1619
    %v2260 = vunpack.c.l.b16 %v1620
    %v2261 = vunpack.c.h.b16 %v1620
    %v2262 = vunpack.c.l.b16 %v1621
    %v2263 = vunpack.c.h.b16 %v1621
    %v2264 = vunpack.c.l.b16 %v1622
    %v2265 = vunpack.c.h.b16 %v1622
    %v2266 = vunpack.c.l.b16 %v1623
    %v2267 = vunpack.c.h.b16 %v1623
    %v2268 = vunpack.c.l.b16 %v1624
    %v2269 = vunpack.c.h.b16 %v1624
    %v2270 = vunpack.c.l.b16 %v1625
    %v2271 = vunpack.c.h.b16 %v1625
    %v2272 = vunpack.c.l.b16 %v1626
    %v2273 = vunpack.c.h.b16 %v1626
    %v2274 = vunpack.c.l.b16 %v1627
    %v2275 = vunpack.c.h.b16 %v1627
    %v2276 = vunpack.c.l.b16 %v1628
    %v2277 = vunpack.c.h.b16 %v1628
    %v2278 = vunpack.c.l.b16 %v1629
    %v2279 = vunpack.c.h.b16 %v1629
    %v2280 = vunpack.c.l.b16 %v1630
    %v2281 = vunpack.c.h.b16 %v1630
    %v2282 = vunpack.c.l.b16 %v1631
    %v2283 = vunpack.c.h.b16 %v1631
    %v2284 = vunpack.c.l.b16 %v1632
    %v2285 = vunpack.c.h.b16 %v1632
    %v2286 = vunpack.c.l.b16 %v1633
    %v2287 = vunpack.c.h.b16 %v1633
    %v2288 = vunpack.c.l.b16 %v1634
    %v2289 = vunpack.c.h.b16 %v1634
    %v2290 = vunpack.c.l.b16 %v1635
    %v2291 = vunpack.c.h.b16 %v1635
    %v2292 = vunpack.c.l.b16 %v1636
    %v2293 = vunpack.c.h.b16 %v1636
    %v2294 = vunpack.c.l.b16 %v1637
    %v2295 = vunpack.c.h.b16 %v1637
    %v2296 = vunpack.c.l.b16 %v1638
    %v2297 = vunpack.c.h.b16 %v1638
    %v2298 = vunpack.c.l.b16 %v1639
    %v2299 = vunpack.c.h.b16 %v1639
    %v2300 = vunpack.c.l.b16 %v1640
    %v2301 = vunpack.c.h.b16 %v1640
    %v2302 = vunpack.c.l.b16 %v1641
    %v2303 = vunpack.c.h.b16 %v1641
    %v2304 = vunpack.c.l.b16 %v1642
    %v2305 = vunpack.c.h.b16 %v1642
    %v2306 = vunpack.c.l.b16 %v1643
    %v2307 = vunpack.c.h.b16 %v1643
    %v2308 = vunpack.c.l.b16 %v1644
    %v2309 = vunpack.c.h.b16 %v1644
    %v2310 = vunpack.c.l.b16 %v1645
    %v2311 = vunpack.c.h.b16 %v1645
    %v2312 = vunpack.c.l.b16 %v1646
    %v2313 = vunpack.c.h.b16 %v1646
    %v2314 = vunpack.c.l.b16 %v1647
    %v2315 = vunpack.c.h.b16 %v1647
    %v2316 = vunpack.c.l.b16 %v1648
    %v2317 = vunpack.c.h.b16 %v1648
    %v2318 = vunpack.c.l.b16 %v1649
    %v2319 = vunpack.c.h.b16 %v1649
    %v2320 = vunpack.c.l.b16 %v1650
    %v2321 = vunpack.c.h.b16 %v1650
    %v2322 = vunpack.c.l.b16 %v1651
    %v2323 = vunpack.c.h.b16 %v1651
    %v2324 = vunpack.c.l.b16 %v1652
    %v2325 = vunpack.c.h.b16 %v1652
    %v2326 = vunpack.c.l.b16 %v1653
    %v2327 = vunpack.c.h.b16 %v1653
    %v2328 = vunpack.c.l.b16 %v1654
    %v2329 = vunpack.c.h.b16 %v1654
    %v2330 = vunpack.c.l.b16 %v1655
    %v2331 = vunpack.c.h.b16 %v1655
    %v2332 = vunpack.c.l.b16 %v1656
    %v2333 = vunpack.c.h.b16 %v1656
    %v2334 = vunpack.c.l.b16 %v1657
    %v2335 = vunpack.c.h.b16 %v1657
    %v2336 = vunpack.c.l.b16 %v1658
    %v2337 = vunpack.c.h.b16 %v1658
    %v2338 = vunpack.c.l.b16 %v1659
    %v2339 = vunpack.c.h.b16 %v1659
    %v2340 = vunpack.c.l.b16 %v1660
    %v2341 = vunpack.c.h.b16 %v1660
    %v2342 = vunpack.c.l.b16 %v1661
    %v2343 = vunpack.c.h.b16 %v1661
    %v2344 = vunpack.c.l.b16 %v1662
    %v2345 = vunpack.c.h.b16 %v1662
    %v2346 = vunpack.c.l.b16 %v1663
    %v2347 = vunpack.c.h.b16 %v1663
    %v2348 = vunpack.c.l.b16 %v1664
    %v2349 = vunpack.c.h.b16 %v1664
    %v2350 = vunpack.c.l.b16 %v1665
    %v2351 = vunpack.c.h.b16 %v1665
    %v2352 = vunpack.c.l.b16 %v1666
    %v2353 = vunpack.c.h.b16 %v1666
    %v2354 = vunpack.c.l.b16 %v1667
    %v2355 = vunpack.c.h.b16 %v1667
    %v2356 = vunpack.c.l.b16 %v1668
    %v2357 = vunpack.c.h.b16 %v1668
    %v2358 = vunpack.c.l.b16 %v1669
    %v2359 = vunpack.c.h.b16 %v1669
    %v2360 = vunpack.c.l.b16 %v1670
    %v2361 = vunpack.c.h.b16 %v1670
    %v2362 = vunpack.c.l.b16 %v1671
    %v2363 = vunpack.c.h.b16 %v1671
    %v2364 = vunpack.c.l.b16 %v1672
    %v2365 = vunpack.c.h.b16 %v1672
    %v2366 = vunpack.c.l.b16 %v1673
    %v2367 = vunpack.c.h.b16 %v1673
    %v2368 = vunpack.c.l.b16 %v1674
    %v2369 = vunpack.c.h.b16 %v1674
    %v2370 = vunpack.c.l.b16 %v1675
    %v2371 = vunpack.c.h.b16 %v1675
    %v2372 = vunpack.c.l.b16 %v1676
    %v2373 = vunpack.c.h.b16 %v1676
    %v2374 = vunpack.c.l.b16 %v1677
    %v2375 = vunpack.c.h.b16 %v1677
    %v2376 = vunpack.c.l.b16 %v1678
    %v2377 = vunpack.c.h.b16 %v1678
    %v2378 = vunpack.c.l.b16 %v1679
    %v2379 = vunpack.c.h.b16 %v1679
    %v2380 = vunpack.c.l.b16 %v1680
    %v2381 = vunpack.c.h.b16 %v1680
    %v2382 = vunpack.c.l.b16 %v1681
    %v2383 = vunpack.c.h.b16 %v1681
    %v2384 = vunpack.c.l.b16 %v1682
    %v2385 = vunpack.c.h.b16 %v1682
    %v2386 = vunpack.c.l.b16 %v1683
    %v2387 = vunpack.c.h.b16 %v1683
    %v2388 = vunpack.c.l.b16 %v1684
    %v2389 = vunpack.c.h.b16 %v1684
    %v2390 = vunpack.c.l.b16 %v1685
    %v2391 = vunpack.c.h.b16 %v1685
    %v2392 = vunpack.c.l.b16 %v1686
    %v2393 = vunpack.c.h.b16 %v1686
    %v2394 = vunpack.c.l.b16 %v1687
    %v2395 = vunpack.c.h.b16 %v1687
    %v2396 = vunpack.c.l.b16 %v1688
    %v2397 = vunpack.c.h.b16 %v1688
    %v2398 = vunpack.c.l.b16 %v1689
    %v2399 = vunpack.c.h.b16 %v1689
    %v2400 = vunpack.c.l.b16 %v1690
    %v2401 = vunpack.c.h.b16 %v1690
    %v2402 = vunpack.c.l.b16 %v1691
    %v2403 = vunpack.c.h.b16 %v1691
    %v2404 = vunpack.c.l.b16 %v1692
    %v2405 = vunpack.c.h.b16 %v1692
    %v2406 = vunpack.c.l.b16 %v1693
    %v2407 = vunpack.c.h.b16 %v1693
    %v2408 = vunpack.c.l.b16 %v1694
    %v2409 = vunpack.c.h.b16 %v1694
    %v2410 = vunpack.c.l.b16 %v1695
    %v2411 = vunpack.c.h.b16 %v1695
    %v2412 = vunpack.c.l.b16 %v1696
    %v2413 = vunpack.c.h.b16 %v1696
    %v2414 = vunpack.c.l.b16 %v1697
    %v2415 = vunpack.c.h.b16 %v1697
    %v2416 = vunpack.c.l.b16 %v1698
    %v2417 = vunpack.c.h.b16 %v1698
    %v2418 = vunpack.c.l.b16 %v1699
    %v2419 = vunpack.c.h.b16 %v1699
    %v2420 = vunpack.c.l.b16 %v1700
    %v2421 = vunpack.c.h.b16 %v1700
    %v2422 = vunpack.c.l.b16 %v1701
    %v2423 = vunpack.c.h.b16 %v1701
    %v2424 = vunpack.c.l.b16 %v1702
    %v2425 = vunpack.c.h.b16 %v1702
    %v2426 = vunpack.c.l.b16 %v1703
    %v2427 = vunpack.c.h.b16 %v1703
    %v2428 = vunpack.c.l.b16 %v1704
    %v2429 = vunpack.c.h.b16 %v1704
    %v2430 = vunpack.c.l.b16 %v1705
    %v2431 = vunpack.c.h.b16 %v1705
    %v2432 = vunpack.c.l.b16 %v1706
    %v2433 = vunpack.c.h.b16 %v1706
    %v2434 = vunpack.c.l.b16 %v1707
    %v2435 = vunpack.c.h.b16 %v1707
    %v2436 = vunpack.c.l.b16 %v1708
    %v2437 = vunpack.c.h.b16 %v1708
    %v2438 = vunpack.c.l.b16 %v1709
    %v2439 = vunpack.c.h.b16 %v1709
    %v2440 = vunpack.c.l.b16 %v1710
    %v2441 = vunpack.c.h.b16 %v1710
    %v2442 = vunpack.c.l.b16 %v1711
    %v2443 = vunpack.c.h.b16 %v1711
    %v2444 = vunpack.c.l.b16 %v1712
    %v2445 = vunpack.c.h.b16 %v1712
    %v2446 = vunpack.c.l.b16 %v1713
    %v2447 = vunpack.c.h.b16 %v1713
    %v2448 = vunpack.c.l.b16 %v1714
    %v2449 = vunpack.c.h.b16 %v1714
    %v2450 = vunpack.c.l.b16 %v1715
    %v2451 = vunpack.c.h.b16 %v1715
    %v2452 = vunpack.c.l.b16 %v1716
    %v2453 = vunpack.c.h.b16 %v1716
    %v2454 = vunpack.c.l.b16 %v1717
    %v2455 = vunpack.c.h.b16 %v1717
    %v2456 = vunpack.c.l.b16 %v1718
    %v2457 = vunpack.c.h.b16 %v1718
    %v2458 = vunpack.c.l.b16 %v1719
    %v2459 = vunpack.c.h.b16 %v1719
    %v2460 = vunpack.c.l.b16 %v1720
    %v2461 = vunpack.c.h.b16 %v1720
    %v2462 = vunpack.c.l.b16 %v1721
    %v2463 = vunpack.c.h.b16 %v1721
    %v2464 = vunpack.c.l.b16 %v1722
    %v2465 = vunpack.c.h.b16 %v1722
    %v2466 = vunpack.c.l.b16 %v1723
    %v2467 = vunpack.c.h.b16 %v1723
    %v2468 = vunpack.c.l.b16 %v1724
    %v2469 = vunpack.c.h.b16 %v1724
    %v2470 = vunpack.c.l.b16 %v1725
    %v2471 = vunpack.c.h.b16 %v1725
    %v2472 = vunpack.c.l.b16 %v1726
    %v2473 = vunpack.c.h.b16 %v1726
    %v2474 = vunpack.c.l.b16 %v1727
    %v2475 = vunpack.c.h.b16 %v1727
    %v2476 = vunpack.c.l.b16 %v1728
    %v2477 = vunpack.c.h.b16 %v1728
    %v2478 = vunpack.c.l.b16 %v1729
    %v2479 = vunpack.c.h.b16 %v1729
    %v2480 = vunpack.c.l.b16 %v1730
    %v2481 = vunpack.c.h.b16 %v1730
    %v2482 = vunpack.c.l.b16 %v1731
    %v2483 = vunpack.c.h.b16 %v1731
    %v2484 = vunpack.c.l.b16 %v1732
    %v2485 = vunpack.c.h.b16 %v1732
    %v2486 = vunpack.c.l.b16 %v1733
    %v2487 = vunpack.c.h.b16 %v1733
    %v2488 = vunpack.c.l.b16 %v1734
    %v2489 = vunpack.c.h.b16 %v1734
    %v2490 = vunpack.c.l.b16 %v1735
    %v2491 = vunpack.c.h.b16 %v1735
    %v2492 = vunpack.c.l.b16 %v1736
    %v2493 = vunpack.c.h.b16 %v1736
    %v2494 = vunpack.c.l.b16 %v1737
    %v2495 = vunpack.c.h.b16 %v1737
    %v2496 = vunpack.c.l.b16 %v1738
    %v2497 = vunpack.c.h.b16 %v1738
    %v2498 = vunpack.c.l.b16 %v1739
    %v2499 = vunpack.c.h.b16 %v1739
    %v2500 = vunpack.c.l.b16 %v1740
    %v2501 = vunpack.c.h.b16 %v1740
    %v2502 = vunpack.c.l.b16 %v1741
    %v2503 = vunpack.c.h.b16 %v1741
    %v2504 = vunpack.c.l.b16 %v1742
    %v2505 = vunpack.c.h.b16 %v1742
    %v2506 = vunpack.c.l.b16 %v1743
    %v2507 = vunpack.c.h.b16 %v1743
    %v2508 = vunpack.c.l.b16 %v1744
    %v2509 = vunpack.c.h.b16 %v1744
    %v2510 = vunpack.c.l.b16 %v1745
    %v2511 = vunpack.c.h.b16 %v1745
    %v2512 = vunpack.c.l.b16 %v1746
    %v2513 = vunpack.c.h.b16 %v1746
    %v2514 = vunpack.c.l.b16 %v1747
    %v2515 = vunpack.c.h.b16 %v1747
    %v2516 = vunpack.c.l.b16 %v1748
    %v2517 = vunpack.c.h.b16 %v1748
    %v2518 = vunpack.c.l.b16 %v1749
    %v2519 = vunpack.c.h.b16 %v1749
    %v2520 = vunpack.c.l.b16 %v1750
    %v2521 = vunpack.c.h.b16 %v1750
    %v2522 = vunpack.c.l.b16 %v1751
    %v2523 = vunpack.c.h.b16 %v1751
    %v2524 = vunpack.c.l.b16 %v1752
    %v2525 = vunpack.c.h.b16 %v1752
    %v2526 = vunpack.c.l.b16 %v1753
    %v2527 = vunpack.c.h.b16 %v1753
    %v2528 = vunpack.c.l.b16 %v1754
    %v2529 = vunpack.c.h.b16 %v1754
    %v2530 = vunpack.c.l.b16 %v1755
    %v2531 = vunpack.c.h.b16 %v1755
    %v2532 = vunpack.c.l.b16 %v1756
    %v2533 = vunpack.c.h.b16 %v1756
    %v2534 = vunpack.c.l.b16 %v1757
    %v2535 = vunpack.c.h.b16 %v1757
    %v2536 = vunpack.c.l.b16 %v1758
    %v2537 = vunpack.c.h.b16 %v1758
    %v2538 = vunpack.c.l.b16 %v1759
    %v2539 = vunpack.c.h.b16 %v1759
    %v2540 = vunpack.c.l.b16 %v1760
    %v2541 = vunpack.c.h.b16 %v1760
    %v2542 = vunpack.c.l.b16 %v1761
    %v2543 = vunpack.c.h.b16 %v1761
    %v2544 = vunpack.c.l.b16 %v1762
    %v2545 = vunpack.c.h.b16 %v1762
    %v2546 = vunpack.c.l.b16 %v1763
    %v2547 = vunpack.c.h.b16 %v1763
    %v2548 = vunpack.c.l.b16 %v1764
    %v2549 = vunpack.c.h.b16 %v1764
    %v2550 = vunpack.c.l.b16 %v1765
    %v2551 = vunpack.c.h.b16 %v1765
    %v2552 = vunpack.c.l.b16 %v1766
    %v2553 = vunpack.c.h.b16 %v1766
    %v2554 = vunpack.c.l.b16 %v1767
    %v2555 = vunpack.c.h.b16 %v1767
    %v2556 = vunpack.c.l.b16 %v1768
    %v2557 = vunpack.c.h.b16 %v1768
    %v2558 = vunpack.c.l.b16 %v1769
    %v2559 = vunpack.c.h.b16 %v1769
    %v2560 = vunpack.c.l.b16 %v1770
    %v2561 = vunpack.c.h.b16 %v1770
    %v2562 = vunpack.c.l.b16 %v1771
    %v2563 = vunpack.c.h.b16 %v1771
    %v2564 = vunpack.c.l.b16 %v1772
    %v2565 = vunpack.c.h.b16 %v1772
    %v2566 = vunpack.c.l.b16 %v1773
    %v2567 = vunpack.c.h.b16 %v1773
    %v2568 = vunpack.c.l.b16 %v1774
    %v2569 = vunpack.c.h.b16 %v1774
    %v2570 = vunpack.c.l.b16 %v1775
    %v2571 = vunpack.c.h.b16 %v1775
    %v2572 = vunpack.c.l.b16 %v1776
    %v2573 = vunpack.c.h.b16 %v1776
    %v2574 = vunpack.c.l.b16 %v1777
    %v2575 = vunpack.c.h.b16 %v1777
    %v2576 = vunpack.c.l.b16 %v1778
    %v2577 = vunpack.c.h.b16 %v1778
    %v2578 = vunpack.c.l.b16 %v1779
    %v2579 = vunpack.c.h.b16 %v1779
    %v2580 = vunpack.c.l.b16 %v1780
    %v2581 = vunpack.c.h.b16 %v1780
    %v2582 = vunpack.c.l.b16 %v1781
    %v2583 = vunpack.c.h.b16 %v1781
    %v2584 = vunpack.c.l.b16 %v1782
    %v2585 = vunpack.c.h.b16 %v1782
    %v2586 = vunpack.c.l.b16 %v1783
    %v2587 = vunpack.c.h.b16 %v1783
    %v2588 = vunpack.c.l.b16 %v1784
    %v2589 = vunpack.c.h.b16 %v1784
    %v2590 = vunpack.c.l.b16 %v1785
    %v2591 = vunpack.c.h.b16 %v1785
    %v2592 = vunpack.c.l.b16 %v1786
    %v2593 = vunpack.c.h.b16 %v1786
    %v2594 = vunpack.c.l.b16 %v1787
    %v2595 = vunpack.c.h.b16 %v1787
    %v2596 = vunpack.c.l.b16 %v1788
    %v2597 = vunpack.c.h.b16 %v1788
    %v2598 = vunpack.c.l.b16 %v1789
    %v2599 = vunpack.c.h.b16 %v1789
    %v2600 = vpack.c.b16 %v2096, %v2088
    %v2601 = vpack.c.b16 %v2097, %v2089
    %v2602 = vpack.c.b16 %v2098, %v2090
    %v2603 = vpack.c.b16 %v2099, %v2091
    %v2604 = vpack.c.b16 %v2100, %v2092
    %v2605 = vpack.c.b16 %v2101, %v2093
    %v2606 = vpack.c.b16 %v2102, %v2094
    %v2607 = vpack.c.b16 %v2103, %v2095
    %v2608 = vpack.c.b16 %v2112, %v2104
    %v2609 = vpack.c.b16 %v2113, %v2105
    %v2610 = vpack.c.b16 %v2114, %v2106
    %v2611 = vpack.c.b16 %v2115, %v2107
    %v2612 = vpack.c.b16 %v2116, %v2108
    %v2613 = vpack.c.b16 %v2117, %v2109
    %v2614 = vpack.c.b16 %v2118, %v2110
    %v2615 = vpack.c.b16 %v2119, %v2111
    %v2616 = vpack.c.b16 %v2128, %v2120
    %v2617 = vpack.c.b16 %v2129, %v2121
    %v2618 = vpack.c.b16 %v2130, %v2122
    %v2619 = vpack.c.b16 %v2131, %v2123
    %v2620 = vpack.c.b16 %v2132, %v2124
    %v2621 = vpack.c.b16 %v2133, %v2125
    %v2622 = vpack.c.b16 %v2134, %v2126
    %v2623 = vpack.c.b16 %v2135, %v2127
    %v2624 = vpack.c.b16 %v2144, %v2136
    %v2625 = vpack.c.b16 %v2145, %v2137
    %v2626 = vpack.c.b16 %v2146, %v2138
    %v2627 = vpack.c.b16 %v2147, %v2139
    %v2628 = vpack.c.b16 %v2148, %v2140
    %v2629 = vpack.c.b16 %v2149, %v2141
    %v2630 = vpack.c.b16 %v2150, %v2142
    %v2631 = vpack.c.b16 %v2151, %v2143
    %v2632 = vpack.c.b16 %v2160, %v2152
    %v2633 = vpack.c.b16 %v2161, %v2153
    %v2634 = vpack.c.b16 %v2162, %v2154
    %v2635 = vpack.c.b16 %v2163, %v2155
    %v2636 = vpack.c.b16 %v2164, %v2156
    %v2637 = vpack.c.b16 %v2165, %v2157
    %v2638 = vpack.c.b16 %v2166, %v2158
    %v2639 = vpack.c.b16 %v2167, %v2159
    %v2640 = vpack.c.b16 %v2176, %v2168
    %v2641 = vpack.c.b16 %v2177, %v2169
    %v2642 = vpack.c.b16 %v2178, %v2170
    %v2643 = vpack.c.b16 %v2179, %v2171
    %v2644 = vpack.c.b16 %v2180, %v2172
    %v2645 = vpack.c.b16 %v2181, %v2173
    %v2646 = vpack.c.b16 %v2182, %v2174
    %v2647 = vpack.c.b16 %v2183, %v2175
    %v2648 = vpack.c.b16 %v2192, %v2184
    %v2649 = vpack.c.b16 %v2193, %v2185
    %v2650 = vpack.c.b16 %v2194, %v2186
    %v2651 = vpack.c.b16 %v2195, %v2187
    %v2652 = vpack.c.b16 %v2196, %v2188
    %v2653 = vpack.c.b16 %v2197, %v2189
    %v2654 = vpack.c.b16 %v2198, %v2190
    %v2655 = vpack.c.b16 %v2199, %v2191
    %v2656 = vpack.c.b16 %v2208, %v2200
    %v2657 = vpack.c.b16 %v2209, %v2201
    %v2658 = vpack.c.b16 %v2210, %v2202
    %v2659 = vpack.c.b16 %v2211, %v2203
    %v2660 = vpack.c.b16 %v2212, %v2204
    %v2661 = vpack.c.b16 %v2213, %v2205
    %v2662 = vpack.c.b16 %v2214, %v2206
    %v2663 = vpack.c.b16 %v2215, %v2207
    %v2664 = vpack.c.b16 %v2224, %v2216
    %v2665 = vpack.c.b16 %v2225, %v2217
    %v2666 = vpack.c.b16 %v2226, %v2218
    %v2667 = vpack.c.b16 %v2227, %v2219
    %v2668 = vpack.c.b16 %v2228, %v2220
    %v2669 = vpack.c.b16 %v2229, %v2221
    %v2670 = vpack.c.b16 %v2230, %v2222
    %v2671 = vpack.c.b16 %v2231, %v2223
    %v2672 = vpack.c.b16 %v2240, %v2232
    %v2673 = vpack.c.b16 %v2241, %v2233
    %v2674 = vpack.c.b16 %v2242, %v2234
    %v2675 = vpack.c.b16 %v2243, %v2235
    %v2676 = vpack.c.b16 %v2244, %v2236
    %v2677 = vpack.c.b16 %v2245, %v2237
    %v2678 = vpack.c.b16 %v2246, %v2238
    %v2679 = vpack.c.b16 %v2247, %v2239
    %v2680 = vpack.c.b16 %v2256, %v2248
    %v2681 = vpack.c.b16 %v2257, %v2249
    %v2682 = vpack.c.b16 %v2258, %v2250
    %v2683 = vpack.c.b16 %v2259, %v2251
    %v2684 = vpack.c.b16 %v2260, %v2252
    %v2685 = vpack.c.b16 %v2261, %v2253
    %v2686 = vpack.c.b16 %v2262, %v2254
    %v2687 = vpack.c.b16 %v2263, %v2255
    %v2688 = vpack.c.b16 %v2272, %v2264
    %v2689 = vpack.c.b16 %v2273, %v2265
    %v2690 = vpack.c.b16 %v2274, %v2266
    %v2691 = vpack.c.b16 %v2275, %v2267
    %v2692 = vpack.c.b16 %v2276, %v2268
    %v2693 = vpack.c.b16 %v2277, %v2269
    %v2694 = vpack.c.b16 %v2278, %v2270
    %v2695 = vpack.c.b16 %v2279, %v2271
    %v2696 = vpack.c.b16 %v2288, %v2280
    %v2697 = vpack.c.b16 %v2289, %v2281
    %v2698 = vpack.c.b16 %v2290, %v2282
    %v2699 = vpack.c.b16 %v2291, %v2283
    %v2700 = vpack.c.b16 %v2292, %v2284
    %v2701 = vpack.c.b16 %v2293, %v2285
    %v2702 = vpack.c.b16 %v2294, %v2286
    %v2703 = vpack.c.b16 %v2295, %v2287
    %v2704 = vpack.c.b16 %v2304, %v2296
    %v2705 = vpack.c.b16 %v2305, %v2297
    %v2706 = vpack.c.b16 %v2306, %v2298
    %v2707 = vpack.c.b16 %v2307, %v2299
    %v2708 = vpack.c.b16 %v2308, %v2300
    %v2709 = vpack.c.b16 %v2309, %v2301
    %v2710 = vpack.c.b16 %v2310, %v2302
    %v2711 = vpack.c.b16 %v2311, %v2303
    %v2712 = vpack.c.b16 %v2320, %v2312
    %v2713 = vpack.c.b16 %v2321, %v2313
    %v2714 = vpack.c.b16 %v2322, %v2314
    %v2715 = vpack.c.b16 %v2323, %v2315
    %v2716 = vpack.c.b16 %v2324, %v2316
    %v2717 = vpack.c.b16 %v2325, %v2317
    %v2718 = vpack.c.b16 %v2326, %v2318
    %v2719 = vpack.c.b16 %v2327, %v2319
    %v2720 = vpack.c.b16 %v2336, %v2328
    %v2721 = vpack.c.b16 %v2337, %v2329
    %v2722 = vpack.c.b16 %v2338, %v2330
    %v2723 = vpack.c.b16 %v2339, %v2331
    %v2724 = vpack.c.b16 %v2340, %v2332
    %v2725 = vpack.c.b16 %v2341, %v2333
    %v2726 = vpack.c.b16 %v2342, %v2334
    %v2727 = vpack.c.b16 %v2343, %v2335
    %v2728 = vpack.c.b16 %v2352, %v2344
    %v2729 = vpack.c.b16 %v2353, %v2345
    %v2730 = vpack.c.b16 %v2354, %v2346
    %v2731 = vpack.c.b16 %v2355, %v2347
    %v2732 = vpack.c.b16 %v2356, %v2348
    %v2733 = vpack.c.b16 %v2357, %v2349
    %v2734 = vpack.c.b16 %v2358, %v2350
    %v2735 = vpack.c.b16 %v2359, %v2351
    %v2736 = vpack.c.b16 %v2368, %v2360
    %v2737 = vpack.c.b16 %v2369, %v2361
    %v2738 = vpack.c.b16 %v2370, %v2362
    %v2739 = vpack.c.b16 %v2371, %v2363
    %v2740 = vpack.c.b16 %v2372, %v2364
    %v2741 = vpack.c.b16 %v2373, %v2365
    %v2742 = vpack.c.b16 %v2374, %v2366
    %v2743 = vpack.c.b16 %v2375, %v2367
    %v2744 = vpack.c.b16 %v2384, %v2376
    %v2745 = vpack.c.b16 %v2385, %v2377
    %v2746 = vpack.c.b16 %v2386, %v2378
    %v2747 = vpack.c.b16 %v2387, %v2379
    %v2748 = vpack.c.b16 %v2388, %v2380
    %v2749 = vpack.c.b16 %v2389, %v2381
    %v2750 = vpack.c.b16 %v2390, %v2382
    %v2751 = vpack.c.b16 %v2391, %v2383
    %v2752 = vpack.c.b16 %v2400, %v2392
    %v2753 = vpack.c.b16 %v2401, %v2393
    %v2754 = vpack.c.b16 %v2402, %v2394
    %v2755 = vpack.c.b16 %v2403, %v2395
    %v2756 = vpack.c.b16 %v2404, %v2396
    %v2757 = vpack.c.b16 %v2405, %v2397
    %v2758 = vpack.c.b16 %v2406, %v2398
    %v2759 = vpack.c.b16 %v2407, %v2399
    %v2760 = vpack.c.b16 %v2416, %v2408
    %v2761 = vpack.c.b16 %v2417, %v2409
    %v2762 = vpack.c.b16 %v2418, %v2410
    %v2763 = vpack.c.b16 %v2419, %v2411
    %v2764 = vpack.c.b16 %v2420, %v2412
    %v2765 = vpack.c.b16 %v2421, %v2413
    %v2766 = vpack.c.b16 %v2422, %v2414
    %v2767 = vpack.c.b16 %v2423, %v2415
    %v2768 = vpack.c.b16 %v2432, %v2424
    %v2769 = vpack.c.b16 %v2433, %v2425
    %v2770 = vpack.c.b16 %v2434, %v2426
    %v2771 = vpack.c.b16 %v2435, %v2427
    %v2772 = vpack.c.b16 %v2436, %v2428
    %v2773 = vpack.c.b16 %v2437, %v2429
    %v2774 = vpack.c.b16 %v2438, %v2430
    %v2775 = vpack.c.b16 %v2439, %v2431
    %v2776 = vpack.c.b16 %v2448, %v2440
    %v2777 = vpack.c.b16 %v2449, %v2441
    %v2778 = vpack.c.b16 %v2450, %v2442
    %v2779 = vpack.c.b16 %v2451, %v2443
    %v2780 = vpack.c.b16 %v2452, %v2444
    %v2781 = vpack.c.b16 %v2453, %v2445
    %v2782 = vpack.c.b16 %v2454, %v2446
    %v2783 = vpack.c.b16 %v2455, %v2447
    %v2784 = vpack.c.b16 %v2464, %v2456
    %v2785 = vpack.c.b16 %v2465, %v2457
    %v2786 = vpack.c.b16 %v2466, %v2458
    %v2787 = vpack.c.b16 %v2467, %v2459
    %v2788 = vpack.c.b16 %v2468, %v2460
    %v2789 = vpack.c.b16 %v2469, %v2461
    %v2790 = vpack.c.b16 %v2470, %v2462
    %v2791 = vpack.c.b16 %v2471, %v2463
    %v2792 = vpack.c.b16 %v2480, %v2472
    %v2793 = vpack.c.b16 %v2481, %v2473
    %v2794 = vpack.c.b16 %v2482, %v2474
    %v2795 = vpack.c.b16 %v2483, %v2475
    %v2796 = vpack.c.b16 %v2484, %v2476
    %v2797 = vpack.c.b16 %v2485, %v2477
    %v2798 = vpack.c.b16 %v2486, %v2478
    %v2799 = vpack.c.b16 %v2487, %v2479
    %v2800 = vpack.c.b16 %v2496, %v2488
    %v2801 = vpack.c.b16 %v2497, %v2489
    %v2802 = vpack.c.b16 %v2498, %v2490
    %v2803 = vpack.c.b16 %v2499, %v2491
    %v2804 = vpack.c.b16 %v2500, %v2492
    %v2805 = vpack.c.b16 %v2501, %v2493
    %v2806 = vpack.c.b16 %v2502, %v2494
    %v2807 = vpack.c.b16 %v2503, %v2495
    %v2808 = vpack.c.b16 %v2512, %v2504
    %v2809 = vpack.c.b16 %v2513, %v2505
    %v2810 = vpack.c.b16 %v2514, %v2506
    %v2811 = vpack.c.b16 %v2515, %v2507
    %v2812 = vpack.c.b16 %v2516, %v2508
    %v2813 = vpack.c.b16 %v2517, %v2509
    %v2814 = vpack.c.b16 %v2518, %v2510
    %v2815 = vpack.c.b16 %v2519, %v2511
    %v2816 = vpack.c.b16 %v2528, %v2520
    %v2817 = vpack.c.b16 %v2529, %v2521
    %v2818 = vpack.c.b16 %v2530, %v2522
    %v2819 = vpack.c.b16 %v2531, %v2523
    %v2820 = vpack.c.b16 %v2532, %v2524
    %v2821 = vpack.c.b16 %v2533, %v2525
    %v2822 = vpack.c.b16 %v2534, %v2526
    %v2823 = vpack.c.b16 %v2535, %v2527
    %v2824 = vpack.c.b16 %v2544, %v2536
    %v2825 = vpack.c.b16 %v2545, %v2537
    %v2826 = vpack.c.b16 %v2546, %v2538
    %v2827 = vpack.c.b16 %v2547, %v2539
    %v2828 = vpack.c.b16 %v2548, %v2540
    %v2829 = vpack.c.b16 %v2549, %v2541
    %v2830 = vpack.c.b16 %v2550, %v2542
    %v2831 = vpack.c.b16 %v2551, %v2543
    %v2832 = vpack.c.b16 %v2560, %v2552
    %v2833 = vpack.c.b16 %v2561, %v2553
    %v2834 = vpack.c.b16 %v2562, %v2554
    %v2835 = vpack.c.b16 %v2563, %v2555
    %v2836 = vpack.c.b16 %v2564, %v2556
    %v2837 = vpack.c.b16 %v2565, %v2557
    %v2838 = vpack.c.b16 %v2566, %v2558
    %v2839 = vpack.c.b16 %v2567, %v2559
    %v2840 = vpack.c.b16 %v2576, %v2568
    %v2841 = vpack.c.b16 %v2577, %v2569
    %v2842 = vpack.c.b16 %v2578, %v2570
    %v2843 = vpack.c.b16 %v2579, %v2571
    %v2844 = vpack.c.b16 %v2580, %v2572
    %v2845 = vpack.c.b16 %v2581, %v2573
    %v2846 = vpack.c.b16 %v2582, %v2574
    %v2847 = vpack.c.b16 %v2583, %v2575
    %v2848 = vpack.c.b16 %v2592, %v2584
    %v2849 = vpack.c.b16 %v2593, %v2585
    %v2850 = vpack.c.b16 %v2594, %v2586
    %v2851 = vpack.c.b16 %v2595, %v2587
    %v2852 = vpack.c.b16 %v2596, %v2588
    %v2853 = vpack.c.b16 %v2597, %v2589
    %v2854 = vpack.c.b16 %v2598, %v2590
    %v2855 = vpack.c.b16 %v2599, %v2591
    %3112 = vmatprep.subr.bf16.mxu0 %v2657
    %3113 = vmatpush1.bf16.msra.mxu0 %v2656
    %3114 = vmatprep.subr.bf16.mxu0 %v2649
    %3115 = vmatpush1.bf16.msra.mxu0 %v2648
    %3116 = vmatprep.subr.bf16.mxu0 %v2641
    %3117 = vmatpush1.bf16.msra.mxu0 %v2640
    %3118 = vmatprep.subr.bf16.mxu0 %v2633
    %3119 = vmatpush1.bf16.msra.mxu0 %v2632
    %3120 = vmatprep.subr.bf16.mxu0 %v2625
    %3121 = vmatpush1.bf16.msra.mxu0 %v2624
    %3122 = vmatprep.subr.bf16.mxu0 %v2617
    %3123 = vmatpush1.bf16.msra.mxu0 %v2616
    %3124 = vmatprep.subr.bf16.mxu0 %v2609
    %3125 = vmatpush1.bf16.msra.mxu0 %v2608
    %3126 = vmatprep.subr.bf16.mxu0 %v2601
    %3127 = vmatpush1.bf16.msra.mxu0 %v2600
    %3128 = vmatprep.subr.bf16.mxu0 %v2721
    %3129 = vmatpush2.bf16.msra.mxu0 %v2720
    %3130 = vmatprep.subr.bf16.mxu0 %v2713
    %3131 = vmatpush2.bf16.msra.mxu0 %v2712
    %3132 = vmatprep.subr.bf16.mxu0 %v2705
    %3133 = vmatpush2.bf16.msra.mxu0 %v2704
    %3134 = vmatprep.subr.bf16.mxu0 %v2697
    %3135 = vmatpush2.bf16.msra.mxu0 %v2696
    %3136 = vmatprep.subr.bf16.mxu0 %v2689
    %3137 = vmatpush2.bf16.msra.mxu0 %v2688
    %3138 = vmatprep.subr.bf16.mxu0 %v2681
    %3139 = vmatpush2.bf16.msra.mxu0 %v2680
    %3140 = vmatprep.subr.bf16.mxu0 %v2673
    %3141 = vmatpush2.bf16.msra.mxu0 %v2672
    %3142 = vmatprep.subr.bf16.mxu0 %v2665
    %3143 = vmatpush2.bf16.msra.mxu0 %v2664
    %3144 = vmatprep.mubr.bf16.mxu0 %v1531
    %3145 = vmatmul.mubr.bf16.gmra.mxu0 %v1530
    %v3146 = vpop.f32.mrf.mxu0
    %v3147 = vadd.f32 %v1795, %v3146
    %v3148 = vpop.f32.mrf.mxu0
    %v3149 = vadd.f32 %v1799, %v3148
    %v3150 = vpop.f32.mrf.mxu0
    %v3151 = vpop.f32.mrf.mxu0
    %3152 = vdwg.mxu0
    %3153 = vmatprep.subr.bf16.mxu0 %v2785
    %3154 = vmatpush1.bf16.msra.mxu0 %v2784
    %3155 = vmatprep.subr.bf16.mxu0 %v2777
    %3156 = vmatpush1.bf16.msra.mxu0 %v2776
    %3157 = vmatprep.subr.bf16.mxu0 %v2769
    %3158 = vmatpush1.bf16.msra.mxu0 %v2768
    %3159 = vmatprep.subr.bf16.mxu0 %v2761
    %3160 = vmatpush1.bf16.msra.mxu0 %v2760
    %3161 = vmatprep.subr.bf16.mxu0 %v2753
    %3162 = vmatpush1.bf16.msra.mxu0 %v2752
    %3163 = vmatprep.subr.bf16.mxu0 %v2745
    %3164 = vmatpush1.bf16.msra.mxu0 %v2744
    %3165 = vmatprep.subr.bf16.mxu0 %v2737
    %3166 = vmatpush1.bf16.msra.mxu0 %v2736
    %3167 = vmatprep.subr.bf16.mxu0 %v2729
    %3168 = vmatpush1.bf16.msra.mxu0 %v2728
    %3169 = vmatprep.subr.bf16.mxu0 %v2849
    %3170 = vmatpush2.bf16.msra.mxu0 %v2848
    %3171 = vmatprep.subr.bf16.mxu0 %v2841
    %3172 = vmatpush2.bf16.msra.mxu0 %v2840
    %3173 = vmatprep.subr.bf16.mxu0 %v2833
    %3174 = vmatpush2.bf16.msra.mxu0 %v2832
    %3175 = vmatprep.subr.bf16.mxu0 %v2825
    %3176 = vmatpush2.bf16.msra.mxu0 %v2824
    %3177 = vmatprep.subr.bf16.mxu0 %v2817
    %3178 = vmatpush2.bf16.msra.mxu0 %v2816
    %3179 = vmatprep.subr.bf16.mxu0 %v2809
    %3180 = vmatpush2.bf16.msra.mxu0 %v2808
    %3181 = vmatprep.subr.bf16.mxu0 %v2801
    %3182 = vmatpush2.bf16.msra.mxu0 %v2800
    %3183 = vmatprep.subr.bf16.mxu0 %v2793
    %3184 = vmatpush2.bf16.msra.mxu0 %v2792
    %3185 = vmatprep.mubr.bf16.mxu0 %v1533
    %3186 = vmatmul.mubr.bf16.gmra.mxu0 %v1532
    %v3187 = vpop.f32.mrf.mxu0
    %v3188 = vadd.f32 %v3147, %v3187
    %v3189 = vpop.f32.mrf.mxu0
    %v3190 = vadd.f32 %v3149, %v3189
    %v3191 = vpop.f32.mrf.mxu0
    %v3192 = vpop.f32.mrf.mxu0
    %3193 = vdwg.mxu0
    %3194 = vmatprep.subr.bf16.mxu0 %v2659
    %3195 = vmatpush1.bf16.msra.mxu0 %v2658
    %3196 = vmatprep.subr.bf16.mxu0 %v2651
    %3197 = vmatpush1.bf16.msra.mxu0 %v2650
    %3198 = vmatprep.subr.bf16.mxu0 %v2643
    %3199 = vmatpush1.bf16.msra.mxu0 %v2642
    %3200 = vmatprep.subr.bf16.mxu0 %v2635
    %3201 = vmatpush1.bf16.msra.mxu0 %v2634
    %3202 = vmatprep.subr.bf16.mxu0 %v2627
    %3203 = vmatpush1.bf16.msra.mxu0 %v2626
    %3204 = vmatprep.subr.bf16.mxu0 %v2619
    %3205 = vmatpush1.bf16.msra.mxu0 %v2618
    %3206 = vmatprep.subr.bf16.mxu0 %v2611
    %3207 = vmatpush1.bf16.msra.mxu0 %v2610
    %3208 = vmatprep.subr.bf16.mxu0 %v2603
    %3209 = vmatpush1.bf16.msra.mxu0 %v2602
    %3210 = vmatprep.subr.bf16.mxu0 %v2723
    %3211 = vmatpush2.bf16.msra.mxu0 %v2722
    %3212 = vmatprep.subr.bf16.mxu0 %v2715
    %3213 = vmatpush2.bf16.msra.mxu0 %v2714
    %3214 = vmatprep.subr.bf16.mxu0 %v2707
    %3215 = vmatpush2.bf16.msra.mxu0 %v2706
    %3216 = vmatprep.subr.bf16.mxu0 %v2699
    %3217 = vmatpush2.bf16.msra.mxu0 %v2698
    %3218 = vmatprep.subr.bf16.mxu0 %v2691
    %3219 = vmatpush2.bf16.msra.mxu0 %v2690
    %3220 = vmatprep.subr.bf16.mxu0 %v2683
    %3221 = vmatpush2.bf16.msra.mxu0 %v2682
    %3222 = vmatprep.subr.bf16.mxu0 %v2675
    %3223 = vmatpush2.bf16.msra.mxu0 %v2674
    %3224 = vmatprep.subr.bf16.mxu0 %v2667
    %3225 = vmatpush2.bf16.msra.mxu0 %v2666
    %3226 = vmatprep.mubr.bf16.mxu0 %v1531
    %3227 = vmatmul.mubr.bf16.gmra.mxu0 %v1530
    %v3228 = vpop.f32.mrf.mxu0
    %v3229 = vadd.f32 %v1803, %v3228
    %v3230 = vpop.f32.mrf.mxu0
    %v3231 = vadd.f32 %v1807, %v3230
    %v3232 = vpop.f32.mrf.mxu0
    %v3233 = vpop.f32.mrf.mxu0
    %3234 = vdwg.mxu0
    %3235 = vmatprep.subr.bf16.mxu0 %v2787
    %3236 = vmatpush1.bf16.msra.mxu0 %v2786
    %3237 = vmatprep.subr.bf16.mxu0 %v2779
    %3238 = vmatpush1.bf16.msra.mxu0 %v2778
    %3239 = vmatprep.subr.bf16.mxu0 %v2771
    %3240 = vmatpush1.bf16.msra.mxu0 %v2770
    %3241 = vmatprep.subr.bf16.mxu0 %v2763
    %3242 = vmatpush1.bf16.msra.mxu0 %v2762
    %3243 = vmatprep.subr.bf16.mxu0 %v2755
    %3244 = vmatpush1.bf16.msra.mxu0 %v2754
    %3245 = vmatprep.subr.bf16.mxu0 %v2747
    %3246 = vmatpush1.bf16.msra.mxu0 %v2746
    %3247 = vmatprep.subr.bf16.mxu0 %v2739
    %3248 = vmatpush1.bf16.msra.mxu0 %v2738
    %3249 = vmatprep.subr.bf16.mxu0 %v2731
    %3250 = vmatpush1.bf16.msra.mxu0 %v2730
    %3251 = vmatprep.subr.bf16.mxu0 %v2851
    %3252 = vmatpush2.bf16.msra.mxu0 %v2850
    %3253 = vmatprep.subr.bf16.mxu0 %v2843
    %3254 = vmatpush2.bf16.msra.mxu0 %v2842
    %3255 = vmatprep.subr.bf16.mxu0 %v2835
    %3256 = vmatpush2.bf16.msra.mxu0 %v2834
    %3257 = vmatprep.subr.bf16.mxu0 %v2827
    %3258 = vmatpush2.bf16.msra.mxu0 %v2826
    %3259 = vmatprep.subr.bf16.mxu0 %v2819
    %3260 = vmatpush2.bf16.msra.mxu0 %v2818
    %3261 = vmatprep.subr.bf16.mxu0 %v2811
    %3262 = vmatpush2.bf16.msra.mxu0 %v2810
    %3263 = vmatprep.subr.bf16.mxu0 %v2803
    %3264 = vmatpush2.bf16.msra.mxu0 %v2802
    %3265 = vmatprep.subr.bf16.mxu0 %v2795
    %3266 = vmatpush2.bf16.msra.mxu0 %v2794
    %3267 = vmatprep.mubr.bf16.mxu0 %v1533
    %3268 = vmatmul.mubr.bf16.gmra.mxu0 %v1532
    %v3269 = vpop.f32.mrf.mxu0
    %v3270 = vadd.f32 %v3229, %v3269
    %v3271 = vpop.f32.mrf.mxu0
    %v3272 = vadd.f32 %v3231, %v3271
    %v3273 = vpop.f32.mrf.mxu0
    %v3274 = vpop.f32.mrf.mxu0
    %3275 = vdwg.mxu0
    %3276 = vmatprep.subr.bf16.mxu0 %v2661
    %3277 = vmatpush1.bf16.msra.mxu0 %v2660
    %3278 = vmatprep.subr.bf16.mxu0 %v2653
    %3279 = vmatpush1.bf16.msra.mxu0 %v2652
    %3280 = vmatprep.subr.bf16.mxu0 %v2645
    %3281 = vmatpush1.bf16.msra.mxu0 %v2644
    %3282 = vmatprep.subr.bf16.mxu0 %v2637
    %3283 = vmatpush1.bf16.msra.mxu0 %v2636
    %3284 = vmatprep.subr.bf16.mxu0 %v2629
    %3285 = vmatpush1.bf16.msra.mxu0 %v2628
    %3286 = vmatprep.subr.bf16.mxu0 %v2621
    %3287 = vmatpush1.bf16.msra.mxu0 %v2620
    %3288 = vmatprep.subr.bf16.mxu0 %v2613
    %3289 = vmatpush1.bf16.msra.mxu0 %v2612
    %3290 = vmatprep.subr.bf16.mxu0 %v2605
    %3291 = vmatpush1.bf16.msra.mxu0 %v2604
    %3292 = vmatprep.subr.bf16.mxu0 %v2725
    %3293 = vmatpush2.bf16.msra.mxu0 %v2724
    %3294 = vmatprep.subr.bf16.mxu0 %v2717
    %3295 = vmatpush2.bf16.msra.mxu0 %v2716
    %3296 = vmatprep.subr.bf16.mxu0 %v2709
    %3297 = vmatpush2.bf16.msra.mxu0 %v2708
    %3298 = vmatprep.subr.bf16.mxu0 %v2701
    %3299 = vmatpush2.bf16.msra.mxu0 %v2700
    %3300 = vmatprep.subr.bf16.mxu0 %v2693
    %3301 = vmatpush2.bf16.msra.mxu0 %v2692
    %3302 = vmatprep.subr.bf16.mxu0 %v2685
    %3303 = vmatpush2.bf16.msra.mxu0 %v2684
    %3304 = vmatprep.subr.bf16.mxu0 %v2677
    %3305 = vmatpush2.bf16.msra.mxu0 %v2676
    %3306 = vmatprep.subr.bf16.mxu0 %v2669
    %3307 = vmatpush2.bf16.msra.mxu0 %v2668
    %3308 = vmatprep.mubr.bf16.mxu0 %v1531
    %3309 = vmatmul.mubr.bf16.gmra.mxu0 %v1530
    %v3310 = vpop.f32.mrf.mxu0
    %v3311 = vadd.f32 %v1811, %v3310
    %v3312 = vpop.f32.mrf.mxu0
    %v3313 = vadd.f32 %v1815, %v3312
    %v3314 = vpop.f32.mrf.mxu0
    %v3315 = vpop.f32.mrf.mxu0
    %3316 = vdwg.mxu0
    %3317 = vmatprep.subr.bf16.mxu0 %v2789
    %3318 = vmatpush1.bf16.msra.mxu0 %v2788
    %3319 = vmatprep.subr.bf16.mxu0 %v2781
    %3320 = vmatpush1.bf16.msra.mxu0 %v2780
    %3321 = vmatprep.subr.bf16.mxu0 %v2773
    %3322 = vmatpush1.bf16.msra.mxu0 %v2772
    %3323 = vmatprep.subr.bf16.mxu0 %v2765
    %3324 = vmatpush1.bf16.msra.mxu0 %v2764
    %3325 = vmatprep.subr.bf16.mxu0 %v2757
    %3326 = vmatpush1.bf16.msra.mxu0 %v2756
    %3327 = vmatprep.subr.bf16.mxu0 %v2749
    %3328 = vmatpush1.bf16.msra.mxu0 %v2748
    %3329 = vmatprep.subr.bf16.mxu0 %v2741
    %3330 = vmatpush1.bf16.msra.mxu0 %v2740
    %3331 = vmatprep.subr.bf16.mxu0 %v2733
    %3332 = vmatpush1.bf16.msra.mxu0 %v2732
    %3333 = vmatprep.subr.bf16.mxu0 %v2853
    %3334 = vmatpush2.bf16.msra.mxu0 %v2852
    %3335 = vmatprep.subr.bf16.mxu0 %v2845
    %3336 = vmatpush2.bf16.msra.mxu0 %v2844
    %3337 = vmatprep.subr.bf16.mxu0 %v2837
    %3338 = vmatpush2.bf16.msra.mxu0 %v2836
    %3339 = vmatprep.subr.bf16.mxu0 %v2829
    %3340 = vmatpush2.bf16.msra.mxu0 %v2828
    %3341 = vmatprep.subr.bf16.mxu0 %v2821
    %3342 = vmatpush2.bf16.msra.mxu0 %v2820
    %3343 = vmatprep.subr.bf16.mxu0 %v2813
    %3344 = vmatpush2.bf16.msra.mxu0 %v2812
    %3345 = vmatprep.subr.bf16.mxu0 %v2805
    %3346 = vmatpush2.bf16.msra.mxu0 %v2804
    %3347 = vmatprep.subr.bf16.mxu0 %v2797
    %3348 = vmatpush2.bf16.msra.mxu0 %v2796
    %3349 = vmatprep.mubr.bf16.mxu0 %v1533
    %3350 = vmatmul.mubr.bf16.gmra.mxu0 %v1532
    %v3351 = vpop.f32.mrf.mxu0
    %v3352 = vadd.f32 %v3311, %v3351
    %v3353 = vpop.f32.mrf.mxu0
    %v3354 = vadd.f32 %v3313, %v3353
    %v3355 = vpop.f32.mrf.mxu0
    %v3356 = vpop.f32.mrf.mxu0
    %3357 = vdwg.mxu0
    %3358 = vmatprep.subr.bf16.mxu0 %v2663
    %3359 = vmatpush1.bf16.msra.mxu0 %v2662
    %3360 = vmatprep.subr.bf16.mxu0 %v2655
    %3361 = vmatpush1.bf16.msra.mxu0 %v2654
    %3362 = vmatprep.subr.bf16.mxu0 %v2647
    %3363 = vmatpush1.bf16.msra.mxu0 %v2646
    %3364 = vmatprep.subr.bf16.mxu0 %v2639
    %3365 = vmatpush1.bf16.msra.mxu0 %v2638
    %3366 = vmatprep.subr.bf16.mxu0 %v2631
    %3367 = vmatpush1.bf16.msra.mxu0 %v2630
    %3368 = vmatprep.subr.bf16.mxu0 %v2623
    %3369 = vmatpush1.bf16.msra.mxu0 %v2622
    %3370 = vmatprep.subr.bf16.mxu0 %v2615
    %3371 = vmatpush1.bf16.msra.mxu0 %v2614
    %3372 = vmatprep.subr.bf16.mxu0 %v2607
    %3373 = vmatpush1.bf16.msra.mxu0 %v2606
    %3374 = vmatprep.subr.bf16.mxu0 %v2727
    %3375 = vmatpush2.bf16.msra.mxu0 %v2726
    %3376 = vmatprep.subr.bf16.mxu0 %v2719
    %3377 = vmatpush2.bf16.msra.mxu0 %v2718
    %3378 = vmatprep.subr.bf16.mxu0 %v2711
    %3379 = vmatpush2.bf16.msra.mxu0 %v2710
    %3380 = vmatprep.subr.bf16.mxu0 %v2703
    %3381 = vmatpush2.bf16.msra.mxu0 %v2702
    %3382 = vmatprep.subr.bf16.mxu0 %v2695
    %3383 = vmatpush2.bf16.msra.mxu0 %v2694
    %3384 = vmatprep.subr.bf16.mxu0 %v2687
    %3385 = vmatpush2.bf16.msra.mxu0 %v2686
    %3386 = vmatprep.subr.bf16.mxu0 %v2679
    %3387 = vmatpush2.bf16.msra.mxu0 %v2678
    %3388 = vmatprep.subr.bf16.mxu0 %v2671
    %3389 = vmatpush2.bf16.msra.mxu0 %v2670
    %3390 = vmatprep.mubr.bf16.mxu0 %v1531
    %3391 = vmatmul.mubr.bf16.gmra.mxu0 %v1530
    %v3392 = vpop.f32.mrf.mxu0
    %v3393 = vadd.f32 %v1819, %v3392
    %v3394 = vpop.f32.mrf.mxu0
    %v3395 = vadd.f32 %v1823, %v3394
    %v3396 = vpop.f32.mrf.mxu0
    %v3397 = vpop.f32.mrf.mxu0
    %3398 = vdwg.mxu0
    %3399 = vmatprep.subr.bf16.mxu0 %v2791
    %3400 = vmatpush1.bf16.msra.mxu0 %v2790
    %3401 = vmatprep.subr.bf16.mxu0 %v2783
    %3402 = vmatpush1.bf16.msra.mxu0 %v2782
    %3403 = vmatprep.subr.bf16.mxu0 %v2775
    %3404 = vmatpush1.bf16.msra.mxu0 %v2774
    %3405 = vmatprep.subr.bf16.mxu0 %v2767
    %3406 = vmatpush1.bf16.msra.mxu0 %v2766
    %3407 = vmatprep.subr.bf16.mxu0 %v2759
    %3408 = vmatpush1.bf16.msra.mxu0 %v2758
    %3409 = vmatprep.subr.bf16.mxu0 %v2751
    %3410 = vmatpush1.bf16.msra.mxu0 %v2750
    %3411 = vmatprep.subr.bf16.mxu0 %v2743
    %3412 = vmatpush1.bf16.msra.mxu0 %v2742
    %3413 = vmatprep.subr.bf16.mxu0 %v2735
    %3414 = vmatpush1.bf16.msra.mxu0 %v2734
    %3415 = vmatprep.subr.bf16.mxu0 %v2855
    %3416 = vmatpush2.bf16.msra.mxu0 %v2854
    %3417 = vmatprep.subr.bf16.mxu0 %v2847
    %3418 = vmatpush2.bf16.msra.mxu0 %v2846
    %3419 = vmatprep.subr.bf16.mxu0 %v2839
    %3420 = vmatpush2.bf16.msra.mxu0 %v2838
    %3421 = vmatprep.subr.bf16.mxu0 %v2831
    %3422 = vmatpush2.bf16.msra.mxu0 %v2830
    %3423 = vmatprep.subr.bf16.mxu0 %v2823
    %3424 = vmatpush2.bf16.msra.mxu0 %v2822
    %3425 = vmatprep.subr.bf16.mxu0 %v2815
    %3426 = vmatpush2.bf16.msra.mxu0 %v2814
    %3427 = vmatprep.subr.bf16.mxu0 %v2807
    %3428 = vmatpush2.bf16.msra.mxu0 %v2806
    %3429 = vmatprep.subr.bf16.mxu0 %v2799
    %3430 = vmatpush2.bf16.msra.mxu0 %v2798
    %3431 = vmatprep.mubr.bf16.mxu0 %v1533
    %3432 = vmatmul.mubr.bf16.gmra.mxu0 %v1532
    %v3433 = vpop.f32.mrf.mxu0
    %v3434 = vadd.f32 %v3393, %v3433
    %v3435 = vpop.f32.mrf.mxu0
    %v3436 = vadd.f32 %v3395, %v3435
    %v3437 = vpop.f32.mrf.mxu0
    %v3438 = vpop.f32.mrf.mxu0
    %3439 = vdwg.mxu0
    %v3440 = vmax.f32 %v3188, 0.0
    %v3441 = vmax.f32 %v3190, 0.0
    %v3442 = vmax.f32 %v3270, 0.0
    %v3443 = vmax.f32 %v3272, 0.0
    %v3444 = vmax.f32 %v3352, 0.0
    %v3445 = vmax.f32 %v3354, 0.0
    %v3446 = vmax.f32 %v3434, 0.0
    %v3447 = vmax.f32 %v3436, 0.0
    %v3448 = vpack.c.bf16 %v3440, %v3440
    %v3449 = vpack.c.bf16 %v3441, %v3441
    %v3450 = vpack.c.bf16 %v3442, %v3442
    %v3451 = vpack.c.bf16 %v3443, %v3443
    %v3452 = vpack.c.bf16 %v3444, %v3444
    %v3453 = vpack.c.bf16 %v3445, %v3445
    %v3454 = vpack.c.bf16 %v3446, %v3446
    %v3455 = vpack.c.bf16 %v3447, %v3447
    %v3456 = vld [vmem:[#allocation17] sm:$0xf]
    %v3457 = vld [vmem:[#allocation17 + $0x4] sm:$0xf]
    %v3458 = vld [vmem:[#allocation17 + $0x8] sm:$0xf]
    %v3459 = vld [vmem:[#allocation17 + $0xc] sm:$0xf]
    %v3460 = vld [vmem:[#allocation17 + $0x10] sm:$0xf]
    %v3461 = vld [vmem:[#allocation17 + $0x14] sm:$0xf]
    %v3462 = vld [vmem:[#allocation17 + $0x18] sm:$0xf]
    %v3463 = vld [vmem:[#allocation17 + $0x1c] sm:$0xf]
    %v3464 = vld [vmem:[#allocation17 + $0x20] sm:$0xf]
    %v3465 = vld [vmem:[#allocation17 + $0x24] sm:$0xf]
    %v3466 = vld [vmem:[#allocation17 + $0x28] sm:$0xf]
    %v3467 = vld [vmem:[#allocation17 + $0x2c] sm:$0xf]
    %v3468 = vld [vmem:[#allocation17 + $0x30] sm:$0xf]
    %v3469 = vld [vmem:[#allocation17 + $0x34] sm:$0xf]
    %v3470 = vld [vmem:[#allocation17 + $0x38] sm:$0xf]
    %v3471 = vld [vmem:[#allocation17 + $0x3c] sm:$0xf]
    %v3472 = vld [vmem:[#allocation17 + $0x40] sm:$0xf]
    %v3473 = vld [vmem:[#allocation17 + $0x44] sm:$0xf]
    %v3474 = vld [vmem:[#allocation17 + $0x48] sm:$0xf]
    %v3475 = vld [vmem:[#allocation17 + $0x4c] sm:$0xf]
    %v3476 = vld [vmem:[#allocation17 + $0x50] sm:$0xf]
    %v3477 = vld [vmem:[#allocation17 + $0x54] sm:$0xf]
    %v3478 = vld [vmem:[#allocation17 + $0x58] sm:$0xf]
    %v3479 = vld [vmem:[#allocation17 + $0x5c] sm:$0xf]
    %v3480 = vld [vmem:[#allocation17 + $0x60] sm:$0xf]
    %v3481 = vld [vmem:[#allocation17 + $0x64] sm:$0xf]
    %v3482 = vld [vmem:[#allocation17 + $0x68] sm:$0xf]
    %v3483 = vld [vmem:[#allocation17 + $0x6c] sm:$0xf]
    %v3484 = vld [vmem:[#allocation17 + $0x70] sm:$0xf]
    %v3485 = vld [vmem:[#allocation17 + $0x74] sm:$0xf]
    %v3486 = vld [vmem:[#allocation17 + $0x78] sm:$0xf]
    %v3487 = vld [vmem:[#allocation17 + $0x7c] sm:$0xf]
    %v3488 = vld [vmem:[#allocation17 + $0x80] sm:$0xf]
    %v3489 = vld [vmem:[#allocation17 + $0x84] sm:$0xf]
    %v3490 = vld [vmem:[#allocation17 + $0x88] sm:$0xf]
    %v3491 = vld [vmem:[#allocation17 + $0x8c] sm:$0xf]
    %v3492 = vld [vmem:[#allocation17 + $0x90] sm:$0xf]
    %v3493 = vld [vmem:[#allocation17 + $0x94] sm:$0xf]
    %v3494 = vld [vmem:[#allocation17 + $0x98] sm:$0xf]
    %v3495 = vld [vmem:[#allocation17 + $0x9c] sm:$0xf]
    %v3496 = vld [vmem:[#allocation17 + $0xa0] sm:$0xf]
    %v3497 = vld [vmem:[#allocation17 + $0xa4] sm:$0xf]
    %v3498 = vld [vmem:[#allocation17 + $0xa8] sm:$0xf]
    %v3499 = vld [vmem:[#allocation17 + $0xac] sm:$0xf]
    %v3500 = vld [vmem:[#allocation17 + $0xb0] sm:$0xf]
    %v3501 = vld [vmem:[#allocation17 + $0xb4] sm:$0xf]
    %v3502 = vld [vmem:[#allocation17 + $0xb8] sm:$0xf]
    %v3503 = vld [vmem:[#allocation17 + $0xbc] sm:$0xf]
    %v3504 = vld [vmem:[#allocation17 + $0xc0] sm:$0xf]
    %v3505 = vld [vmem:[#allocation17 + $0xc4] sm:$0xf]
    %v3506 = vld [vmem:[#allocation17 + $0xc8] sm:$0xf]
    %v3507 = vld [vmem:[#allocation17 + $0xcc] sm:$0xf]
    %v3508 = vld [vmem:[#allocation17 + $0xd0] sm:$0xf]
    %v3509 = vld [vmem:[#allocation17 + $0xd4] sm:$0xf]
    %v3510 = vld [vmem:[#allocation17 + $0xd8] sm:$0xf]
    %v3511 = vld [vmem:[#allocation17 + $0xdc] sm:$0xf]
    %v3512 = vld [vmem:[#allocation17 + $0xe0] sm:$0xf]
    %v3513 = vld [vmem:[#allocation17 + $0xe4] sm:$0xf]
    %v3514 = vld [vmem:[#allocation17 + $0xe8] sm:$0xf]
    %v3515 = vld [vmem:[#allocation17 + $0xec] sm:$0xf]
    %v3516 = vld [vmem:[#allocation17 + $0xf0] sm:$0xf]
    %v3517 = vld [vmem:[#allocation17 + $0xf4] sm:$0xf]
    %v3518 = vld [vmem:[#allocation17 + $0xf8] sm:$0xf]
    %v3519 = vld [vmem:[#allocation17 + $0xfc] sm:$0xf]
    %v3520 = vld [vmem:[#allocation17 + $0x100] sm:$0xf]
    %v3521 = vld [vmem:[#allocation17 + $0x104] sm:$0xf]
    %v3522 = vld [vmem:[#allocation17 + $0x108] sm:$0xf]
    %v3523 = vld [vmem:[#allocation17 + $0x10c] sm:$0xf]
    %v3524 = vld [vmem:[#allocation17 + $0x110] sm:$0xf]
    %v3525 = vld [vmem:[#allocation17 + $0x114] sm:$0xf]
    %v3526 = vld [vmem:[#allocation17 + $0x118] sm:$0xf]
    %v3527 = vld [vmem:[#allocation17 + $0x11c] sm:$0xf]
    %v3528 = vld [vmem:[#allocation17 + $0x120] sm:$0xf]
    %v3529 = vld [vmem:[#allocation17 + $0x124] sm:$0xf]
    %v3530 = vld [vmem:[#allocation17 + $0x128] sm:$0xf]
    %v3531 = vld [vmem:[#allocation17 + $0x12c] sm:$0xf]
    %v3532 = vld [vmem:[#allocation17 + $0x130] sm:$0xf]
    %v3533 = vld [vmem:[#allocation17 + $0x134] sm:$0xf]
    %v3534 = vld [vmem:[#allocation17 + $0x138] sm:$0xf]
    %v3535 = vld [vmem:[#allocation17 + $0x13c] sm:$0xf]
    %v3536 = vld [vmem:[#allocation17 + $0x140] sm:$0xf]
    %v3537 = vld [vmem:[#allocation17 + $0x144] sm:$0xf]
    %v3538 = vld [vmem:[#allocation17 + $0x148] sm:$0xf]
    %v3539 = vld [vmem:[#allocation17 + $0x14c] sm:$0xf]
    %v3540 = vld [vmem:[#allocation17 + $0x150] sm:$0xf]
    %v3541 = vld [vmem:[#allocation17 + $0x154] sm:$0xf]
    %v3542 = vld [vmem:[#allocation17 + $0x158] sm:$0xf]
    %v3543 = vld [vmem:[#allocation17 + $0x15c] sm:$0xf]
    %v3544 = vld [vmem:[#allocation17 + $0x160] sm:$0xf]
    %v3545 = vld [vmem:[#allocation17 + $0x164] sm:$0xf]
    %v3546 = vld [vmem:[#allocation17 + $0x168] sm:$0xf]
    %v3547 = vld [vmem:[#allocation17 + $0x16c] sm:$0xf]
    %v3548 = vld [vmem:[#allocation17 + $0x170] sm:$0xf]
    %v3549 = vld [vmem:[#allocation17 + $0x174] sm:$0xf]
    %v3550 = vld [vmem:[#allocation17 + $0x178] sm:$0xf]
    %v3551 = vld [vmem:[#allocation17 + $0x17c] sm:$0xf]
    %v3552 = vld [vmem:[#allocation17 + $0x180] sm:$0xf]
    %v3553 = vld [vmem:[#allocation17 + $0x184] sm:$0xf]
    %v3554 = vld [vmem:[#allocation17 + $0x188] sm:$0xf]
    %v3555 = vld [vmem:[#allocation17 + $0x18c] sm:$0xf]
    %v3556 = vld [vmem:[#allocation17 + $0x190] sm:$0xf]
    %v3557 = vld [vmem:[#allocation17 + $0x194] sm:$0xf]
    %v3558 = vld [vmem:[#allocation17 + $0x198] sm:$0xf]
    %v3559 = vld [vmem:[#allocation17 + $0x19c] sm:$0xf]
    %v3560 = vld [vmem:[#allocation17 + $0x1a0] sm:$0xf]
    %v3561 = vld [vmem:[#allocation17 + $0x1a4] sm:$0xf]
    %v3562 = vld [vmem:[#allocation17 + $0x1a8] sm:$0xf]
    %v3563 = vld [vmem:[#allocation17 + $0x1ac] sm:$0xf]
    %v3564 = vld [vmem:[#allocation17 + $0x1b0] sm:$0xf]
    %v3565 = vld [vmem:[#allocation17 + $0x1b4] sm:$0xf]
    %v3566 = vld [vmem:[#allocation17 + $0x1b8] sm:$0xf]
    %v3567 = vld [vmem:[#allocation17 + $0x1bc] sm:$0xf]
    %v3568 = vld [vmem:[#allocation17 + $0x1c0] sm:$0xf]
    %v3569 = vld [vmem:[#allocation17 + $0x1c4] sm:$0xf]
    %v3570 = vld [vmem:[#allocation17 + $0x1c8] sm:$0xf]
    %v3571 = vld [vmem:[#allocation17 + $0x1cc] sm:$0xf]
    %v3572 = vld [vmem:[#allocation17 + $0x1d0] sm:$0xf]
    %v3573 = vld [vmem:[#allocation17 + $0x1d4] sm:$0xf]
    %v3574 = vld [vmem:[#allocation17 + $0x1d8] sm:$0xf]
    %v3575 = vld [vmem:[#allocation17 + $0x1dc] sm:$0xf]
    %v3576 = vld [vmem:[#allocation17 + $0x1e0] sm:$0xf]
    %v3577 = vld [vmem:[#allocation17 + $0x1e4] sm:$0xf]
    %v3578 = vld [vmem:[#allocation17 + $0x1e8] sm:$0xf]
    %v3579 = vld [vmem:[#allocation17 + $0x1ec] sm:$0xf]
    %v3580 = vld [vmem:[#allocation17 + $0x1f0] sm:$0xf]
    %v3581 = vld [vmem:[#allocation17 + $0x1f4] sm:$0xf]
    %v3582 = vld [vmem:[#allocation17 + $0x1f8] sm:$0xf]
    %v3583 = vld [vmem:[#allocation17 + $0x1fc] sm:$0xf]
    %v3584 = vld [vmem:[%s20] sm:$0x1]
    %v3586 = vlaneseq
    %v3587 = vshrl.u32 %v3586, 7
    %v3588 = vsub.s32 0, %v3587
    %v3589 = vrot.slane %v3584, %v3588
    %v3719 = vunpack.c.l.b16 %v3456
    %v3720 = vunpack.c.l.b16 %v3457
    %v3721 = vunpack.c.l.b16 %v3458
    %v3722 = vunpack.c.l.b16 %v3459
    %v3723 = vunpack.c.l.b16 %v3460
    %v3724 = vunpack.c.l.b16 %v3461
    %v3725 = vunpack.c.l.b16 %v3462
    %v3726 = vunpack.c.l.b16 %v3463
    %v3727 = vunpack.c.l.b16 %v3464
    %v3728 = vunpack.c.l.b16 %v3465
    %v3729 = vunpack.c.l.b16 %v3466
    %v3730 = vunpack.c.l.b16 %v3467
    %v3731 = vunpack.c.l.b16 %v3468
    %v3732 = vunpack.c.l.b16 %v3469
    %v3733 = vunpack.c.l.b16 %v3470
    %v3734 = vunpack.c.l.b16 %v3471
    %v3735 = vunpack.c.l.b16 %v3472
    %v3736 = vunpack.c.l.b16 %v3473
    %v3737 = vunpack.c.l.b16 %v3474
    %v3738 = vunpack.c.l.b16 %v3475
    %v3739 = vunpack.c.l.b16 %v3476
    %v3740 = vunpack.c.l.b16 %v3477
    %v3741 = vunpack.c.l.b16 %v3478
    %v3742 = vunpack.c.l.b16 %v3479
    %v3743 = vunpack.c.l.b16 %v3480
    %v3744 = vunpack.c.l.b16 %v3481
    %v3745 = vunpack.c.l.b16 %v3482
    %v3746 = vunpack.c.l.b16 %v3483
    %v3747 = vunpack.c.l.b16 %v3484
    %v3748 = vunpack.c.l.b16 %v3485
    %v3749 = vunpack.c.l.b16 %v3486
    %v3750 = vunpack.c.l.b16 %v3487
    %v3751 = vunpack.c.l.b16 %v3488
    %v3752 = vunpack.c.l.b16 %v3489
    %v3753 = vunpack.c.l.b16 %v3490
    %v3754 = vunpack.c.l.b16 %v3491
    %v3755 = vunpack.c.l.b16 %v3492
    %v3756 = vunpack.c.l.b16 %v3493
    %v3757 = vunpack.c.l.b16 %v3494
    %v3758 = vunpack.c.l.b16 %v3495
    %v3759 = vunpack.c.l.b16 %v3496
    %v3760 = vunpack.c.l.b16 %v3497
    %v3761 = vunpack.c.l.b16 %v3498
    %v3762 = vunpack.c.l.b16 %v3499
    %v3763 = vunpack.c.l.b16 %v3500
    %v3764 = vunpack.c.l.b16 %v3501
    %v3765 = vunpack.c.l.b16 %v3502
    %v3766 = vunpack.c.l.b16 %v3503
    %v3767 = vunpack.c.l.b16 %v3504
    %v3768 = vunpack.c.l.b16 %v3505
    %v3769 = vunpack.c.l.b16 %v3506
    %v3770 = vunpack.c.l.b16 %v3507
    %v3771 = vunpack.c.l.b16 %v3508
    %v3772 = vunpack.c.l.b16 %v3509
    %v3773 = vunpack.c.l.b16 %v3510
    %v3774 = vunpack.c.l.b16 %v3511
    %v3775 = vunpack.c.l.b16 %v3512
    %v3776 = vunpack.c.l.b16 %v3513
    %v3777 = vunpack.c.l.b16 %v3514
    %v3778 = vunpack.c.l.b16 %v3515
    %v3779 = vunpack.c.l.b16 %v3516
    %v3780 = vunpack.c.l.b16 %v3517
    %v3781 = vunpack.c.l.b16 %v3518
    %v3782 = vunpack.c.l.b16 %v3519
    %v3783 = vunpack.c.l.b16 %v3520
    %v3784 = vunpack.c.l.b16 %v3521
    %v3785 = vunpack.c.l.b16 %v3522
    %v3786 = vunpack.c.l.b16 %v3523
    %v3787 = vunpack.c.l.b16 %v3524
    %v3788 = vunpack.c.l.b16 %v3525
    %v3789 = vunpack.c.l.b16 %v3526
    %v3790 = vunpack.c.l.b16 %v3527
    %v3791 = vunpack.c.l.b16 %v3528
    %v3792 = vunpack.c.l.b16 %v3529
    %v3793 = vunpack.c.l.b16 %v3530
    %v3794 = vunpack.c.l.b16 %v3531
    %v3795 = vunpack.c.l.b16 %v3532
    %v3796 = vunpack.c.l.b16 %v3533
    %v3797 = vunpack.c.l.b16 %v3534
    %v3798 = vunpack.c.l.b16 %v3535
    %v3799 = vunpack.c.l.b16 %v3536
    %v3800 = vunpack.c.l.b16 %v3537
    %v3801 = vunpack.c.l.b16 %v3538
    %v3802 = vunpack.c.l.b16 %v3539
    %v3803 = vunpack.c.l.b16 %v3540
    %v3804 = vunpack.c.l.b16 %v3541
    %v3805 = vunpack.c.l.b16 %v3542
    %v3806 = vunpack.c.l.b16 %v3543
    %v3807 = vunpack.c.l.b16 %v3544
    %v3808 = vunpack.c.l.b16 %v3545
    %v3809 = vunpack.c.l.b16 %v3546
    %v3810 = vunpack.c.l.b16 %v3547
    %v3811 = vunpack.c.l.b16 %v3548
    %v3812 = vunpack.c.l.b16 %v3549
    %v3813 = vunpack.c.l.b16 %v3550
    %v3814 = vunpack.c.l.b16 %v3551
    %v3815 = vunpack.c.l.b16 %v3552
    %v3816 = vunpack.c.l.b16 %v3553
    %v3817 = vunpack.c.l.b16 %v3554
    %v3818 = vunpack.c.l.b16 %v3555
    %v3819 = vunpack.c.l.b16 %v3556
    %v3820 = vunpack.c.l.b16 %v3557
    %v3821 = vunpack.c.l.b16 %v3558
    %v3822 = vunpack.c.l.b16 %v3559
    %v3823 = vunpack.c.l.b16 %v3560
    %v3824 = vunpack.c.l.b16 %v3561
    %v3825 = vunpack.c.l.b16 %v3562
    %v3826 = vunpack.c.l.b16 %v3563
    %v3827 = vunpack.c.l.b16 %v3564
    %v3828 = vunpack.c.l.b16 %v3565
    %v3829 = vunpack.c.l.b16 %v3566
    %v3830 = vunpack.c.l.b16 %v3567
    %v3831 = vunpack.c.l.b16 %v3568
    %v3832 = vunpack.c.l.b16 %v3569
    %v3833 = vunpack.c.l.b16 %v3570
    %v3834 = vunpack.c.l.b16 %v3571
    %v3835 = vunpack.c.l.b16 %v3572
    %v3836 = vunpack.c.l.b16 %v3573
    %v3837 = vunpack.c.l.b16 %v3574
    %v3838 = vunpack.c.l.b16 %v3575
    %v3839 = vunpack.c.l.b16 %v3576
    %v3840 = vunpack.c.l.b16 %v3577
    %v3841 = vunpack.c.l.b16 %v3578
    %v3842 = vunpack.c.l.b16 %v3579
    %v3843 = vunpack.c.l.b16 %v3580
    %v3844 = vunpack.c.l.b16 %v3581
    %v3845 = vunpack.c.l.b16 %v3582
    %v3846 = vunpack.c.l.b16 %v3583
    %v3847 = vpack.c.b16 %v3720, %v3719
    %v3848 = vpack.c.b16 %v3722, %v3721
    %v3849 = vpack.c.b16 %v3724, %v3723
    %v3850 = vpack.c.b16 %v3726, %v3725
    %v3851 = vpack.c.b16 %v3728, %v3727
    %v3852 = vpack.c.b16 %v3730, %v3729
    %v3853 = vpack.c.b16 %v3732, %v3731
    %v3854 = vpack.c.b16 %v3734, %v3733
    %v3855 = vpack.c.b16 %v3736, %v3735
    %v3856 = vpack.c.b16 %v3738, %v3737
    %v3857 = vpack.c.b16 %v3740, %v3739
    %v3858 = vpack.c.b16 %v3742, %v3741
    %v3859 = vpack.c.b16 %v3744, %v3743
    %v3860 = vpack.c.b16 %v3746, %v3745
    %v3861 = vpack.c.b16 %v3748, %v3747
    %v3862 = vpack.c.b16 %v3750, %v3749
    %v3863 = vpack.c.b16 %v3752, %v3751
    %v3864 = vpack.c.b16 %v3754, %v3753
    %v3865 = vpack.c.b16 %v3756, %v3755
    %v3866 = vpack.c.b16 %v3758, %v3757
    %v3867 = vpack.c.b16 %v3760, %v3759
    %v3868 = vpack.c.b16 %v3762, %v3761
    %v3869 = vpack.c.b16 %v3764, %v3763
    %v3870 = vpack.c.b16 %v3766, %v3765
    %v3871 = vpack.c.b16 %v3768, %v3767
    %v3872 = vpack.c.b16 %v3770, %v3769
    %v3873 = vpack.c.b16 %v3772, %v3771
    %v3874 = vpack.c.b16 %v3774, %v3773
    %v3875 = vpack.c.b16 %v3776, %v3775
    %v3876 = vpack.c.b16 %v3778, %v3777
    %v3877 = vpack.c.b16 %v3780, %v3779
    %v3878 = vpack.c.b16 %v3782, %v3781
    %v3879 = vpack.c.b16 %v3784, %v3783
    %v3880 = vpack.c.b16 %v3786, %v3785
    %v3881 = vpack.c.b16 %v3788, %v3787
    %v3882 = vpack.c.b16 %v3790, %v3789
    %v3883 = vpack.c.b16 %v3792, %v3791
    %v3884 = vpack.c.b16 %v3794, %v3793
    %v3885 = vpack.c.b16 %v3796, %v3795
    %v3886 = vpack.c.b16 %v3798, %v3797
    %v3887 = vpack.c.b16 %v3800, %v3799
    %v3888 = vpack.c.b16 %v3802, %v3801
    %v3889 = vpack.c.b16 %v3804, %v3803
    %v3890 = vpack.c.b16 %v3806, %v3805
    %v3891 = vpack.c.b16 %v3808, %v3807
    %v3892 = vpack.c.b16 %v3810, %v3809
    %v3893 = vpack.c.b16 %v3812, %v3811
    %v3894 = vpack.c.b16 %v3814, %v3813
    %v3895 = vpack.c.b16 %v3816, %v3815
    %v3896 = vpack.c.b16 %v3818, %v3817
    %v3897 = vpack.c.b16 %v3820, %v3819
    %v3898 = vpack.c.b16 %v3822, %v3821
    %v3899 = vpack.c.b16 %v3824, %v3823
    %v3900 = vpack.c.b16 %v3826, %v3825
    %v3901 = vpack.c.b16 %v3828, %v3827
    %v3902 = vpack.c.b16 %v3830, %v3829
    %v3903 = vpack.c.b16 %v3832, %v3831
    %v3904 = vpack.c.b16 %v3834, %v3833
    %v3905 = vpack.c.b16 %v3836, %v3835
    %v3906 = vpack.c.b16 %v3838, %v3837
    %v3907 = vpack.c.b16 %v3840, %v3839
    %v3908 = vpack.c.b16 %v3842, %v3841
    %v3909 = vpack.c.b16 %v3844, %v3843
    %v3910 = vpack.c.b16 %v3846, %v3845
    %3975 = vmatprep.subr.bf16.mxu0 0
    %3976 = vmatpush1.bf16.msra.mxu0 %v3854
    %3977 = vmatprep.subr.bf16.mxu0 0
    %3978 = vmatpush1.bf16.msra.mxu0 %v3853
    %3979 = vmatprep.subr.bf16.mxu0 0
    %3980 = vmatpush1.bf16.msra.mxu0 %v3852
    %3981 = vmatprep.subr.bf16.mxu0 0
    %3982 = vmatpush1.bf16.msra.mxu0 %v3851
    %3983 = vmatprep.subr.bf16.mxu0 0
    %3984 = vmatpush1.bf16.msra.mxu0 %v3850
    %3985 = vmatprep.subr.bf16.mxu0 0
    %3986 = vmatpush1.bf16.msra.mxu0 %v3849
    %3987 = vmatprep.subr.bf16.mxu0 0
    %3988 = vmatpush1.bf16.msra.mxu0 %v3848
    %3989 = vmatprep.subr.bf16.mxu0 0
    %3990 = vmatpush1.bf16.msra.mxu0 %v3847
    %3991 = vmatprep.subr.bf16.mxu0 0
    %3992 = vmatpush2.bf16.msra.mxu0 %v3862
    %3993 = vmatprep.subr.bf16.mxu0 0
    %3994 = vmatpush2.bf16.msra.mxu0 %v3861
    %3995 = vmatprep.subr.bf16.mxu0 0
    %3996 = vmatpush2.bf16.msra.mxu0 %v3860
    %3997 = vmatprep.subr.bf16.mxu0 0
    %3998 = vmatpush2.bf16.msra.mxu0 %v3859
    %3999 = vmatprep.subr.bf16.mxu0 0
    %4000 = vmatpush2.bf16.msra.mxu0 %v3858
    %4001 = vmatprep.subr.bf16.mxu0 0
    %4002 = vmatpush2.bf16.msra.mxu0 %v3857
    %4003 = vmatprep.subr.bf16.mxu0 0
    %4004 = vmatpush2.bf16.msra.mxu0 %v3856
    %4005 = vmatprep.subr.bf16.mxu0 0
    %4006 = vmatpush2.bf16.msra.mxu0 %v3855
    %4007 = vmatprep.mubr.bf16.mxu0 %v3449
    %4008 = vmatmul.mubr.bf16.gmra.mxu0 %v3448
    %v4009 = vpop.f32.mrf.mxu0
    %v4010 = vadd.f32 %v3589, %v4009
    %v4011 = vpop.f32.mrf.mxu0
    %v4012 = vpop.f32.mrf.mxu0
    %v4013 = vpop.f32.mrf.mxu0
    %4014 = vdwg.mxu0
    %4015 = vmatprep.subr.bf16.mxu0 0
    %4016 = vmatpush1.bf16.msra.mxu0 %v3870
    %4017 = vmatprep.subr.bf16.mxu0 0
    %4018 = vmatpush1.bf16.msra.mxu0 %v3869
    %4019 = vmatprep.subr.bf16.mxu0 0
    %4020 = vmatpush1.bf16.msra.mxu0 %v3868
    %4021 = vmatprep.subr.bf16.mxu0 0
    %4022 = vmatpush1.bf16.msra.mxu0 %v3867
    %4023 = vmatprep.subr.bf16.mxu0 0
    %4024 = vmatpush1.bf16.msra.mxu0 %v3866
    %4025 = vmatprep.subr.bf16.mxu0 0
    %4026 = vmatpush1.bf16.msra.mxu0 %v3865
    %4027 = vmatprep.subr.bf16.mxu0 0
    %4028 = vmatpush1.bf16.msra.mxu0 %v3864
    %4029 = vmatprep.subr.bf16.mxu0 0
    %4030 = vmatpush1.bf16.msra.mxu0 %v3863
    %4031 = vmatprep.subr.bf16.mxu0 0
    %4032 = vmatpush2.bf16.msra.mxu0 %v3878
    %4033 = vmatprep.subr.bf16.mxu0 0
    %4034 = vmatpush2.bf16.msra.mxu0 %v3877
    %4035 = vmatprep.subr.bf16.mxu0 0
    %4036 = vmatpush2.bf16.msra.mxu0 %v3876
    %4037 = vmatprep.subr.bf16.mxu0 0
    %4038 = vmatpush2.bf16.msra.mxu0 %v3875
    %4039 = vmatprep.subr.bf16.mxu0 0
    %4040 = vmatpush2.bf16.msra.mxu0 %v3874
    %4041 = vmatprep.subr.bf16.mxu0 0
    %4042 = vmatpush2.bf16.msra.mxu0 %v3873
    %4043 = vmatprep.subr.bf16.mxu0 0
    %4044 = vmatpush2.bf16.msra.mxu0 %v3872
    %4045 = vmatprep.subr.bf16.mxu0 0
    %4046 = vmatpush2.bf16.msra.mxu0 %v3871
    %4047 = vmatprep.mubr.bf16.mxu0 %v3451
    %4048 = vmatmul.mubr.bf16.gmra.mxu0 %v3450
    %v4049 = vpop.f32.mrf.mxu0
    %v4050 = vadd.f32 %v4010, %v4049
    %v4051 = vpop.f32.mrf.mxu0
    %v4052 = vpop.f32.mrf.mxu0
    %v4053 = vpop.f32.mrf.mxu0
    %4054 = vdwg.mxu0
    %4055 = vmatprep.subr.bf16.mxu0 0
    %4056 = vmatpush1.bf16.msra.mxu0 %v3886
    %4057 = vmatprep.subr.bf16.mxu0 0
    %4058 = vmatpush1.bf16.msra.mxu0 %v3885
    %4059 = vmatprep.subr.bf16.mxu0 0
    %4060 = vmatpush1.bf16.msra.mxu0 %v3884
    %4061 = vmatprep.subr.bf16.mxu0 0
    %4062 = vmatpush1.bf16.msra.mxu0 %v3883
    %4063 = vmatprep.subr.bf16.mxu0 0
    %4064 = vmatpush1.bf16.msra.mxu0 %v3882
    %4065 = vmatprep.subr.bf16.mxu0 0
    %4066 = vmatpush1.bf16.msra.mxu0 %v3881
    %4067 = vmatprep.subr.bf16.mxu0 0
    %4068 = vmatpush1.bf16.msra.mxu0 %v3880
    %4069 = vmatprep.subr.bf16.mxu0 0
    %4070 = vmatpush1.bf16.msra.mxu0 %v3879
    %4071 = vmatprep.subr.bf16.mxu0 0
    %4072 = vmatpush2.bf16.msra.mxu0 %v3894
    %4073 = vmatprep.subr.bf16.mxu0 0
    %4074 = vmatpush2.bf16.msra.mxu0 %v3893
    %4075 = vmatprep.subr.bf16.mxu0 0
    %4076 = vmatpush2.bf16.msra.mxu0 %v3892
    %4077 = vmatprep.subr.bf16.mxu0 0
    %4078 = vmatpush2.bf16.msra.mxu0 %v3891
    %4079 = vmatprep.subr.bf16.mxu0 0
    %4080 = vmatpush2.bf16.msra.mxu0 %v3890
    %4081 = vmatprep.subr.bf16.mxu0 0
    %4082 = vmatpush2.bf16.msra.mxu0 %v3889
    %4083 = vmatprep.subr.bf16.mxu0 0
    %4084 = vmatpush2.bf16.msra.mxu0 %v3888
    %4085 = vmatprep.subr.bf16.mxu0 0
    %4086 = vmatpush2.bf16.msra.mxu0 %v3887
    %4087 = vmatprep.mubr.bf16.mxu0 %v3453
    %4088 = vmatmul.mubr.bf16.gmra.mxu0 %v3452
    %v4089 = vpop.f32.mrf.mxu0
    %v4090 = vadd.f32 %v4050, %v4089
    %v4091 = vpop.f32.mrf.mxu0
    %v4092 = vpop.f32.mrf.mxu0
    %v4093 = vpop.f32.mrf.mxu0
    %4094 = vdwg.mxu0
    %4095 = vmatprep.subr.bf16.mxu0 0
    %4096 = vmatpush1.bf16.msra.mxu0 %v3902
    %4097 = vmatprep.subr.bf16.mxu0 0
    %4098 = vmatpush1.bf16.msra.mxu0 %v3901
    %4099 = vmatprep.subr.bf16.mxu0 0
    %4100 = vmatpush1.bf16.msra.mxu0 %v3900
    %4101 = vmatprep.subr.bf16.mxu0 0
    %4102 = vmatpush1.bf16.msra.mxu0 %v3899
    %4103 = vmatprep.subr.bf16.mxu0 0
    %4104 = vmatpush1.bf16.msra.mxu0 %v3898
    %4105 = vmatprep.subr.bf16.mxu0 0
    %4106 = vmatpush1.bf16.msra.mxu0 %v3897
    %4107 = vmatprep.subr.bf16.mxu0 0
    %4108 = vmatpush1.bf16.msra.mxu0 %v3896
    %4109 = vmatprep.subr.bf16.mxu0 0
    %4110 = vmatpush1.bf16.msra.mxu0 %v3895
    %4111 = vmatprep.subr.bf16.mxu0 0
    %4112 = vmatpush2.bf16.msra.mxu0 %v3910
    %4113 = vmatprep.subr.bf16.mxu0 0
    %4114 = vmatpush2.bf16.msra.mxu0 %v3909
    %4115 = vmatprep.subr.bf16.mxu0 0
    %4116 = vmatpush2.bf16.msra.mxu0 %v3908
    %4117 = vmatprep.subr.bf16.mxu0 0
    %4118 = vmatpush2.bf16.msra.mxu0 %v3907
    %4119 = vmatprep.subr.bf16.mxu0 0
    %4120 = vmatpush2.bf16.msra.mxu0 %v3906
    %4121 = vmatprep.subr.bf16.mxu0 0
    %4122 = vmatpush2.bf16.msra.mxu0 %v3905
    %4123 = vmatprep.subr.bf16.mxu0 0
    %4124 = vmatpush2.bf16.msra.mxu0 %v3904
    %4125 = vmatprep.subr.bf16.mxu0 0
    %4126 = vmatpush2.bf16.msra.mxu0 %v3903
    %4127 = vmatprep.mubr.bf16.mxu0 %v3455
    %4128 = vmatmul.mubr.bf16.gmra.mxu0 %v3454
    %v4129 = vpop.f32.mrf.mxu0
    %v4130 = vadd.f32 %v4090, %v4129
    %v4131 = vpop.f32.mrf.mxu0
    %v4132 = vpop.f32.mrf.mxu0
    %v4133 = vpop.f32.mrf.mxu0
    %4134 = vdwg.mxu0
    %4135 = vst [vmem:[#allocation19] sm:$0xff] %v4130
    // Predicated region
    $region126: #{transformer_forward.1} parent=1 // pred_check
      _
    $region127: #{transformer_forward.1} parent=1 // pred_check_branch
      %4137 = sbr.rel (0) target = $region129
    $region128: #{transformer_forward.1} parent=1 // pred_region
      %s4139 = ssub.s32 128, 128
      %4140 = vsyncadd [#allocation4], %s4139
      %s4142 = sshll.u32 [#allocation19], 4
      %s4143 = int_to_ptr.vmem [resolvable:$true] %s4142
      %4145 = dma.vmem_to_hbm [thread:$0]  %s4143, 128, %s21, [#allocation4]
    $region129: #{transformer_forward.1} parent=1 // pred_fallthru
      _
    // Predicated region
    $region130: #{transformer_forward.1} parent=1 // pred_check
      _
    $region131: #{transformer_forward.1} parent=1 // pred_check_branch
      %4147 = sbr.rel (0) target = $region133
    $region132: #{transformer_forward.1} parent=1 // pred_region
      %4148 = dma.done [#allocation4], 128
    $region133: #{transformer_forward.1} parent=1 // pred_fallthru
      _
    %4149 = vsyncpa [#allocation3], 1
    %4150 = vsyncpa [#allocation6], 1
    %4151 = vsyncpa [#allocation9], 1
    %4152 = vsyncpa [#allocation12], 1
    %4153 = vsyncpa [#allocation15], 1
    %4154 = vsyncpa [#allocation18], 1
    %4155 = vsyncpa [#allocation4], 1

</llo_original>
